<compile_context>
chip_gen: v7x
topology: tpu7x:2x2x1
jax: 0.10.0
libtpu: 0.0.40
codegen_flags: <defaults>
</compile_context>

<pallas_src>
import functools

import jax
import jax.numpy as jnp
from jax import lax
from jax.experimental import pallas as pl
from jax.experimental.pallas import tpu as pltpu


def _sigmoid(x):
    # Written explicitly (exp on the EUP + divide) so the Pallas kernel and the
    # pure-JAX reference use the identical formula.
    return 1.0 / (1.0 + jnp.exp(-x))


# ---------------------------------------------------------------------------
# Fused Pallas kernel: input projection + GRU recurrence + (relu/linear) + residual
# ---------------------------------------------------------------------------
def _gru_kernel(x_ref, wih_ref, whh_ref, bih_ref, bhh_ref, *rest,
                T, N, H, use_linear, use_residual):
    if use_linear:
        wlin_ref, blin_ref, y_ref, gx_ref, h_all_ref = rest
    else:
        y_ref, gx_ref, h_all_ref = rest

    # (1) Input-side projections for every timestep in one MXU matmul
    #     (bf16 operands, f32 accumulation), kept resident in VMEM scratch.
    gx_ref[...] = (
        jnp.dot(x_ref[...].astype(jnp.bfloat16), wih_ref[...],
                preferred_element_type=jnp.float32)
        + bih_ref[...]
    )

    # (2) Sequential GRU recurrence.  Only the [N,H]@[H,3H] hidden projection
    #     is serial; the hidden state is carried in vregs, per-step hidden
    #     outputs land in a VMEM scratch slab.
    def step(s, h):
        row = s * N
        gx = gx_ref[pl.ds(row, N), :]                              # [N, 3H]
        gh = jnp.dot(h.astype(jnp.bfloat16), whh_ref[...],
                     preferred_element_type=jnp.float32) + bhh_ref[...]
        r = _sigmoid(gx[:, 0:H] + gh[:, 0:H])
        z = _sigmoid(gx[:, H:2 * H] + gh[:, H:2 * H])
        n_g = jnp.tanh(gx[:, 2 * H:3 * H] + r * gh[:, 2 * H:3 * H])
        h = (1.0 - z) * n_g + z * h                                # [N, H] f32
        h_all_ref[pl.ds(row, N), :] = h
        return h

    lax.fori_loop(0, T, step, jnp.zeros((N, H), jnp.float32), unroll=True)

    # (3) Epilogue on the full [T*N, .] block: optional relu + linear as one
    #     dense matmul, optional residual, one lane-dense unmasked store.
    out = h_all_ref[...]
    if use_linear:
        out = jnp.dot(jnp.maximum(out, 0.0).astype(jnp.bfloat16), wlin_ref[...],
                      preferred_element_type=jnp.float32) + blin_ref[...]
    if use_residual:
        out = out + x_ref[...]
    y_ref[...] = out.astype(y_ref.dtype)


# ---------------------------------------------------------------------------
# Wrapper (plain-JAX glue: permute / reshape / weight layout only)
# ---------------------------------------------------------------------------
@functools.partial(jax.jit, static_argnames=("add_linear", "use_residual"))
def temporal_encoder_forward(params, x, *, add_linear=False, use_residual=True):
    """x: [n, t, f] (PyTorch layout).  Returns y: [n, t, f_out]."""
    Nb, T, F = x.shape
    H = params["w_hh"].shape[1]          # w_hh: [3H, H]
    out_dim = F if add_linear else H
    residual = use_residual and (out_dim == F)

    # x.permute(1, 0, 2) -> time-major rows [T*Nb, F]
    x_rows = jnp.transpose(x, (1, 0, 2)).reshape(T * Nb, F).astype(jnp.float32)

    inputs = [
        x_rows,
        params["w_ih"].T.astype(jnp.bfloat16),            # [F, 3H]
        params["w_hh"].T.astype(jnp.bfloat16),            # [H, 3H]
        params["b_ih"].reshape(1, 3 * H).astype(jnp.float32),
        params["b_hh"].reshape(1, 3 * H).astype(jnp.float32),
    ]
    if add_linear:
        inputs += [
            params["w_lin"].T.astype(jnp.bfloat16),       # [H, F]
            params["b_lin"].reshape(1, F).astype(jnp.float32),
        ]

    kernel = functools.partial(_gru_kernel, T=T, N=Nb, H=H,
                               use_linear=add_linear, use_residual=residual)

    y_rows = pl.pallas_call(
        kernel,
        out_shape=jax.ShapeDtypeStruct((T * Nb, out_dim), jnp.float32),
        in_specs=[pl.BlockSpec(memory_space=pltpu.MemorySpace.VMEM)
                  for _ in inputs],
        out_specs=pl.BlockSpec(memory_space=pltpu.MemorySpace.VMEM),
        scratch_shapes=[
            pltpu.VMEM((T * Nb, 3 * H), jnp.float32),     # gate input projections
            pltpu.VMEM((T * Nb, H), jnp.float32),         # per-step hidden states
        ],
    )(*inputs)

    # [T*Nb, out] -> [T, Nb, out] -> permute back to [Nb, T, out]
    return jnp.transpose(y_rows.reshape(T, Nb, out_dim), (1, 0, 2))


# ---------------------------------------------------------------------------
# Pure-JAX reference (same math, same bf16 matmul operands) for verification
# ---------------------------------------------------------------------------
@functools.partial(jax.jit, static_argnames=("add_linear", "use_residual"))
def temporal_encoder_reference(params, x, *, add_linear=False, use_residual=True):
    Nb, T, F = x.shape
    H = params["w_hh"].shape[1]
    xt = jnp.transpose(x, (1, 0, 2)).astype(jnp.float32)          # [T, Nb, F]
    wih = params["w_ih"].T.astype(jnp.bfloat16)
    whh = params["w_hh"].T.astype(jnp.bfloat16)
    bih = params["b_ih"].astype(jnp.float32)
    bhh = params["b_hh"].astype(jnp.float32)

    def step(h, x_t):
        gx = jnp.dot(x_t.astype(jnp.bfloat16), wih,
                     preferred_element_type=jnp.float32) + bih
        gh = jnp.dot(h.astype(jnp.bfloat16), whh,
                     preferred_element_type=jnp.float32) + bhh
        r = _sigmoid(gx[:, :H] + gh[:, :H])
        z = _sigmoid(gx[:, H:2 * H] + gh[:, H:2 * H])
        n_g = jnp.tanh(gx[:, 2 * H:] + r * gh[:, 2 * H:])
        h_new = (1.0 - z) * n_g + z * h
        return h_new, h_new

    h0 = jnp.zeros((Nb, H), jnp.float32)
    _, y = lax.scan(step, h0, xt)                                  # [T, Nb, H]
    if add_linear:
        y = jnp.maximum(y, 0.0)
        y = jnp.dot(y.astype(jnp.bfloat16),
                    params["w_lin"].T.astype(jnp.bfloat16),
                    preferred_element_type=jnp.float32) + params["b_lin"]
    if use_residual and y.shape[-1] == F:
        y = y + xt
    return jnp.transpose(y, (1, 0, 2))


# ---------------------------------------------------------------------------
# Deterministic synthetic parameters (PyTorch nn.GRU / nn.Linear layouts)
# ---------------------------------------------------------------------------
def make_params(key, input_size, hidden_size, add_linear=False):
    ks = jax.random.split(key, 6)
    bound = hidden_size ** -0.5
    u = lambda k, shape, b: jax.random.uniform(k, shape, jnp.float32, -b, b)
    p = {
        "w_ih": u(ks[0], (3 * hidden_size, input_size), bound),   # gate order (r, z, n)
        "w_hh": u(ks[1], (3 * hidden_size, hidden_size), bound),
        "b_ih": u(ks[2], (3 * hidden_size,), bound),
        "b_hh": u(ks[3], (3 * hidden_size,), bound),
    }
    if add_linear:
        lb = hidden_size ** -0.5
        p["w_lin"] = u(ks[4], (input_size, hidden_size), lb)       # nn.Linear(H, F)
        p["b_lin"] = u(ks[5], (input_size,), lb)
    return p


# ---------------------------------------------------------------------------
if __name__ == "__main__":
    key = jax.random.PRNGKey(0)
    pkey, xkey = jax.random.split(key)

    # Small shapes consistent with the module: batch=2, seq=8,
    # input_size = hidden_size = 256 (lane-aligned), so residual path is active.
    Nb, T, F, H = 2, 8, 256, 256
    params = make_params(pkey, F, H, add_linear=True)
    x = jax.random.normal(xkey, (Nb, T, F), dtype=jnp.float32)

    # Default config: add_linear=False, use_residual=True (GRU + residual).
    y = temporal_encoder_forward(params, x)
    y_ref = temporal_encoder_reference(params, x)
    jax.block_until_ready((y, y_ref))
    assert y.shape == (Nb, T, H), y.shape
    assert float(jnp.max(jnp.abs(y - y_ref))) < 1e-2

    # add_linear=True config (ReLU + Linear fused in the same kernel epilogue).
    y2 = temporal_encoder_forward(params, x, add_linear=True)
    y2_ref = temporal_encoder_reference(params, x, add_linear=True)
    jax.block_until_ready((y2, y2_ref))
    assert y2.shape == (Nb, T, F), y2.shape
    assert float(jnp.max(jnp.abs(y2 - y2_ref))) < 1e-2

    print("KERNEL_OK")
</pallas_src>

<mosaic_0001>
module attributes {stable_mosaic.version = 11 : i64} {
  func.func @_gru_kernel(%arg0: memref<16x256xf32, #tpu.memory_space<vmem>>, %arg1: memref<256x768xbf16, #tpu.memory_space<vmem>>, %arg2: memref<256x768xbf16, #tpu.memory_space<vmem>>, %arg3: memref<1x768xf32, #tpu.memory_space<vmem>>, %arg4: memref<1x768xf32, #tpu.memory_space<vmem>>, %arg5: memref<16x256xf32, #tpu.memory_space<vmem>>, %arg6: memref<16x768xf32, #tpu.memory_space<vmem>>, %arg7: memref<16x256xf32, #tpu.memory_space<vmem>>) attributes {dimension_semantics = [], scalar_prefetch = 0 : i64, scratch_operands = 2 : i64, tpu.core_type = #tpu.core_type<tc>} {
    %c0 = arith.constant 0 : index
    %c0_0 = arith.constant 0 : index
    %0 = vector.load %arg0[%c0, %c0_0] : memref<16x256xf32, #tpu.memory_space<vmem>>, vector<16x256xf32>
    %1 = arith.truncf %0 : vector<16x256xf32> to vector<16x256xbf16>
    %c0_1 = arith.constant 0 : index
    %c0_2 = arith.constant 0 : index
    %2 = vector.load %arg1[%c0_1, %c0_2] : memref<256x768xbf16, #tpu.memory_space<vmem>>, vector<256x768xbf16>
    %cst = arith.constant dense<0.000000e+00> : vector<16x768xf32>
    %3 = tpu.matmul %1, %2, %cst {dimension_numbers = #tpu.dot_dimension_numbers<[1], [0], [0], [1], [0, 0, 1, 1], [], []>} : vector<16x256xbf16>, vector<256x768xbf16>, vector<16x768xf32> -> vector<16x768xf32>
    %c0_3 = arith.constant 0 : index
    %c0_4 = arith.constant 0 : index
    %4 = vector.load %arg3[%c0_3, %c0_4] : memref<1x768xf32, #tpu.memory_space<vmem>>, vector<1x768xf32>
    %5 = vector.broadcast %4 : vector<1x768xf32> to vector<16x768xf32>
    %6 = arith.addf %3, %5 : vector<16x768xf32>
    %c0_5 = arith.constant 0 : index
    %c0_6 = arith.constant 0 : index
    %7 = vector.load %arg6[%c0_5, %c0_6] : memref<16x768xf32, #tpu.memory_space<vmem>>, vector<16x768xf32>
    tpu.vector_store %arg6[%c0_5, %c0_6], %6 {strides = array<i32>} : memref<16x768xf32, #tpu.memory_space<vmem>>, vector<16x768xf32>,
    %cst_7 = arith.constant 0.000000e+00 : f32
    %8 = vector.broadcast %cst_7 : f32 to vector<2x256xf32>
    %c0_i32 = arith.constant 0 : i32
    %c2_i32 = arith.constant 2 : i32
    %9 = arith.muli %c0_i32, %c2_i32 : i32
    %10 = arith.index_cast %9 : i32 to index
    %c0_8 = arith.constant 0 : index
    %11 = vector.load %arg6[%10, %c0_8] : memref<16x768xf32, #tpu.memory_space<vmem>>, vector<2x768xf32>
    %12 = arith.truncf %8 : vector<2x256xf32> to vector<2x256xbf16>
    %c0_9 = arith.constant 0 : index
    %c0_10 = arith.constant 0 : index
    %13 = vector.load %arg2[%c0_9, %c0_10] : memref<256x768xbf16, #tpu.memory_space<vmem>>, vector<256x768xbf16>
    %cst_11 = arith.constant dense<0.000000e+00> : vector<2x768xf32>
    %14 = tpu.matmul %12, %13, %cst_11 {dimension_numbers = #tpu.dot_dimension_numbers<[1], [0], [0], [1], [0, 0, 1, 1], [], []>} : vector<2x256xbf16>, vector<256x768xbf16>, vector<2x768xf32> -> vector<2x768xf32>
    %c0_12 = arith.constant 0 : index
    %c0_13 = arith.constant 0 : index
    %15 = vector.load %arg4[%c0_12, %c0_13] : memref<1x768xf32, #tpu.memory_space<vmem>>, vector<1x768xf32>
    %16 = vector.broadcast %15 : vector<1x768xf32> to vector<2x768xf32>
    %17 = arith.addf %14, %16 : vector<2x768xf32>
    %18 = vector.extract_strided_slice %11 {offsets = [0, 0], sizes = [2, 256], strides = [1, 1]} : vector<2x768xf32> to vector<2x256xf32>
    %19 = vector.extract_strided_slice %17 {offsets = [0, 0], sizes = [2, 256], strides = [1, 1]} : vector<2x768xf32> to vector<2x256xf32>
    %20 = arith.addf %18, %19 : vector<2x256xf32>
    %cst_14 = arith.constant 0.000000e+00 : f32
    %21 = vector.broadcast %cst_14 : f32 to vector<2x256xf32>
    %22 = arith.subf %21, %20 : vector<2x256xf32>
    %23 = math.exp %22 : vector<2x256xf32>
    %cst_15 = arith.constant 1.000000e+00 : f32
    %24 = vector.broadcast %cst_15 : f32 to vector<2x256xf32>
    %25 = arith.addf %24, %23 : vector<2x256xf32>
    %cst_16 = arith.constant 1.000000e+00 : f32
    %26 = vector.broadcast %cst_16 : f32 to vector<2x256xf32>
    %27 = arith.divf %26, %25 : vector<2x256xf32>
    %28 = vector.extract_strided_slice %11 {offsets = [0, 256], sizes = [2, 256], strides = [1, 1]} : vector<2x768xf32> to vector<2x256xf32>
    %29 = vector.extract_strided_slice %17 {offsets = [0, 256], sizes = [2, 256], strides = [1, 1]} : vector<2x768xf32> to vector<2x256xf32>
    %30 = arith.addf %28, %29 : vector<2x256xf32>
    %cst_17 = arith.constant 0.000000e+00 : f32
    %31 = vector.broadcast %cst_17 : f32 to vector<2x256xf32>
    %32 = arith.subf %31, %30 : vector<2x256xf32>
    %33 = math.exp %32 : vector<2x256xf32>
    %cst_18 = arith.constant 1.000000e+00 : f32
    %34 = vector.broadcast %cst_18 : f32 to vector<2x256xf32>
    %35 = arith.addf %34, %33 : vector<2x256xf32>
    %cst_19 = arith.constant 1.000000e+00 : f32
    %36 = vector.broadcast %cst_19 : f32 to vector<2x256xf32>
    %37 = arith.divf %36, %35 : vector<2x256xf32>
    %38 = vector.extract_strided_slice %11 {offsets = [0, 512], sizes = [2, 256], strides = [1, 1]} : vector<2x768xf32> to vector<2x256xf32>
    %39 = vector.extract_strided_slice %17 {offsets = [0, 512], sizes = [2, 256], strides = [1, 1]} : vector<2x768xf32> to vector<2x256xf32>
    %40 = arith.mulf %27, %39 : vector<2x256xf32>
    %41 = arith.addf %38, %40 : vector<2x256xf32>
    %42 = math.tanh %41 : vector<2x256xf32>
    %cst_20 = arith.constant 1.000000e+00 : f32
    %43 = vector.broadcast %cst_20 : f32 to vector<2x256xf32>
    %44 = arith.subf %43, %37 : vector<2x256xf32>
    %45 = arith.mulf %44, %42 : vector<2x256xf32>
    %46 = arith.mulf %37, %8 : vector<2x256xf32>
    %47 = arith.addf %45, %46 : vector<2x256xf32>
    %48 = arith.index_cast %9 : i32 to index
    %c0_21 = arith.constant 0 : index
    %49 = vector.load %arg7[%48, %c0_21] : memref<16x256xf32, #tpu.memory_space<vmem>>, vector<2x256xf32>
    tpu.vector_store %arg7[%48, %c0_21], %47 {strides = array<i32>} : memref<16x256xf32, #tpu.memory_space<vmem>>, vector<2x256xf32>,
    %c1_i32 = arith.constant 1 : i32
    %c2_i32_22 = arith.constant 2 : i32
    %50 = arith.muli %c1_i32, %c2_i32_22 : i32
    %51 = arith.index_cast %50 : i32 to index
    %c0_23 = arith.constant 0 : index
    %52 = vector.load %arg6[%51, %c0_23] : memref<16x768xf32, #tpu.memory_space<vmem>>, vector<2x768xf32>
    %53 = arith.truncf %47 : vector<2x256xf32> to vector<2x256xbf16>
    %c0_24 = arith.constant 0 : index
    %c0_25 = arith.constant 0 : index
    %54 = vector.load %arg2[%c0_24, %c0_25] : memref<256x768xbf16, #tpu.memory_space<vmem>>, vector<256x768xbf16>
    %cst_26 = arith.constant dense<0.000000e+00> : vector<2x768xf32>
    %55 = tpu.matmul %53, %54, %cst_26 {dimension_numbers = #tpu.dot_dimension_numbers<[1], [0], [0], [1], [0, 0, 1, 1], [], []>} : vector<2x256xbf16>, vector<256x768xbf16>, vector<2x768xf32> -> vector<2x768xf32>
    %c0_27 = arith.constant 0 : index
    %c0_28 = arith.constant 0 : index
    %56 = vector.load %arg4[%c0_27, %c0_28] : memref<1x768xf32, #tpu.memory_space<vmem>>, vector<1x768xf32>
    %57 = vector.broadcast %56 : vector<1x768xf32> to vector<2x768xf32>
    %58 = arith.addf %55, %57 : vector<2x768xf32>
    %59 = vector.extract_strided_slice %52 {offsets = [0, 0], sizes = [2, 256], strides = [1, 1]} : vector<2x768xf32> to vector<2x256xf32>
    %60 = vector.extract_strided_slice %58 {offsets = [0, 0], sizes = [2, 256], strides = [1, 1]} : vector<2x768xf32> to vector<2x256xf32>
    %61 = arith.addf %59, %60 : vector<2x256xf32>
    %cst_29 = arith.constant 0.000000e+00 : f32
    %62 = vector.broadcast %cst_29 : f32 to vector<2x256xf32>
    %63 = arith.subf %62, %61 : vector<2x256xf32>
    %64 = math.exp %63 : vector<2x256xf32>
    %cst_30 = arith.constant 1.000000e+00 : f32
    %65 = vector.broadcast %cst_30 : f32 to vector<2x256xf32>
    %66 = arith.addf %65, %64 : vector<2x256xf32>
    %cst_31 = arith.constant 1.000000e+00 : f32
    %67 = vector.broadcast %cst_31 : f32 to vector<2x256xf32>
    %68 = arith.divf %67, %66 : vector<2x256xf32>
    %69 = vector.extract_strided_slice %52 {offsets = [0, 256], sizes = [2, 256], strides = [1, 1]} : vector<2x768xf32> to vector<2x256xf32>
    %70 = vector.extract_strided_slice %58 {offsets = [0, 256], sizes = [2, 256], strides = [1, 1]} : vector<2x768xf32> to vector<2x256xf32>
    %71 = arith.addf %69, %70 : vector<2x256xf32>
    %cst_32 = arith.constant 0.000000e+00 : f32
    %72 = vector.broadcast %cst_32 : f32 to vector<2x256xf32>
    %73 = arith.subf %72, %71 : vector<2x256xf32>
    %74 = math.exp %73 : vector<2x256xf32>
    %cst_33 = arith.constant 1.000000e+00 : f32
    %75 = vector.broadcast %cst_33 : f32 to vector<2x256xf32>
    %76 = arith.addf %75, %74 : vector<2x256xf32>
    %cst_34 = arith.constant 1.000000e+00 : f32
    %77 = vector.broadcast %cst_34 : f32 to vector<2x256xf32>
    %78 = arith.divf %77, %76 : vector<2x256xf32>
    %79 = vector.extract_strided_slice %52 {offsets = [0, 512], sizes = [2, 256], strides = [1, 1]} : vector<2x768xf32> to vector<2x256xf32>
    %80 = vector.extract_strided_slice %58 {offsets = [0, 512], sizes = [2, 256], strides = [1, 1]} : vector<2x768xf32> to vector<2x256xf32>
    %81 = arith.mulf %68, %80 : vector<2x256xf32>
    %82 = arith.addf %79, %81 : vector<2x256xf32>
    %83 = math.tanh %82 : vector<2x256xf32>
    %cst_35 = arith.constant 1.000000e+00 : f32
    %84 = vector.broadcast %cst_35 : f32 to vector<2x256xf32>
    %85 = arith.subf %84, %78 : vector<2x256xf32>
    %86 = arith.mulf %85, %83 : vector<2x256xf32>
    %87 = arith.mulf %78, %47 : vector<2x256xf32>
    %88 = arith.addf %86, %87 : vector<2x256xf32>
    %89 = arith.index_cast %50 : i32 to index
    %c0_36 = arith.constant 0 : index
    %90 = vector.load %arg7[%89, %c0_36] : memref<16x256xf32, #tpu.memory_space<vmem>>, vector<2x256xf32>
    tpu.vector_store %arg7[%89, %c0_36], %88 {strides = array<i32>} : memref<16x256xf32, #tpu.memory_space<vmem>>, vector<2x256xf32>,
    %c2_i32_37 = arith.constant 2 : i32
    %c2_i32_38 = arith.constant 2 : i32
    %91 = arith.muli %c2_i32_37, %c2_i32_38 : i32
    %92 = arith.index_cast %91 : i32 to index
    %c0_39 = arith.constant 0 : index
    %93 = vector.load %arg6[%92, %c0_39] : memref<16x768xf32, #tpu.memory_space<vmem>>, vector<2x768xf32>
    %94 = arith.truncf %88 : vector<2x256xf32> to vector<2x256xbf16>
    %c0_40 = arith.constant 0 : index
    %c0_41 = arith.constant 0 : index
    %95 = vector.load %arg2[%c0_40, %c0_41] : memref<256x768xbf16, #tpu.memory_space<vmem>>, vector<256x768xbf16>
    %cst_42 = arith.constant dense<0.000000e+00> : vector<2x768xf32>
    %96 = tpu.matmul %94, %95, %cst_42 {dimension_numbers = #tpu.dot_dimension_numbers<[1], [0], [0], [1], [0, 0, 1, 1], [], []>} : vector<2x256xbf16>, vector<256x768xbf16>, vector<2x768xf32> -> vector<2x768xf32>
    %c0_43 = arith.constant 0 : index
    %c0_44 = arith.constant 0 : index
    %97 = vector.load %arg4[%c0_43, %c0_44] : memref<1x768xf32, #tpu.memory_space<vmem>>, vector<1x768xf32>
    %98 = vector.broadcast %97 : vector<1x768xf32> to vector<2x768xf32>
    %99 = arith.addf %96, %98 : vector<2x768xf32>
    %100 = vector.extract_strided_slice %93 {offsets = [0, 0], sizes = [2, 256], strides = [1, 1]} : vector<2x768xf32> to vector<2x256xf32>
    %101 = vector.extract_strided_slice %99 {offsets = [0, 0], sizes = [2, 256], strides = [1, 1]} : vector<2x768xf32> to vector<2x256xf32>
    %102 = arith.addf %100, %101 : vector<2x256xf32>
    %cst_45 = arith.constant 0.000000e+00 : f32
    %103 = vector.broadcast %cst_45 : f32 to vector<2x256xf32>
    %104 = arith.subf %103, %102 : vector<2x256xf32>
    %105 = math.exp %104 : vector<2x256xf32>
    %cst_46 = arith.constant 1.000000e+00 : f32
    %106 = vector.broadcast %cst_46 : f32 to vector<2x256xf32>
    %107 = arith.addf %106, %105 : vector<2x256xf32>
    %cst_47 = arith.constant 1.000000e+00 : f32
    %108 = vector.broadcast %cst_47 : f32 to vector<2x256xf32>
    %109 = arith.divf %108, %107 : vector<2x256xf32>
    %110 = vector.extract_strided_slice %93 {offsets = [0, 256], sizes = [2, 256], strides = [1, 1]} : vector<2x768xf32> to vector<2x256xf32>
    %111 = vector.extract_strided_slice %99 {offsets = [0, 256], sizes = [2, 256], strides = [1, 1]} : vector<2x768xf32> to vector<2x256xf32>
    %112 = arith.addf %110, %111 : vector<2x256xf32>
    %cst_48 = arith.constant 0.000000e+00 : f32
    %113 = vector.broadcast %cst_48 : f32 to vector<2x256xf32>
    %114 = arith.subf %113, %112 : vector<2x256xf32>
    %115 = math.exp %114 : vector<2x256xf32>
    %cst_49 = arith.constant 1.000000e+00 : f32
    %116 = vector.broadcast %cst_49 : f32 to vector<2x256xf32>
    %117 = arith.addf %116, %115 : vector<2x256xf32>
    %cst_50 = arith.constant 1.000000e+00 : f32
    %118 = vector.broadcast %cst_50 : f32 to vector<2x256xf32>
    %119 = arith.divf %118, %117 : vector<2x256xf32>
    %120 = vector.extract_strided_slice %93 {offsets = [0, 512], sizes = [2, 256], strides = [1, 1]} : vector<2x768xf32> to vector<2x256xf32>
    %121 = vector.extract_strided_slice %99 {offsets = [0, 512], sizes = [2, 256], strides = [1, 1]} : vector<2x768xf32> to vector<2x256xf32>
    %122 = arith.mulf %109, %121 : vector<2x256xf32>
    %123 = arith.addf %120, %122 : vector<2x256xf32>
    %124 = math.tanh %123 : vector<2x256xf32>
    %cst_51 = arith.constant 1.000000e+00 : f32
    %125 = vector.broadcast %cst_51 : f32 to vector<2x256xf32>
    %126 = arith.subf %125, %119 : vector<2x256xf32>
    %127 = arith.mulf %126, %124 : vector<2x256xf32>
    %128 = arith.mulf %119, %88 : vector<2x256xf32>
    %129 = arith.addf %127, %128 : vector<2x256xf32>
    %130 = arith.index_cast %91 : i32 to index
    %c0_52 = arith.constant 0 : index
    %131 = vector.load %arg7[%130, %c0_52] : memref<16x256xf32, #tpu.memory_space<vmem>>, vector<2x256xf32>
    tpu.vector_store %arg7[%130, %c0_52], %129 {strides = array<i32>} : memref<16x256xf32, #tpu.memory_space<vmem>>, vector<2x256xf32>,
    %c3_i32 = arith.constant 3 : i32
    %c2_i32_53 = arith.constant 2 : i32
    %132 = arith.muli %c3_i32, %c2_i32_53 : i32
    %133 = arith.index_cast %132 : i32 to index
    %c0_54 = arith.constant 0 : index
    %134 = vector.load %arg6[%133, %c0_54] : memref<16x768xf32, #tpu.memory_space<vmem>>, vector<2x768xf32>
    %135 = arith.truncf %129 : vector<2x256xf32> to vector<2x256xbf16>
    %c0_55 = arith.constant 0 : index
    %c0_56 = arith.constant 0 : index
    %136 = vector.load %arg2[%c0_55, %c0_56] : memref<256x768xbf16, #tpu.memory_space<vmem>>, vector<256x768xbf16>
    %cst_57 = arith.constant dense<0.000000e+00> : vector<2x768xf32>
    %137 = tpu.matmul %135, %136, %cst_57 {dimension_numbers = #tpu.dot_dimension_numbers<[1], [0], [0], [1], [0, 0, 1, 1], [], []>} : vector<2x256xbf16>, vector<256x768xbf16>, vector<2x768xf32> -> vector<2x768xf32>
    %c0_58 = arith.constant 0 : index
    %c0_59 = arith.constant 0 : index
    %138 = vector.load %arg4[%c0_58, %c0_59] : memref<1x768xf32, #tpu.memory_space<vmem>>, vector<1x768xf32>
    %139 = vector.broadcast %138 : vector<1x768xf32> to vector<2x768xf32>
    %140 = arith.addf %137, %139 : vector<2x768xf32>
    %141 = vector.extract_strided_slice %134 {offsets = [0, 0], sizes = [2, 256], strides = [1, 1]} : vector<2x768xf32> to vector<2x256xf32>
    %142 = vector.extract_strided_slice %140 {offsets = [0, 0], sizes = [2, 256], strides = [1, 1]} : vector<2x768xf32> to vector<2x256xf32>
    %143 = arith.addf %141, %142 : vector<2x256xf32>
    %cst_60 = arith.constant 0.000000e+00 : f32
    %144 = vector.broadcast %cst_60 : f32 to vector<2x256xf32>
    %145 = arith.subf %144, %143 : vector<2x256xf32>
    %146 = math.exp %145 : vector<2x256xf32>
    %cst_61 = arith.constant 1.000000e+00 : f32
    %147 = vector.broadcast %cst_61 : f32 to vector<2x256xf32>
    %148 = arith.addf %147, %146 : vector<2x256xf32>
    %cst_62 = arith.constant 1.000000e+00 : f32
    %149 = vector.broadcast %cst_62 : f32 to vector<2x256xf32>
    %150 = arith.divf %149, %148 : vector<2x256xf32>
    %151 = vector.extract_strided_slice %134 {offsets = [0, 256], sizes = [2, 256], strides = [1, 1]} : vector<2x768xf32> to vector<2x256xf32>
    %152 = vector.extract_strided_slice %140 {offsets = [0, 256], sizes = [2, 256], strides = [1, 1]} : vector<2x768xf32> to vector<2x256xf32>
    %153 = arith.addf %151, %152 : vector<2x256xf32>
    %cst_63 = arith.constant 0.000000e+00 : f32
    %154 = vector.broadcast %cst_63 : f32 to vector<2x256xf32>
    %155 = arith.subf %154, %153 : vector<2x256xf32>
    %156 = math.exp %155 : vector<2x256xf32>
    %cst_64 = arith.constant 1.000000e+00 : f32
    %157 = vector.broadcast %cst_64 : f32 to vector<2x256xf32>
    %158 = arith.addf %157, %156 : vector<2x256xf32>
    %cst_65 = arith.constant 1.000000e+00 : f32
    %159 = vector.broadcast %cst_65 : f32 to vector<2x256xf32>
    %160 = arith.divf %159, %158 : vector<2x256xf32>
    %161 = vector.extract_strided_slice %134 {offsets = [0, 512], sizes = [2, 256], strides = [1, 1]} : vector<2x768xf32> to vector<2x256xf32>
    %162 = vector.extract_strided_slice %140 {offsets = [0, 512], sizes = [2, 256], strides = [1, 1]} : vector<2x768xf32> to vector<2x256xf32>
    %163 = arith.mulf %150, %162 : vector<2x256xf32>
    %164 = arith.addf %161, %163 : vector<2x256xf32>
    %165 = math.tanh %164 : vector<2x256xf32>
    %cst_66 = arith.constant 1.000000e+00 : f32
    %166 = vector.broadcast %cst_66 : f32 to vector<2x256xf32>
    %167 = arith.subf %166, %160 : vector<2x256xf32>
    %168 = arith.mulf %167, %165 : vector<2x256xf32>
    %169 = arith.mulf %160, %129 : vector<2x256xf32>
    %170 = arith.addf %168, %169 : vector<2x256xf32>
    %171 = arith.index_cast %132 : i32 to index
    %c0_67 = arith.constant 0 : index
    %172 = vector.load %arg7[%171, %c0_67] : memref<16x256xf32, #tpu.memory_space<vmem>>, vector<2x256xf32>
    tpu.vector_store %arg7[%171, %c0_67], %170 {strides = array<i32>} : memref<16x256xf32, #tpu.memory_space<vmem>>, vector<2x256xf32>,
    %c4_i32 = arith.constant 4 : i32
    %c2_i32_68 = arith.constant 2 : i32
    %173 = arith.muli %c4_i32, %c2_i32_68 : i32
    %174 = arith.index_cast %173 : i32 to index
    %c0_69 = arith.constant 0 : index
    %175 = vector.load %arg6[%174, %c0_69] : memref<16x768xf32, #tpu.memory_space<vmem>>, vector<2x768xf32>
    %176 = arith.truncf %170 : vector<2x256xf32> to vector<2x256xbf16>
    %c0_70 = arith.constant 0 : index
    %c0_71 = arith.constant 0 : index
    %177 = vector.load %arg2[%c0_70, %c0_71] : memref<256x768xbf16, #tpu.memory_space<vmem>>, vector<256x768xbf16>
    %cst_72 = arith.constant dense<0.000000e+00> : vector<2x768xf32>
    %178 = tpu.matmul %176, %177, %cst_72 {dimension_numbers = #tpu.dot_dimension_numbers<[1], [0], [0], [1], [0, 0, 1, 1], [], []>} : vector<2x256xbf16>, vector<256x768xbf16>, vector<2x768xf32> -> vector<2x768xf32>
    %c0_73 = arith.constant 0 : index
    %c0_74 = arith.constant 0 : index
    %179 = vector.load %arg4[%c0_73, %c0_74] : memref<1x768xf32, #tpu.memory_space<vmem>>, vector<1x768xf32>
    %180 = vector.broadcast %179 : vector<1x768xf32> to vector<2x768xf32>
    %181 = arith.addf %178, %180 : vector<2x768xf32>
    %182 = vector.extract_strided_slice %175 {offsets = [0, 0], sizes = [2, 256], strides = [1, 1]} : vector<2x768xf32> to vector<2x256xf32>
    %183 = vector.extract_strided_slice %181 {offsets = [0, 0], sizes = [2, 256], strides = [1, 1]} : vector<2x768xf32> to vector<2x256xf32>
    %184 = arith.addf %182, %183 : vector<2x256xf32>
    %cst_75 = arith.constant 0.000000e+00 : f32
    %185 = vector.broadcast %cst_75 : f32 to vector<2x256xf32>
    %186 = arith.subf %185, %184 : vector<2x256xf32>
    %187 = math.exp %186 : vector<2x256xf32>
    %cst_76 = arith.constant 1.000000e+00 : f32
    %188 = vector.broadcast %cst_76 : f32 to vector<2x256xf32>
    %189 = arith.addf %188, %187 : vector<2x256xf32>
    %cst_77 = arith.constant 1.000000e+00 : f32
    %190 = vector.broadcast %cst_77 : f32 to vector<2x256xf32>
    %191 = arith.divf %190, %189 : vector<2x256xf32>
    %192 = vector.extract_strided_slice %175 {offsets = [0, 256], sizes = [2, 256], strides = [1, 1]} : vector<2x768xf32> to vector<2x256xf32>
    %193 = vector.extract_strided_slice %181 {offsets = [0, 256], sizes = [2, 256], strides = [1, 1]} : vector<2x768xf32> to vector<2x256xf32>
    %194 = arith.addf %192, %193 : vector<2x256xf32>
    %cst_78 = arith.constant 0.000000e+00 : f32
    %195 = vector.broadcast %cst_78 : f32 to vector<2x256xf32>
    %196 = arith.subf %195, %194 : vector<2x256xf32>
    %197 = math.exp %196 : vector<2x256xf32>
    %cst_79 = arith.constant 1.000000e+00 : f32
    %198 = vector.broadcast %cst_79 : f32 to vector<2x256xf32>
    %199 = arith.addf %198, %197 : vector<2x256xf32>
    %cst_80 = arith.constant 1.000000e+00 : f32
    %200 = vector.broadcast %cst_80 : f32 to vector<2x256xf32>
    %201 = arith.divf %200, %199 : vector<2x256xf32>
    %202 = vector.extract_strided_slice %175 {offsets = [0, 512], sizes = [2, 256], strides = [1, 1]} : vector<2x768xf32> to vector<2x256xf32>
    %203 = vector.extract_strided_slice %181 {offsets = [0, 512], sizes = [2, 256], strides = [1, 1]} : vector<2x768xf32> to vector<2x256xf32>
    %204 = arith.mulf %191, %203 : vector<2x256xf32>
    %205 = arith.addf %202, %204 : vector<2x256xf32>
    %206 = math.tanh %205 : vector<2x256xf32>
    %cst_81 = arith.constant 1.000000e+00 : f32
    %207 = vector.broadcast %cst_81 : f32 to vector<2x256xf32>
    %208 = arith.subf %207, %201 : vector<2x256xf32>
    %209 = arith.mulf %208, %206 : vector<2x256xf32>
    %210 = arith.mulf %201, %170 : vector<2x256xf32>
    %211 = arith.addf %209, %210 : vector<2x256xf32>
    %212 = arith.index_cast %173 : i32 to index
    %c0_82 = arith.constant 0 : index
    %213 = vector.load %arg7[%212, %c0_82] : memref<16x256xf32, #tpu.memory_space<vmem>>, vector<2x256xf32>
    tpu.vector_store %arg7[%212, %c0_82], %211 {strides = array<i32>} : memref<16x256xf32, #tpu.memory_space<vmem>>, vector<2x256xf32>,
    %c5_i32 = arith.constant 5 : i32
    %c2_i32_83 = arith.constant 2 : i32
    %214 = arith.muli %c5_i32, %c2_i32_83 : i32
    %215 = arith.index_cast %214 : i32 to index
    %c0_84 = arith.constant 0 : index
    %216 = vector.load %arg6[%215, %c0_84] : memref<16x768xf32, #tpu.memory_space<vmem>>, vector<2x768xf32>
    %217 = arith.truncf %211 : vector<2x256xf32> to vector<2x256xbf16>
    %c0_85 = arith.constant 0 : index
    %c0_86 = arith.constant 0 : index
    %218 = vector.load %arg2[%c0_85, %c0_86] : memref<256x768xbf16, #tpu.memory_space<vmem>>, vector<256x768xbf16>
    %cst_87 = arith.constant dense<0.000000e+00> : vector<2x768xf32>
    %219 = tpu.matmul %217, %218, %cst_87 {dimension_numbers = #tpu.dot_dimension_numbers<[1], [0], [0], [1], [0, 0, 1, 1], [], []>} : vector<2x256xbf16>, vector<256x768xbf16>, vector<2x768xf32> -> vector<2x768xf32>
    %c0_88 = arith.constant 0 : index
    %c0_89 = arith.constant 0 : index
    %220 = vector.load %arg4[%c0_88, %c0_89] : memref<1x768xf32, #tpu.memory_space<vmem>>, vector<1x768xf32>
    %221 = vector.broadcast %220 : vector<1x768xf32> to vector<2x768xf32>
    %222 = arith.addf %219, %221 : vector<2x768xf32>
    %223 = vector.extract_strided_slice %216 {offsets = [0, 0], sizes = [2, 256], strides = [1, 1]} : vector<2x768xf32> to vector<2x256xf32>
    %224 = vector.extract_strided_slice %222 {offsets = [0, 0], sizes = [2, 256], strides = [1, 1]} : vector<2x768xf32> to vector<2x256xf32>
    %225 = arith.addf %223, %224 : vector<2x256xf32>
    %cst_90 = arith.constant 0.000000e+00 : f32
    %226 = vector.broadcast %cst_90 : f32 to vector<2x256xf32>
    %227 = arith.subf %226, %225 : vector<2x256xf32>
    %228 = math.exp %227 : vector<2x256xf32>
    %cst_91 = arith.constant 1.000000e+00 : f32
    %229 = vector.broadcast %cst_91 : f32 to vector<2x256xf32>
    %230 = arith.addf %229, %228 : vector<2x256xf32>
    %cst_92 = arith.constant 1.000000e+00 : f32
    %231 = vector.broadcast %cst_92 : f32 to vector<2x256xf32>
    %232 = arith.divf %231, %230 : vector<2x256xf32>
    %233 = vector.extract_strided_slice %216 {offsets = [0, 256], sizes = [2, 256], strides = [1, 1]} : vector<2x768xf32> to vector<2x256xf32>
    %234 = vector.extract_strided_slice %222 {offsets = [0, 256], sizes = [2, 256], strides = [1, 1]} : vector<2x768xf32> to vector<2x256xf32>
    %235 = arith.addf %233, %234 : vector<2x256xf32>
    %cst_93 = arith.constant 0.000000e+00 : f32
    %236 = vector.broadcast %cst_93 : f32 to vector<2x256xf32>
    %237 = arith.subf %236, %235 : vector<2x256xf32>
    %238 = math.exp %237 : vector<2x256xf32>
    %cst_94 = arith.constant 1.000000e+00 : f32
    %239 = vector.broadcast %cst_94 : f32 to vector<2x256xf32>
    %240 = arith.addf %239, %238 : vector<2x256xf32>
    %cst_95 = arith.constant 1.000000e+00 : f32
    %241 = vector.broadcast %cst_95 : f32 to vector<2x256xf32>
    %242 = arith.divf %241, %240 : vector<2x256xf32>
    %243 = vector.extract_strided_slice %216 {offsets = [0, 512], sizes = [2, 256], strides = [1, 1]} : vector<2x768xf32> to vector<2x256xf32>
    %244 = vector.extract_strided_slice %222 {offsets = [0, 512], sizes = [2, 256], strides = [1, 1]} : vector<2x768xf32> to vector<2x256xf32>
    %245 = arith.mulf %232, %244 : vector<2x256xf32>
    %246 = arith.addf %243, %245 : vector<2x256xf32>
    %247 = math.tanh %246 : vector<2x256xf32>
    %cst_96 = arith.constant 1.000000e+00 : f32
    %248 = vector.broadcast %cst_96 : f32 to vector<2x256xf32>
    %249 = arith.subf %248, %242 : vector<2x256xf32>
    %250 = arith.mulf %249, %247 : vector<2x256xf32>
    %251 = arith.mulf %242, %211 : vector<2x256xf32>
    %252 = arith.addf %250, %251 : vector<2x256xf32>
    %253 = arith.index_cast %214 : i32 to index
    %c0_97 = arith.constant 0 : index
    %254 = vector.load %arg7[%253, %c0_97] : memref<16x256xf32, #tpu.memory_space<vmem>>, vector<2x256xf32>
    tpu.vector_store %arg7[%253, %c0_97], %252 {strides = array<i32>} : memref<16x256xf32, #tpu.memory_space<vmem>>, vector<2x256xf32>,
    %c6_i32 = arith.constant 6 : i32
    %c2_i32_98 = arith.constant 2 : i32
    %255 = arith.muli %c6_i32, %c2_i32_98 : i32
    %256 = arith.index_cast %255 : i32 to index
    %c0_99 = arith.constant 0 : index
    %257 = vector.load %arg6[%256, %c0_99] : memref<16x768xf32, #tpu.memory_space<vmem>>, vector<2x768xf32>
    %258 = arith.truncf %252 : vector<2x256xf32> to vector<2x256xbf16>
    %c0_100 = arith.constant 0 : index
    %c0_101 = arith.constant 0 : index
    %259 = vector.load %arg2[%c0_100, %c0_101] : memref<256x768xbf16, #tpu.memory_space<vmem>>, vector<256x768xbf16>
    %cst_102 = arith.constant dense<0.000000e+00> : vector<2x768xf32>
    %260 = tpu.matmul %258, %259, %cst_102 {dimension_numbers = #tpu.dot_dimension_numbers<[1], [0], [0], [1], [0, 0, 1, 1], [], []>} : vector<2x256xbf16>, vector<256x768xbf16>, vector<2x768xf32> -> vector<2x768xf32>
    %c0_103 = arith.constant 0 : index
    %c0_104 = arith.constant 0 : index
    %261 = vector.load %arg4[%c0_103, %c0_104] : memref<1x768xf32, #tpu.memory_space<vmem>>, vector<1x768xf32>
    %262 = vector.broadcast %261 : vector<1x768xf32> to vector<2x768xf32>
    %263 = arith.addf %260, %262 : vector<2x768xf32>
    %264 = vector.extract_strided_slice %257 {offsets = [0, 0], sizes = [2, 256], strides = [1, 1]} : vector<2x768xf32> to vector<2x256xf32>
    %265 = vector.extract_strided_slice %263 {offsets = [0, 0], sizes = [2, 256], strides = [1, 1]} : vector<2x768xf32> to vector<2x256xf32>
    %266 = arith.addf %264, %265 : vector<2x256xf32>
    %cst_105 = arith.constant 0.000000e+00 : f32
    %267 = vector.broadcast %cst_105 : f32 to vector<2x256xf32>
    %268 = arith.subf %267, %266 : vector<2x256xf32>
    %269 = math.exp %268 : vector<2x256xf32>
    %cst_106 = arith.constant 1.000000e+00 : f32
    %270 = vector.broadcast %cst_106 : f32 to vector<2x256xf32>
    %271 = arith.addf %270, %269 : vector<2x256xf32>
    %cst_107 = arith.constant 1.000000e+00 : f32
    %272 = vector.broadcast %cst_107 : f32 to vector<2x256xf32>
    %273 = arith.divf %272, %271 : vector<2x256xf32>
    %274 = vector.extract_strided_slice %257 {offsets = [0, 256], sizes = [2, 256], strides = [1, 1]} : vector<2x768xf32> to vector<2x256xf32>
    %275 = vector.extract_strided_slice %263 {offsets = [0, 256], sizes = [2, 256], strides = [1, 1]} : vector<2x768xf32> to vector<2x256xf32>
    %276 = arith.addf %274, %275 : vector<2x256xf32>
    %cst_108 = arith.constant 0.000000e+00 : f32
    %277 = vector.broadcast %cst_108 : f32 to vector<2x256xf32>
    %278 = arith.subf %277, %276 : vector<2x256xf32>
    %279 = math.exp %278 : vector<2x256xf32>
    %cst_109 = arith.constant 1.000000e+00 : f32
    %280 = vector.broadcast %cst_109 : f32 to vector<2x256xf32>
    %281 = arith.addf %280, %279 : vector<2x256xf32>
    %cst_110 = arith.constant 1.000000e+00 : f32
    %282 = vector.broadcast %cst_110 : f32 to vector<2x256xf32>
    %283 = arith.divf %282, %281 : vector<2x256xf32>
    %284 = vector.extract_strided_slice %257 {offsets = [0, 512], sizes = [2, 256], strides = [1, 1]} : vector<2x768xf32> to vector<2x256xf32>
    %285 = vector.extract_strided_slice %263 {offsets = [0, 512], sizes = [2, 256], strides = [1, 1]} : vector<2x768xf32> to vector<2x256xf32>
    %286 = arith.mulf %273, %285 : vector<2x256xf32>
    %287 = arith.addf %284, %286 : vector<2x256xf32>
    %288 = math.tanh %287 : vector<2x256xf32>
    %cst_111 = arith.constant 1.000000e+00 : f32
    %289 = vector.broadcast %cst_111 : f32 to vector<2x256xf32>
    %290 = arith.subf %289, %283 : vector<2x256xf32>
    %291 = arith.mulf %290, %288 : vector<2x256xf32>
    %292 = arith.mulf %283, %252 : vector<2x256xf32>
    %293 = arith.addf %291, %292 : vector<2x256xf32>
    %294 = arith.index_cast %255 : i32 to index
    %c0_112 = arith.constant 0 : index
    %295 = vector.load %arg7[%294, %c0_112] : memref<16x256xf32, #tpu.memory_space<vmem>>, vector<2x256xf32>
    tpu.vector_store %arg7[%294, %c0_112], %293 {strides = array<i32>} : memref<16x256xf32, #tpu.memory_space<vmem>>, vector<2x256xf32>,
    %c7_i32 = arith.constant 7 : i32
    %c2_i32_113 = arith.constant 2 : i32
    %296 = arith.muli %c7_i32, %c2_i32_113 : i32
    %297 = arith.index_cast %296 : i32 to index
    %c0_114 = arith.constant 0 : index
    %298 = vector.load %arg6[%297, %c0_114] : memref<16x768xf32, #tpu.memory_space<vmem>>, vector<2x768xf32>
    %299 = arith.truncf %293 : vector<2x256xf32> to vector<2x256xbf16>
    %c0_115 = arith.constant 0 : index
    %c0_116 = arith.constant 0 : index
    %300 = vector.load %arg2[%c0_115, %c0_116] : memref<256x768xbf16, #tpu.memory_space<vmem>>, vector<256x768xbf16>
    %cst_117 = arith.constant dense<0.000000e+00> : vector<2x768xf32>
    %301 = tpu.matmul %299, %300, %cst_117 {dimension_numbers = #tpu.dot_dimension_numbers<[1], [0], [0], [1], [0, 0, 1, 1], [], []>} : vector<2x256xbf16>, vector<256x768xbf16>, vector<2x768xf32> -> vector<2x768xf32>
    %c0_118 = arith.constant 0 : index
    %c0_119 = arith.constant 0 : index
    %302 = vector.load %arg4[%c0_118, %c0_119] : memref<1x768xf32, #tpu.memory_space<vmem>>, vector<1x768xf32>
    %303 = vector.broadcast %302 : vector<1x768xf32> to vector<2x768xf32>
    %304 = arith.addf %301, %303 : vector<2x768xf32>
    %305 = vector.extract_strided_slice %298 {offsets = [0, 0], sizes = [2, 256], strides = [1, 1]} : vector<2x768xf32> to vector<2x256xf32>
    %306 = vector.extract_strided_slice %304 {offsets = [0, 0], sizes = [2, 256], strides = [1, 1]} : vector<2x768xf32> to vector<2x256xf32>
    %307 = arith.addf %305, %306 : vector<2x256xf32>
    %cst_120 = arith.constant 0.000000e+00 : f32
    %308 = vector.broadcast %cst_120 : f32 to vector<2x256xf32>
    %309 = arith.subf %308, %307 : vector<2x256xf32>
    %310 = math.exp %309 : vector<2x256xf32>
    %cst_121 = arith.constant 1.000000e+00 : f32
    %311 = vector.broadcast %cst_121 : f32 to vector<2x256xf32>
    %312 = arith.addf %311, %310 : vector<2x256xf32>
    %cst_122 = arith.constant 1.000000e+00 : f32
    %313 = vector.broadcast %cst_122 : f32 to vector<2x256xf32>
    %314 = arith.divf %313, %312 : vector<2x256xf32>
    %315 = vector.extract_strided_slice %298 {offsets = [0, 256], sizes = [2, 256], strides = [1, 1]} : vector<2x768xf32> to vector<2x256xf32>
    %316 = vector.extract_strided_slice %304 {offsets = [0, 256], sizes = [2, 256], strides = [1, 1]} : vector<2x768xf32> to vector<2x256xf32>
    %317 = arith.addf %315, %316 : vector<2x256xf32>
    %cst_123 = arith.constant 0.000000e+00 : f32
    %318 = vector.broadcast %cst_123 : f32 to vector<2x256xf32>
    %319 = arith.subf %318, %317 : vector<2x256xf32>
    %320 = math.exp %319 : vector<2x256xf32>
    %cst_124 = arith.constant 1.000000e+00 : f32
    %321 = vector.broadcast %cst_124 : f32 to vector<2x256xf32>
    %322 = arith.addf %321, %320 : vector<2x256xf32>
    %cst_125 = arith.constant 1.000000e+00 : f32
    %323 = vector.broadcast %cst_125 : f32 to vector<2x256xf32>
    %324 = arith.divf %323, %322 : vector<2x256xf32>
    %325 = vector.extract_strided_slice %298 {offsets = [0, 512], sizes = [2, 256], strides = [1, 1]} : vector<2x768xf32> to vector<2x256xf32>
    %326 = vector.extract_strided_slice %304 {offsets = [0, 512], sizes = [2, 256], strides = [1, 1]} : vector<2x768xf32> to vector<2x256xf32>
    %327 = arith.mulf %314, %326 : vector<2x256xf32>
    %328 = arith.addf %325, %327 : vector<2x256xf32>
    %329 = math.tanh %328 : vector<2x256xf32>
    %cst_126 = arith.constant 1.000000e+00 : f32
    %330 = vector.broadcast %cst_126 : f32 to vector<2x256xf32>
    %331 = arith.subf %330, %324 : vector<2x256xf32>
    %332 = arith.mulf %331, %329 : vector<2x256xf32>
    %333 = arith.mulf %324, %293 : vector<2x256xf32>
    %334 = arith.addf %332, %333 : vector<2x256xf32>
    %335 = arith.index_cast %296 : i32 to index
    %c0_127 = arith.constant 0 : index
    %336 = vector.load %arg7[%335, %c0_127] : memref<16x256xf32, #tpu.memory_space<vmem>>, vector<2x256xf32>
    tpu.vector_store %arg7[%335, %c0_127], %334 {strides = array<i32>} : memref<16x256xf32, #tpu.memory_space<vmem>>, vector<2x256xf32>,
    %c8_i32 = arith.constant 8 : i32
    %c0_128 = arith.constant 0 : index
    %c0_129 = arith.constant 0 : index
    %337 = vector.load %arg7[%c0_128, %c0_129] : memref<16x256xf32, #tpu.memory_space<vmem>>, vector<16x256xf32>
    %c0_130 = arith.constant 0 : index
    %c0_131 = arith.constant 0 : index
    %338 = vector.load %arg0[%c0_130, %c0_131] : memref<16x256xf32, #tpu.memory_space<vmem>>, vector<16x256xf32>
    %339 = arith.addf %337, %338 : vector<16x256xf32>
    %c0_132 = arith.constant 0 : index
    %c0_133 = arith.constant 0 : index
    %340 = vector.load %arg5[%c0_132, %c0_133] : memref<16x256xf32, #tpu.memory_space<vmem>>, vector<16x256xf32>
    tpu.vector_store %arg5[%c0_132, %c0_133], %339 {strides = array<i32>} : memref<16x256xf32, #tpu.memory_space<vmem>>, vector<16x256xf32>,
    return
  }
}

</mosaic_0001>

<llo_original>
// kernel: temporal_encoder_forward.1
$region0: #{temporal_encoder_forward.1}
  #allocation0 [shape = 'u32[]', space=smem, size = 0x4, offset = 0x4, fixed_abs, tag = 'smem constant byte address 0x4 - core index']
  #allocation1 [shape = 'u32[144,128]{1,0:T(1,128)}', space=vmem, size = 0x12000, scoped, tag = 'internal scratch']
  #allocation2 [shape = 'f32[16,768]{1,0:T(8,128)}', space=vmem, size = 0xc000, scoped, tag = 'scratch operand']
  #allocation3 [shape = 'f32[16,256]{1,0:T(8,128)}', space=vmem, size = 0x4000, scoped, tag = 'scratch operand']
  %s0 = inlined_call_operand.vmem [shape: f32[16,256], index: 0, kind: input, shape index: {}]
  %s1 = inlined_call_operand.vmem [shape: bf16[256,768], index: 1, kind: input, shape index: {}]
  %s2 = inlined_call_operand.vmem [shape: bf16[256,768], index: 2, kind: input, shape index: {}]
  %s3 = inlined_call_operand.vmem [shape: f32[1,768], index: 3, kind: input, shape index: {}]
  %s4 = inlined_call_operand.vmem [shape: f32[1,768], index: 4, kind: input, shape index: {}]
  %s5 = inlined_call_operand.vmem [shape: f32[16,256], index: 5, kind: output, shape index: {}]
  %s6 = sld [smem:[#allocation0]]
  $region30: #{temporal_encoder_forward.1} parent=0
    _
  %s8 = ssub.s32 1, %s6
  %s9 = scalar_select 0, %s8, %s6
  // Predicated region
  $region2: #{temporal_encoder_forward.1} parent=0 // pred_check
    _
  $region3: #{temporal_encoder_forward.1} parent=0 // pred_check_branch
    %11 = sbr.rel (0) target = $region5
  $region4: #{temporal_encoder_forward.1} parent=0 // pred_region
    _
  $region5: #{temporal_encoder_forward.1} parent=0 // pred_fallthru
    _
  // Predicated region
  $region6: #{temporal_encoder_forward.1} parent=0 // pred_check
    _
  $region7: #{temporal_encoder_forward.1} parent=0 // pred_check_branch
    %13 = sbr.rel (0) target = $region9
  $region8: #{temporal_encoder_forward.1} parent=0 // pred_region
    _
  $region9: #{temporal_encoder_forward.1} parent=0 // pred_fallthru
    _
  // Predicated region
  $region10: #{temporal_encoder_forward.1} parent=0 // pred_check
    _
  $region11: #{temporal_encoder_forward.1} parent=0 // pred_check_branch
    %15 = sbr.rel (0) target = $region13
  $region12: #{temporal_encoder_forward.1} parent=0 // pred_region
    _
  $region13: #{temporal_encoder_forward.1} parent=0 // pred_fallthru
    _
  // Predicated region
  $region14: #{temporal_encoder_forward.1} parent=0 // pred_check
    _
  $region15: #{temporal_encoder_forward.1} parent=0 // pred_check_branch
    %17 = sbr.rel (0) target = $region17
  $region16: #{temporal_encoder_forward.1} parent=0 // pred_region
    _
  $region17: #{temporal_encoder_forward.1} parent=0 // pred_fallthru
    _
  // Predicated region
  $region18: #{temporal_encoder_forward.1} parent=0 // pred_check
    _
  $region19: #{temporal_encoder_forward.1} parent=0 // pred_check_branch
    %19 = sbr.rel (0) target = $region21
  $region20: #{temporal_encoder_forward.1} parent=0 // pred_region
    _
  $region21: #{temporal_encoder_forward.1} parent=0 // pred_fallthru
    _
  %v21 = vld [vmem:[%s0] sm:$0xff]
  %v22 = vld [vmem:[%s0 + $0x8] sm:$0xff]
  %v23 = vld [vmem:[%s0 + $0x10] sm:$0xff]
  %v24 = vld [vmem:[%s0 + $0x18] sm:$0xff]
  %v25 = vpack.c.bf16 %v23, %v21
  %v26 = vpack.c.bf16 %v24, %v22
  %v27 = vld [vmem:[%s1] sm:$0xff]
  %v28 = vld [vmem:[%s1 + $0x8] sm:$0xff]
  %v29 = vld [vmem:[%s1 + $0x10] sm:$0xff]
  %v30 = vld [vmem:[%s1 + $0x18] sm:$0xff]
  %v31 = vld [vmem:[%s1 + $0x20] sm:$0xff]
  %v32 = vld [vmem:[%s1 + $0x28] sm:$0xff]
  %v33 = vld [vmem:[%s1 + $0x30] sm:$0xff]
  %v34 = vld [vmem:[%s1 + $0x38] sm:$0xff]
  %v35 = vld [vmem:[%s1 + $0x40] sm:$0xff]
  %v36 = vld [vmem:[%s1 + $0x48] sm:$0xff]
  %v37 = vld [vmem:[%s1 + $0x50] sm:$0xff]
  %v38 = vld [vmem:[%s1 + $0x58] sm:$0xff]
  %v39 = vld [vmem:[%s1 + $0x60] sm:$0xff]
  %v40 = vld [vmem:[%s1 + $0x68] sm:$0xff]
  %v41 = vld [vmem:[%s1 + $0x70] sm:$0xff]
  %v42 = vld [vmem:[%s1 + $0x78] sm:$0xff]
  %v43 = vld [vmem:[%s1 + $0x80] sm:$0xff]
  %v44 = vld [vmem:[%s1 + $0x88] sm:$0xff]
  %v45 = vld [vmem:[%s1 + $0x90] sm:$0xff]
  %v46 = vld [vmem:[%s1 + $0x98] sm:$0xff]
  %v47 = vld [vmem:[%s1 + $0xa0] sm:$0xff]
  %v48 = vld [vmem:[%s1 + $0xa8] sm:$0xff]
  %v49 = vld [vmem:[%s1 + $0xb0] sm:$0xff]
  %v50 = vld [vmem:[%s1 + $0xb8] sm:$0xff]
  %v51 = vld [vmem:[%s1 + $0xc0] sm:$0xff]
  %v52 = vld [vmem:[%s1 + $0xc8] sm:$0xff]
  %v53 = vld [vmem:[%s1 + $0xd0] sm:$0xff]
  %v54 = vld [vmem:[%s1 + $0xd8] sm:$0xff]
  %v55 = vld [vmem:[%s1 + $0xe0] sm:$0xff]
  %v56 = vld [vmem:[%s1 + $0xe8] sm:$0xff]
  %v57 = vld [vmem:[%s1 + $0xf0] sm:$0xff]
  %v58 = vld [vmem:[%s1 + $0xf8] sm:$0xff]
  %v59 = vld [vmem:[%s1 + $0x100] sm:$0xff]
  %v60 = vld [vmem:[%s1 + $0x108] sm:$0xff]
  %v61 = vld [vmem:[%s1 + $0x110] sm:$0xff]
  %v62 = vld [vmem:[%s1 + $0x118] sm:$0xff]
  %v63 = vld [vmem:[%s1 + $0x120] sm:$0xff]
  %v64 = vld [vmem:[%s1 + $0x128] sm:$0xff]
  %v65 = vld [vmem:[%s1 + $0x130] sm:$0xff]
  %v66 = vld [vmem:[%s1 + $0x138] sm:$0xff]
  %v67 = vld [vmem:[%s1 + $0x140] sm:$0xff]
  %v68 = vld [vmem:[%s1 + $0x148] sm:$0xff]
  %v69 = vld [vmem:[%s1 + $0x150] sm:$0xff]
  %v70 = vld [vmem:[%s1 + $0x158] sm:$0xff]
  %v71 = vld [vmem:[%s1 + $0x160] sm:$0xff]
  %v72 = vld [vmem:[%s1 + $0x168] sm:$0xff]
  %v73 = vld [vmem:[%s1 + $0x170] sm:$0xff]
  %v74 = vld [vmem:[%s1 + $0x178] sm:$0xff]
  %v75 = vld [vmem:[%s1 + $0x180] sm:$0xff]
  %v76 = vld [vmem:[%s1 + $0x188] sm:$0xff]
  %v77 = vld [vmem:[%s1 + $0x190] sm:$0xff]
  %v78 = vld [vmem:[%s1 + $0x198] sm:$0xff]
  %v79 = vld [vmem:[%s1 + $0x1a0] sm:$0xff]
  %v80 = vld [vmem:[%s1 + $0x1a8] sm:$0xff]
  %v81 = vld [vmem:[%s1 + $0x1b0] sm:$0xff]
  %v82 = vld [vmem:[%s1 + $0x1b8] sm:$0xff]
  %v83 = vld [vmem:[%s1 + $0x1c0] sm:$0xff]
  %v84 = vld [vmem:[%s1 + $0x1c8] sm:$0xff]
  %v85 = vld [vmem:[%s1 + $0x1d0] sm:$0xff]
  %v86 = vld [vmem:[%s1 + $0x1d8] sm:$0xff]
  %v87 = vld [vmem:[%s1 + $0x1e0] sm:$0xff]
  %v88 = vld [vmem:[%s1 + $0x1e8] sm:$0xff]
  %v89 = vld [vmem:[%s1 + $0x1f0] sm:$0xff]
  %v90 = vld [vmem:[%s1 + $0x1f8] sm:$0xff]
  %v91 = vld [vmem:[%s1 + $0x200] sm:$0xff]
  %v92 = vld [vmem:[%s1 + $0x208] sm:$0xff]
  %v93 = vld [vmem:[%s1 + $0x210] sm:$0xff]
  %v94 = vld [vmem:[%s1 + $0x218] sm:$0xff]
  %v95 = vld [vmem:[%s1 + $0x220] sm:$0xff]
  %v96 = vld [vmem:[%s1 + $0x228] sm:$0xff]
  %v97 = vld [vmem:[%s1 + $0x230] sm:$0xff]
  %v98 = vld [vmem:[%s1 + $0x238] sm:$0xff]
  %v99 = vld [vmem:[%s1 + $0x240] sm:$0xff]
  %v100 = vld [vmem:[%s1 + $0x248] sm:$0xff]
  %v101 = vld [vmem:[%s1 + $0x250] sm:$0xff]
  %v102 = vld [vmem:[%s1 + $0x258] sm:$0xff]
  %v103 = vld [vmem:[%s1 + $0x260] sm:$0xff]
  %v104 = vld [vmem:[%s1 + $0x268] sm:$0xff]
  %v105 = vld [vmem:[%s1 + $0x270] sm:$0xff]
  %v106 = vld [vmem:[%s1 + $0x278] sm:$0xff]
  %v107 = vld [vmem:[%s1 + $0x280] sm:$0xff]
  %v108 = vld [vmem:[%s1 + $0x288] sm:$0xff]
  %v109 = vld [vmem:[%s1 + $0x290] sm:$0xff]
  %v110 = vld [vmem:[%s1 + $0x298] sm:$0xff]
  %v111 = vld [vmem:[%s1 + $0x2a0] sm:$0xff]
  %v112 = vld [vmem:[%s1 + $0x2a8] sm:$0xff]
  %v113 = vld [vmem:[%s1 + $0x2b0] sm:$0xff]
  %v114 = vld [vmem:[%s1 + $0x2b8] sm:$0xff]
  %v115 = vld [vmem:[%s1 + $0x2c0] sm:$0xff]
  %v116 = vld [vmem:[%s1 + $0x2c8] sm:$0xff]
  %v117 = vld [vmem:[%s1 + $0x2d0] sm:$0xff]
  %v118 = vld [vmem:[%s1 + $0x2d8] sm:$0xff]
  %v119 = vld [vmem:[%s1 + $0x2e0] sm:$0xff]
  %v120 = vld [vmem:[%s1 + $0x2e8] sm:$0xff]
  %v121 = vld [vmem:[%s1 + $0x2f0] sm:$0xff]
  %v122 = vld [vmem:[%s1 + $0x2f8] sm:$0xff]
  %v123 = vld [vmem:[%s3] sm:$0x3f]
  %v125 = vlaneseq
  %v126 = vshrl.u32 %v125, 7
  %v127 = vsub.s32 0, %v126
  %v128 = vrot.slane %v123, %v127
  %v129 = vlaneseq
  %v130 = vshrl.u32 %v129, 7
  %v131 = vsub.s32 1, %v130
  %v132 = vrot.slane %v123, %v131
  %v133 = vlaneseq
  %v134 = vshrl.u32 %v133, 7
  %v135 = vsub.s32 2, %v134
  %v136 = vrot.slane %v123, %v135
  %v137 = vlaneseq
  %v138 = vshrl.u32 %v137, 7
  %v139 = vsub.s32 3, %v138
  %v140 = vrot.slane %v123, %v139
  %v141 = vlaneseq
  %v142 = vshrl.u32 %v141, 7
  %v143 = vsub.s32 4, %v142
  %v144 = vrot.slane %v123, %v143
  %v145 = vlaneseq
  %v146 = vshrl.u32 %v145, 7
  %v147 = vsub.s32 5, %v146
  %v148 = vrot.slane %v123, %v147
  %v251 = vunpack.c.l.b16 %v27
  %v252 = vunpack.c.h.b16 %v27
  %v253 = vunpack.c.l.b16 %v28
  %v254 = vunpack.c.h.b16 %v28
  %v255 = vunpack.c.l.b16 %v29
  %v256 = vunpack.c.h.b16 %v29
  %v257 = vunpack.c.l.b16 %v30
  %v258 = vunpack.c.h.b16 %v30
  %v259 = vunpack.c.l.b16 %v31
  %v260 = vunpack.c.h.b16 %v31
  %v261 = vunpack.c.l.b16 %v32
  %v262 = vunpack.c.h.b16 %v32
  %v263 = vunpack.c.l.b16 %v33
  %v264 = vunpack.c.h.b16 %v33
  %v265 = vunpack.c.l.b16 %v34
  %v266 = vunpack.c.h.b16 %v34
  %v267 = vunpack.c.l.b16 %v35
  %v268 = vunpack.c.h.b16 %v35
  %v269 = vunpack.c.l.b16 %v36
  %v270 = vunpack.c.h.b16 %v36
  %v271 = vunpack.c.l.b16 %v37
  %v272 = vunpack.c.h.b16 %v37
  %v273 = vunpack.c.l.b16 %v38
  %v274 = vunpack.c.h.b16 %v38
  %v275 = vunpack.c.l.b16 %v39
  %v276 = vunpack.c.h.b16 %v39
  %v277 = vunpack.c.l.b16 %v40
  %v278 = vunpack.c.h.b16 %v40
  %v279 = vunpack.c.l.b16 %v41
  %v280 = vunpack.c.h.b16 %v41
  %v281 = vunpack.c.l.b16 %v42
  %v282 = vunpack.c.h.b16 %v42
  %v283 = vunpack.c.l.b16 %v43
  %v284 = vunpack.c.h.b16 %v43
  %v285 = vunpack.c.l.b16 %v44
  %v286 = vunpack.c.h.b16 %v44
  %v287 = vunpack.c.l.b16 %v45
  %v288 = vunpack.c.h.b16 %v45
  %v289 = vunpack.c.l.b16 %v46
  %v290 = vunpack.c.h.b16 %v46
  %v291 = vunpack.c.l.b16 %v47
  %v292 = vunpack.c.h.b16 %v47
  %v293 = vunpack.c.l.b16 %v48
  %v294 = vunpack.c.h.b16 %v48
  %v295 = vunpack.c.l.b16 %v49
  %v296 = vunpack.c.h.b16 %v49
  %v297 = vunpack.c.l.b16 %v50
  %v298 = vunpack.c.h.b16 %v50
  %v299 = vunpack.c.l.b16 %v51
  %v300 = vunpack.c.h.b16 %v51
  %v301 = vunpack.c.l.b16 %v52
  %v302 = vunpack.c.h.b16 %v52
  %v303 = vunpack.c.l.b16 %v53
  %v304 = vunpack.c.h.b16 %v53
  %v305 = vunpack.c.l.b16 %v54
  %v306 = vunpack.c.h.b16 %v54
  %v307 = vunpack.c.l.b16 %v55
  %v308 = vunpack.c.h.b16 %v55
  %v309 = vunpack.c.l.b16 %v56
  %v310 = vunpack.c.h.b16 %v56
  %v311 = vunpack.c.l.b16 %v57
  %v312 = vunpack.c.h.b16 %v57
  %v313 = vunpack.c.l.b16 %v58
  %v314 = vunpack.c.h.b16 %v58
  %v315 = vunpack.c.l.b16 %v59
  %v316 = vunpack.c.h.b16 %v59
  %v317 = vunpack.c.l.b16 %v60
  %v318 = vunpack.c.h.b16 %v60
  %v319 = vunpack.c.l.b16 %v61
  %v320 = vunpack.c.h.b16 %v61
  %v321 = vunpack.c.l.b16 %v62
  %v322 = vunpack.c.h.b16 %v62
  %v323 = vunpack.c.l.b16 %v63
  %v324 = vunpack.c.h.b16 %v63
  %v325 = vunpack.c.l.b16 %v64
  %v326 = vunpack.c.h.b16 %v64
  %v327 = vunpack.c.l.b16 %v65
  %v328 = vunpack.c.h.b16 %v65
  %v329 = vunpack.c.l.b16 %v66
  %v330 = vunpack.c.h.b16 %v66
  %v331 = vunpack.c.l.b16 %v67
  %v332 = vunpack.c.h.b16 %v67
  %v333 = vunpack.c.l.b16 %v68
  %v334 = vunpack.c.h.b16 %v68
  %v335 = vunpack.c.l.b16 %v69
  %v336 = vunpack.c.h.b16 %v69
  %v337 = vunpack.c.l.b16 %v70
  %v338 = vunpack.c.h.b16 %v70
  %v339 = vunpack.c.l.b16 %v71
  %v340 = vunpack.c.h.b16 %v71
  %v341 = vunpack.c.l.b16 %v72
  %v342 = vunpack.c.h.b16 %v72
  %v343 = vunpack.c.l.b16 %v73
  %v344 = vunpack.c.h.b16 %v73
  %v345 = vunpack.c.l.b16 %v74
  %v346 = vunpack.c.h.b16 %v74
  %v347 = vunpack.c.l.b16 %v75
  %v348 = vunpack.c.h.b16 %v75
  %v349 = vunpack.c.l.b16 %v76
  %v350 = vunpack.c.h.b16 %v76
  %v351 = vunpack.c.l.b16 %v77
  %v352 = vunpack.c.h.b16 %v77
  %v353 = vunpack.c.l.b16 %v78
  %v354 = vunpack.c.h.b16 %v78
  %v355 = vunpack.c.l.b16 %v79
  %v356 = vunpack.c.h.b16 %v79
  %v357 = vunpack.c.l.b16 %v80
  %v358 = vunpack.c.h.b16 %v80
  %v359 = vunpack.c.l.b16 %v81
  %v360 = vunpack.c.h.b16 %v81
  %v361 = vunpack.c.l.b16 %v82
  %v362 = vunpack.c.h.b16 %v82
  %v363 = vunpack.c.l.b16 %v83
  %v364 = vunpack.c.h.b16 %v83
  %v365 = vunpack.c.l.b16 %v84
  %v366 = vunpack.c.h.b16 %v84
  %v367 = vunpack.c.l.b16 %v85
  %v368 = vunpack.c.h.b16 %v85
  %v369 = vunpack.c.l.b16 %v86
  %v370 = vunpack.c.h.b16 %v86
  %v371 = vunpack.c.l.b16 %v87
  %v372 = vunpack.c.h.b16 %v87
  %v373 = vunpack.c.l.b16 %v88
  %v374 = vunpack.c.h.b16 %v88
  %v375 = vunpack.c.l.b16 %v89
  %v376 = vunpack.c.h.b16 %v89
  %v377 = vunpack.c.l.b16 %v90
  %v378 = vunpack.c.h.b16 %v90
  %v379 = vunpack.c.l.b16 %v91
  %v380 = vunpack.c.h.b16 %v91
  %v381 = vunpack.c.l.b16 %v92
  %v382 = vunpack.c.h.b16 %v92
  %v383 = vunpack.c.l.b16 %v93
  %v384 = vunpack.c.h.b16 %v93
  %v385 = vunpack.c.l.b16 %v94
  %v386 = vunpack.c.h.b16 %v94
  %v387 = vunpack.c.l.b16 %v95
  %v388 = vunpack.c.h.b16 %v95
  %v389 = vunpack.c.l.b16 %v96
  %v390 = vunpack.c.h.b16 %v96
  %v391 = vunpack.c.l.b16 %v97
  %v392 = vunpack.c.h.b16 %v97
  %v393 = vunpack.c.l.b16 %v98
  %v394 = vunpack.c.h.b16 %v98
  %v395 = vunpack.c.l.b16 %v99
  %v396 = vunpack.c.h.b16 %v99
  %v397 = vunpack.c.l.b16 %v100
  %v398 = vunpack.c.h.b16 %v100
  %v399 = vunpack.c.l.b16 %v101
  %v400 = vunpack.c.h.b16 %v101
  %v401 = vunpack.c.l.b16 %v102
  %v402 = vunpack.c.h.b16 %v102
  %v403 = vunpack.c.l.b16 %v103
  %v404 = vunpack.c.h.b16 %v103
  %v405 = vunpack.c.l.b16 %v104
  %v406 = vunpack.c.h.b16 %v104
  %v407 = vunpack.c.l.b16 %v105
  %v408 = vunpack.c.h.b16 %v105
  %v409 = vunpack.c.l.b16 %v106
  %v410 = vunpack.c.h.b16 %v106
  %v411 = vunpack.c.l.b16 %v107
  %v412 = vunpack.c.h.b16 %v107
  %v413 = vunpack.c.l.b16 %v108
  %v414 = vunpack.c.h.b16 %v108
  %v415 = vunpack.c.l.b16 %v109
  %v416 = vunpack.c.h.b16 %v109
  %v417 = vunpack.c.l.b16 %v110
  %v418 = vunpack.c.h.b16 %v110
  %v419 = vunpack.c.l.b16 %v111
  %v420 = vunpack.c.h.b16 %v111
  %v421 = vunpack.c.l.b16 %v112
  %v422 = vunpack.c.h.b16 %v112
  %v423 = vunpack.c.l.b16 %v113
  %v424 = vunpack.c.h.b16 %v113
  %v425 = vunpack.c.l.b16 %v114
  %v426 = vunpack.c.h.b16 %v114
  %v427 = vunpack.c.l.b16 %v115
  %v428 = vunpack.c.h.b16 %v115
  %v429 = vunpack.c.l.b16 %v116
  %v430 = vunpack.c.h.b16 %v116
  %v431 = vunpack.c.l.b16 %v117
  %v432 = vunpack.c.h.b16 %v117
  %v433 = vunpack.c.l.b16 %v118
  %v434 = vunpack.c.h.b16 %v118
  %v435 = vunpack.c.l.b16 %v119
  %v436 = vunpack.c.h.b16 %v119
  %v437 = vunpack.c.l.b16 %v120
  %v438 = vunpack.c.h.b16 %v120
  %v439 = vunpack.c.l.b16 %v121
  %v440 = vunpack.c.h.b16 %v121
  %v441 = vunpack.c.l.b16 %v122
  %v442 = vunpack.c.h.b16 %v122
  %v443 = vpack.c.b16 %v257, %v251
  %v444 = vpack.c.b16 %v258, %v252
  %v445 = vpack.c.b16 %v259, %v253
  %v446 = vpack.c.b16 %v260, %v254
  %v447 = vpack.c.b16 %v261, %v255
  %v448 = vpack.c.b16 %v262, %v256
  %v449 = vpack.c.b16 %v269, %v263
  %v450 = vpack.c.b16 %v270, %v264
  %v451 = vpack.c.b16 %v271, %v265
  %v452 = vpack.c.b16 %v272, %v266
  %v453 = vpack.c.b16 %v273, %v267
  %v454 = vpack.c.b16 %v274, %v268
  %v455 = vpack.c.b16 %v281, %v275
  %v456 = vpack.c.b16 %v282, %v276
  %v457 = vpack.c.b16 %v283, %v277
  %v458 = vpack.c.b16 %v284, %v278
  %v459 = vpack.c.b16 %v285, %v279
  %v460 = vpack.c.b16 %v286, %v280
  %v461 = vpack.c.b16 %v293, %v287
  %v462 = vpack.c.b16 %v294, %v288
  %v463 = vpack.c.b16 %v295, %v289
  %v464 = vpack.c.b16 %v296, %v290
  %v465 = vpack.c.b16 %v297, %v291
  %v466 = vpack.c.b16 %v298, %v292
  %v467 = vpack.c.b16 %v305, %v299
  %v468 = vpack.c.b16 %v306, %v300
  %v469 = vpack.c.b16 %v307, %v301
  %v470 = vpack.c.b16 %v308, %v302
  %v471 = vpack.c.b16 %v309, %v303
  %v472 = vpack.c.b16 %v310, %v304
  %v473 = vpack.c.b16 %v317, %v311
  %v474 = vpack.c.b16 %v318, %v312
  %v475 = vpack.c.b16 %v319, %v313
  %v476 = vpack.c.b16 %v320, %v314
  %v477 = vpack.c.b16 %v321, %v315
  %v478 = vpack.c.b16 %v322, %v316
  %v479 = vpack.c.b16 %v329, %v323
  %v480 = vpack.c.b16 %v330, %v324
  %v481 = vpack.c.b16 %v331, %v325
  %v482 = vpack.c.b16 %v332, %v326
  %v483 = vpack.c.b16 %v333, %v327
  %v484 = vpack.c.b16 %v334, %v328
  %v485 = vpack.c.b16 %v341, %v335
  %v486 = vpack.c.b16 %v342, %v336
  %v487 = vpack.c.b16 %v343, %v337
  %v488 = vpack.c.b16 %v344, %v338
  %v489 = vpack.c.b16 %v345, %v339
  %v490 = vpack.c.b16 %v346, %v340
  %v491 = vpack.c.b16 %v353, %v347
  %v492 = vpack.c.b16 %v354, %v348
  %v493 = vpack.c.b16 %v355, %v349
  %v494 = vpack.c.b16 %v356, %v350
  %v495 = vpack.c.b16 %v357, %v351
  %v496 = vpack.c.b16 %v358, %v352
  %v497 = vpack.c.b16 %v365, %v359
  %v498 = vpack.c.b16 %v366, %v360
  %v499 = vpack.c.b16 %v367, %v361
  %v500 = vpack.c.b16 %v368, %v362
  %v501 = vpack.c.b16 %v369, %v363
  %v502 = vpack.c.b16 %v370, %v364
  %v503 = vpack.c.b16 %v377, %v371
  %v504 = vpack.c.b16 %v378, %v372
  %v505 = vpack.c.b16 %v379, %v373
  %v506 = vpack.c.b16 %v380, %v374
  %v507 = vpack.c.b16 %v381, %v375
  %v508 = vpack.c.b16 %v382, %v376
  %v509 = vpack.c.b16 %v389, %v383
  %v510 = vpack.c.b16 %v390, %v384
  %v511 = vpack.c.b16 %v391, %v385
  %v512 = vpack.c.b16 %v392, %v386
  %v513 = vpack.c.b16 %v393, %v387
  %v514 = vpack.c.b16 %v394, %v388
  %v515 = vpack.c.b16 %v401, %v395
  %v516 = vpack.c.b16 %v402, %v396
  %v517 = vpack.c.b16 %v403, %v397
  %v518 = vpack.c.b16 %v404, %v398
  %v519 = vpack.c.b16 %v405, %v399
  %v520 = vpack.c.b16 %v406, %v400
  %v521 = vpack.c.b16 %v413, %v407
  %v522 = vpack.c.b16 %v414, %v408
  %v523 = vpack.c.b16 %v415, %v409
  %v524 = vpack.c.b16 %v416, %v410
  %v525 = vpack.c.b16 %v417, %v411
  %v526 = vpack.c.b16 %v418, %v412
  %v527 = vpack.c.b16 %v425, %v419
  %v528 = vpack.c.b16 %v426, %v420
  %v529 = vpack.c.b16 %v427, %v421
  %v530 = vpack.c.b16 %v428, %v422
  %v531 = vpack.c.b16 %v429, %v423
  %v532 = vpack.c.b16 %v430, %v424
  %v533 = vpack.c.b16 %v437, %v431
  %v534 = vpack.c.b16 %v438, %v432
  %v535 = vpack.c.b16 %v439, %v433
  %v536 = vpack.c.b16 %v440, %v434
  %v537 = vpack.c.b16 %v441, %v435
  %v538 = vpack.c.b16 %v442, %v436
  %635 = vmatprep.subr.bf16.mxu0 %v444
  %636 = vmatpush1.bf16.msra.mxu0 %v443
  %637 = vmatprep.subr.bf16.mxu0 %v450
  %638 = vmatpush1.bf16.msra.mxu0 %v449
  %639 = vmatprep.subr.bf16.mxu0 %v456
  %640 = vmatpush1.bf16.msra.mxu0 %v455
  %641 = vmatprep.subr.bf16.mxu0 %v462
  %642 = vmatpush1.bf16.msra.mxu0 %v461
  %643 = vmatprep.subr.bf16.mxu0 %v468
  %644 = vmatpush1.bf16.msra.mxu0 %v467
  %645 = vmatprep.subr.bf16.mxu0 %v474
  %646 = vmatpush1.bf16.msra.mxu0 %v473
  %647 = vmatprep.subr.bf16.mxu0 %v480
  %648 = vmatpush1.bf16.msra.mxu0 %v479
  %649 = vmatprep.subr.bf16.mxu0 %v486
  %650 = vmatpush1.bf16.msra.mxu0 %v485
  %651 = vmatprep.subr.bf16.mxu0 %v492
  %652 = vmatpush1.bf16.msra.mxu0 %v491
  %653 = vmatprep.subr.bf16.mxu0 %v498
  %654 = vmatpush1.bf16.msra.mxu0 %v497
  %655 = vmatprep.subr.bf16.mxu0 %v504
  %656 = vmatpush1.bf16.msra.mxu0 %v503
  %657 = vmatprep.subr.bf16.mxu0 %v510
  %658 = vmatpush1.bf16.msra.mxu0 %v509
  %659 = vmatprep.subr.bf16.mxu0 %v516
  %660 = vmatpush1.bf16.msra.mxu0 %v515
  %661 = vmatprep.subr.bf16.mxu0 %v522
  %662 = vmatpush1.bf16.msra.mxu0 %v521
  %663 = vmatprep.subr.bf16.mxu0 %v528
  %664 = vmatpush1.bf16.msra.mxu0 %v527
  %665 = vmatprep.subr.bf16.mxu0 %v534
  %666 = vmatpush1.bf16.msra.mxu0 %v533
  %667 = vmatprep.mubr.bf16.mxu0 %v26
  %668 = vmatmul.mubr.bf16.gmra.mrb[0].mxu0 %v25
  %v669 = vpop.f32.mrb[0].mxu0
  %v670 = vadd.f32 %v128, %v669
  %v671 = vpop.f32.mrb[0].mxu0
  %v672 = vadd.f32 %v132, %v671
  %v673 = vpop.f32.mrb[0].mxu0
  %v674 = vadd.f32 %v128, %v673
  %v675 = vpop.f32.mrb[0].mxu0
  %v676 = vadd.f32 %v132, %v675
  %677 = vdwg.mxu0
  %678 = vmatprep.subr.bf16.mxu0 %v446
  %679 = vmatpush1.bf16.msra.mxu0 %v445
  %680 = vmatprep.subr.bf16.mxu0 %v452
  %681 = vmatpush1.bf16.msra.mxu0 %v451
  %682 = vmatprep.subr.bf16.mxu0 %v458
  %683 = vmatpush1.bf16.msra.mxu0 %v457
  %684 = vmatprep.subr.bf16.mxu0 %v464
  %685 = vmatpush1.bf16.msra.mxu0 %v463
  %686 = vmatprep.subr.bf16.mxu0 %v470
  %687 = vmatpush1.bf16.msra.mxu0 %v469
  %688 = vmatprep.subr.bf16.mxu0 %v476
  %689 = vmatpush1.bf16.msra.mxu0 %v475
  %690 = vmatprep.subr.bf16.mxu0 %v482
  %691 = vmatpush1.bf16.msra.mxu0 %v481
  %692 = vmatprep.subr.bf16.mxu0 %v488
  %693 = vmatpush1.bf16.msra.mxu0 %v487
  %694 = vmatprep.subr.bf16.mxu0 %v494
  %695 = vmatpush1.bf16.msra.mxu0 %v493
  %696 = vmatprep.subr.bf16.mxu0 %v500
  %697 = vmatpush1.bf16.msra.mxu0 %v499
  %698 = vmatprep.subr.bf16.mxu0 %v506
  %699 = vmatpush1.bf16.msra.mxu0 %v505
  %700 = vmatprep.subr.bf16.mxu0 %v512
  %701 = vmatpush1.bf16.msra.mxu0 %v511
  %702 = vmatprep.subr.bf16.mxu0 %v518
  %703 = vmatpush1.bf16.msra.mxu0 %v517
  %704 = vmatprep.subr.bf16.mxu0 %v524
  %705 = vmatpush1.bf16.msra.mxu0 %v523
  %706 = vmatprep.subr.bf16.mxu0 %v530
  %707 = vmatpush1.bf16.msra.mxu0 %v529
  %708 = vmatprep.subr.bf16.mxu0 %v536
  %709 = vmatpush1.bf16.msra.mxu0 %v535
  %710 = vmatprep.mubr.bf16.mxu0 %v26
  %711 = vmatmul.mubr.bf16.gmra.mrb[0].mxu0 %v25
  %v712 = vpop.f32.mrb[0].mxu0
  %v713 = vadd.f32 %v136, %v712
  %v714 = vpop.f32.mrb[0].mxu0
  %v715 = vadd.f32 %v140, %v714
  %v716 = vpop.f32.mrb[0].mxu0
  %v717 = vadd.f32 %v136, %v716
  %v718 = vpop.f32.mrb[0].mxu0
  %v719 = vadd.f32 %v140, %v718
  %720 = vdwg.mxu0
  %721 = vmatprep.subr.bf16.mxu0 %v448
  %722 = vmatpush1.bf16.msra.mxu0 %v447
  %723 = vmatprep.subr.bf16.mxu0 %v454
  %724 = vmatpush1.bf16.msra.mxu0 %v453
  %725 = vmatprep.subr.bf16.mxu0 %v460
  %726 = vmatpush1.bf16.msra.mxu0 %v459
  %727 = vmatprep.subr.bf16.mxu0 %v466
  %728 = vmatpush1.bf16.msra.mxu0 %v465
  %729 = vmatprep.subr.bf16.mxu0 %v472
  %730 = vmatpush1.bf16.msra.mxu0 %v471
  %731 = vmatprep.subr.bf16.mxu0 %v478
  %732 = vmatpush1.bf16.msra.mxu0 %v477
  %733 = vmatprep.subr.bf16.mxu0 %v484
  %734 = vmatpush1.bf16.msra.mxu0 %v483
  %735 = vmatprep.subr.bf16.mxu0 %v490
  %736 = vmatpush1.bf16.msra.mxu0 %v489
  %737 = vmatprep.subr.bf16.mxu0 %v496
  %738 = vmatpush1.bf16.msra.mxu0 %v495
  %739 = vmatprep.subr.bf16.mxu0 %v502
  %740 = vmatpush1.bf16.msra.mxu0 %v501
  %741 = vmatprep.subr.bf16.mxu0 %v508
  %742 = vmatpush1.bf16.msra.mxu0 %v507
  %743 = vmatprep.subr.bf16.mxu0 %v514
  %744 = vmatpush1.bf16.msra.mxu0 %v513
  %745 = vmatprep.subr.bf16.mxu0 %v520
  %746 = vmatpush1.bf16.msra.mxu0 %v519
  %747 = vmatprep.subr.bf16.mxu0 %v526
  %748 = vmatpush1.bf16.msra.mxu0 %v525
  %749 = vmatprep.subr.bf16.mxu0 %v532
  %750 = vmatpush1.bf16.msra.mxu0 %v531
  %751 = vmatprep.subr.bf16.mxu0 %v538
  %752 = vmatpush1.bf16.msra.mxu0 %v537
  %753 = vmatprep.mubr.bf16.mxu0 %v26
  %754 = vmatmul.mubr.bf16.gmra.mrb[0].mxu0 %v25
  %v755 = vpop.f32.mrb[0].mxu0
  %v756 = vadd.f32 %v144, %v755
  %v757 = vpop.f32.mrb[0].mxu0
  %v758 = vadd.f32 %v148, %v757
  %v759 = vpop.f32.mrb[0].mxu0
  %v760 = vadd.f32 %v144, %v759
  %v761 = vpop.f32.mrb[0].mxu0
  %v762 = vadd.f32 %v148, %v761
  %763 = vdwg.mxu0
  %764 = vst [vmem:[#allocation2] sm:$0xff] %v670
  %765 = vst [vmem:[#allocation2 + $0x8] sm:$0xff] %v672
  %766 = vst [vmem:[#allocation2 + $0x10] sm:$0xff] %v713
  %767 = vst [vmem:[#allocation2 + $0x18] sm:$0xff] %v715
  %768 = vst [vmem:[#allocation2 + $0x20] sm:$0xff] %v756
  %769 = vst [vmem:[#allocation2 + $0x28] sm:$0xff] %v758
  %770 = vst [vmem:[#allocation2 + $0x30] sm:$0xff] %v674
  %771 = vst [vmem:[#allocation2 + $0x38] sm:$0xff] %v676
  %772 = vst [vmem:[#allocation2 + $0x40] sm:$0xff] %v717
  %773 = vst [vmem:[#allocation2 + $0x48] sm:$0xff] %v719
  %774 = vst [vmem:[#allocation2 + $0x50] sm:$0xff] %v760
  %775 = vst [vmem:[#allocation2 + $0x58] sm:$0xff] %v762
  %v776 = vld [vmem:[#allocation2] sm:$0x3]
  %v777 = vld [vmem:[#allocation2 + $0x8] sm:$0x3]
  %v778 = vld [vmem:[#allocation2 + $0x10] sm:$0x3]
  %v779 = vld [vmem:[#allocation2 + $0x18] sm:$0x3]
  %v780 = vld [vmem:[#allocation2 + $0x20] sm:$0x3]
  %v781 = vld [vmem:[#allocation2 + $0x28] sm:$0x3]
  %v782 = vld [vmem:[%s2] sm:$0xff]
  %v783 = vld [vmem:[%s2 + $0x8] sm:$0xff]
  %v784 = vld [vmem:[%s2 + $0x10] sm:$0xff]
  %v785 = vld [vmem:[%s2 + $0x18] sm:$0xff]
  %v786 = vld [vmem:[%s2 + $0x20] sm:$0xff]
  %v787 = vld [vmem:[%s2 + $0x28] sm:$0xff]
  %v788 = vld [vmem:[%s2 + $0x30] sm:$0xff]
  %v789 = vld [vmem:[%s2 + $0x38] sm:$0xff]
  %v790 = vld [vmem:[%s2 + $0x40] sm:$0xff]
  %v791 = vld [vmem:[%s2 + $0x48] sm:$0xff]
  %v792 = vld [vmem:[%s2 + $0x50] sm:$0xff]
  %v793 = vld [vmem:[%s2 + $0x58] sm:$0xff]
  %v794 = vld [vmem:[%s2 + $0x60] sm:$0xff]
  %v795 = vld [vmem:[%s2 + $0x68] sm:$0xff]
  %v796 = vld [vmem:[%s2 + $0x70] sm:$0xff]
  %v797 = vld [vmem:[%s2 + $0x78] sm:$0xff]
  %v798 = vld [vmem:[%s2 + $0x80] sm:$0xff]
  %v799 = vld [vmem:[%s2 + $0x88] sm:$0xff]
  %v800 = vld [vmem:[%s2 + $0x90] sm:$0xff]
  %v801 = vld [vmem:[%s2 + $0x98] sm:$0xff]
  %v802 = vld [vmem:[%s2 + $0xa0] sm:$0xff]
  %v803 = vld [vmem:[%s2 + $0xa8] sm:$0xff]
  %v804 = vld [vmem:[%s2 + $0xb0] sm:$0xff]
  %v805 = vld [vmem:[%s2 + $0xb8] sm:$0xff]
  %v806 = vld [vmem:[%s2 + $0xc0] sm:$0xff]
  %v807 = vld [vmem:[%s2 + $0xc8] sm:$0xff]
  %v808 = vld [vmem:[%s2 + $0xd0] sm:$0xff]
  %v809 = vld [vmem:[%s2 + $0xd8] sm:$0xff]
  %v810 = vld [vmem:[%s2 + $0xe0] sm:$0xff]
  %v811 = vld [vmem:[%s2 + $0xe8] sm:$0xff]
  %v812 = vld [vmem:[%s2 + $0xf0] sm:$0xff]
  %v813 = vld [vmem:[%s2 + $0xf8] sm:$0xff]
  %v814 = vld [vmem:[%s2 + $0x100] sm:$0xff]
  %v815 = vld [vmem:[%s2 + $0x108] sm:$0xff]
  %v816 = vld [vmem:[%s2 + $0x110] sm:$0xff]
  %v817 = vld [vmem:[%s2 + $0x118] sm:$0xff]
  %v818 = vld [vmem:[%s2 + $0x120] sm:$0xff]
  %v819 = vld [vmem:[%s2 + $0x128] sm:$0xff]
  %v820 = vld [vmem:[%s2 + $0x130] sm:$0xff]
  %v821 = vld [vmem:[%s2 + $0x138] sm:$0xff]
  %v822 = vld [vmem:[%s2 + $0x140] sm:$0xff]
  %v823 = vld [vmem:[%s2 + $0x148] sm:$0xff]
  %v824 = vld [vmem:[%s2 + $0x150] sm:$0xff]
  %v825 = vld [vmem:[%s2 + $0x158] sm:$0xff]
  %v826 = vld [vmem:[%s2 + $0x160] sm:$0xff]
  %v827 = vld [vmem:[%s2 + $0x168] sm:$0xff]
  %v828 = vld [vmem:[%s2 + $0x170] sm:$0xff]
  %v829 = vld [vmem:[%s2 + $0x178] sm:$0xff]
  %v830 = vld [vmem:[%s2 + $0x180] sm:$0xff]
  %v831 = vld [vmem:[%s2 + $0x188] sm:$0xff]
  %v832 = vld [vmem:[%s2 + $0x190] sm:$0xff]
  %v833 = vld [vmem:[%s2 + $0x198] sm:$0xff]
  %v834 = vld [vmem:[%s2 + $0x1a0] sm:$0xff]
  %v835 = vld [vmem:[%s2 + $0x1a8] sm:$0xff]
  %v836 = vld [vmem:[%s2 + $0x1b0] sm:$0xff]
  %v837 = vld [vmem:[%s2 + $0x1b8] sm:$0xff]
  %v838 = vld [vmem:[%s2 + $0x1c0] sm:$0xff]
  %v839 = vld [vmem:[%s2 + $0x1c8] sm:$0xff]
  %v840 = vld [vmem:[%s2 + $0x1d0] sm:$0xff]
  %v841 = vld [vmem:[%s2 + $0x1d8] sm:$0xff]
  %v842 = vld [vmem:[%s2 + $0x1e0] sm:$0xff]
  %v843 = vld [vmem:[%s2 + $0x1e8] sm:$0xff]
  %v844 = vld [vmem:[%s2 + $0x1f0] sm:$0xff]
  %v845 = vld [vmem:[%s2 + $0x1f8] sm:$0xff]
  %v846 = vld [vmem:[%s2 + $0x200] sm:$0xff]
  %v847 = vld [vmem:[%s2 + $0x208] sm:$0xff]
  %v848 = vld [vmem:[%s2 + $0x210] sm:$0xff]
  %v849 = vld [vmem:[%s2 + $0x218] sm:$0xff]
  %v850 = vld [vmem:[%s2 + $0x220] sm:$0xff]
  %v851 = vld [vmem:[%s2 + $0x228] sm:$0xff]
  %v852 = vld [vmem:[%s2 + $0x230] sm:$0xff]
  %v853 = vld [vmem:[%s2 + $0x238] sm:$0xff]
  %v854 = vld [vmem:[%s2 + $0x240] sm:$0xff]
  %v855 = vld [vmem:[%s2 + $0x248] sm:$0xff]
  %v856 = vld [vmem:[%s2 + $0x250] sm:$0xff]
  %v857 = vld [vmem:[%s2 + $0x258] sm:$0xff]
  %v858 = vld [vmem:[%s2 + $0x260] sm:$0xff]
  %v859 = vld [vmem:[%s2 + $0x268] sm:$0xff]
  %v860 = vld [vmem:[%s2 + $0x270] sm:$0xff]
  %v861 = vld [vmem:[%s2 + $0x278] sm:$0xff]
  %v862 = vld [vmem:[%s2 + $0x280] sm:$0xff]
  %v863 = vld [vmem:[%s2 + $0x288] sm:$0xff]
  %v864 = vld [vmem:[%s2 + $0x290] sm:$0xff]
  %v865 = vld [vmem:[%s2 + $0x298] sm:$0xff]
  %v866 = vld [vmem:[%s2 + $0x2a0] sm:$0xff]
  %v867 = vld [vmem:[%s2 + $0x2a8] sm:$0xff]
  %v868 = vld [vmem:[%s2 + $0x2b0] sm:$0xff]
  %v869 = vld [vmem:[%s2 + $0x2b8] sm:$0xff]
  %v870 = vld [vmem:[%s2 + $0x2c0] sm:$0xff]
  %v871 = vld [vmem:[%s2 + $0x2c8] sm:$0xff]
  %v872 = vld [vmem:[%s2 + $0x2d0] sm:$0xff]
  %v873 = vld [vmem:[%s2 + $0x2d8] sm:$0xff]
  %v874 = vld [vmem:[%s2 + $0x2e0] sm:$0xff]
  %v875 = vld [vmem:[%s2 + $0x2e8] sm:$0xff]
  %v876 = vld [vmem:[%s2 + $0x2f0] sm:$0xff]
  %v877 = vld [vmem:[%s2 + $0x2f8] sm:$0xff]
  %v878 = vld [vmem:[%s4] sm:$0x3f]
  %v880 = vlaneseq
  %v881 = vshrl.u32 %v880, 7
  %v882 = vsub.s32 0, %v881
  %v883 = vrot.slane %v878, %v882
  %v884 = vlaneseq
  %v885 = vshrl.u32 %v884, 7
  %v886 = vsub.s32 1, %v885
  %v887 = vrot.slane %v878, %v886
  %v888 = vlaneseq
  %v889 = vshrl.u32 %v888, 7
  %v890 = vsub.s32 2, %v889
  %v891 = vrot.slane %v878, %v890
  %v892 = vlaneseq
  %v893 = vshrl.u32 %v892, 7
  %v894 = vsub.s32 3, %v893
  %v895 = vrot.slane %v878, %v894
  %v896 = vlaneseq
  %v897 = vshrl.u32 %v896, 7
  %v898 = vsub.s32 4, %v897
  %v899 = vrot.slane %v878, %v898
  %v900 = vlaneseq
  %v901 = vshrl.u32 %v900, 7
  %v902 = vsub.s32 5, %v901
  %v903 = vrot.slane %v878, %v902
  %v1006 = vunpack.c.l.b16 %v782
  %v1007 = vunpack.c.h.b16 %v782
  %v1008 = vunpack.c.l.b16 %v783
  %v1009 = vunpack.c.h.b16 %v783
  %v1010 = vunpack.c.l.b16 %v784
  %v1011 = vunpack.c.h.b16 %v784
  %v1012 = vunpack.c.l.b16 %v785
  %v1013 = vunpack.c.h.b16 %v785
  %v1014 = vunpack.c.l.b16 %v786
  %v1015 = vunpack.c.h.b16 %v786
  %v1016 = vunpack.c.l.b16 %v787
  %v1017 = vunpack.c.h.b16 %v787
  %v1018 = vunpack.c.l.b16 %v788
  %v1019 = vunpack.c.h.b16 %v788
  %v1020 = vunpack.c.l.b16 %v789
  %v1021 = vunpack.c.h.b16 %v789
  %v1022 = vunpack.c.l.b16 %v790
  %v1023 = vunpack.c.h.b16 %v790
  %v1024 = vunpack.c.l.b16 %v791
  %v1025 = vunpack.c.h.b16 %v791
  %v1026 = vunpack.c.l.b16 %v792
  %v1027 = vunpack.c.h.b16 %v792
  %v1028 = vunpack.c.l.b16 %v793
  %v1029 = vunpack.c.h.b16 %v793
  %v1030 = vunpack.c.l.b16 %v794
  %v1031 = vunpack.c.h.b16 %v794
  %v1032 = vunpack.c.l.b16 %v795
  %v1033 = vunpack.c.h.b16 %v795
  %v1034 = vunpack.c.l.b16 %v796
  %v1035 = vunpack.c.h.b16 %v796
  %v1036 = vunpack.c.l.b16 %v797
  %v1037 = vunpack.c.h.b16 %v797
  %v1038 = vunpack.c.l.b16 %v798
  %v1039 = vunpack.c.h.b16 %v798
  %v1040 = vunpack.c.l.b16 %v799
  %v1041 = vunpack.c.h.b16 %v799
  %v1042 = vunpack.c.l.b16 %v800
  %v1043 = vunpack.c.h.b16 %v800
  %v1044 = vunpack.c.l.b16 %v801
  %v1045 = vunpack.c.h.b16 %v801
  %v1046 = vunpack.c.l.b16 %v802
  %v1047 = vunpack.c.h.b16 %v802
  %v1048 = vunpack.c.l.b16 %v803
  %v1049 = vunpack.c.h.b16 %v803
  %v1050 = vunpack.c.l.b16 %v804
  %v1051 = vunpack.c.h.b16 %v804
  %v1052 = vunpack.c.l.b16 %v805
  %v1053 = vunpack.c.h.b16 %v805
  %v1054 = vunpack.c.l.b16 %v806
  %v1055 = vunpack.c.h.b16 %v806
  %v1056 = vunpack.c.l.b16 %v807
  %v1057 = vunpack.c.h.b16 %v807
  %v1058 = vunpack.c.l.b16 %v808
  %v1059 = vunpack.c.h.b16 %v808
  %v1060 = vunpack.c.l.b16 %v809
  %v1061 = vunpack.c.h.b16 %v809
  %v1062 = vunpack.c.l.b16 %v810
  %v1063 = vunpack.c.h.b16 %v810
  %v1064 = vunpack.c.l.b16 %v811
  %v1065 = vunpack.c.h.b16 %v811
  %v1066 = vunpack.c.l.b16 %v812
  %v1067 = vunpack.c.h.b16 %v812
  %v1068 = vunpack.c.l.b16 %v813
  %v1069 = vunpack.c.h.b16 %v813
  %v1070 = vunpack.c.l.b16 %v814
  %v1071 = vunpack.c.h.b16 %v814
  %v1072 = vunpack.c.l.b16 %v815
  %v1073 = vunpack.c.h.b16 %v815
  %v1074 = vunpack.c.l.b16 %v816
  %v1075 = vunpack.c.h.b16 %v816
  %v1076 = vunpack.c.l.b16 %v817
  %v1077 = vunpack.c.h.b16 %v817
  %v1078 = vunpack.c.l.b16 %v818
  %v1079 = vunpack.c.h.b16 %v818
  %v1080 = vunpack.c.l.b16 %v819
  %v1081 = vunpack.c.h.b16 %v819
  %v1082 = vunpack.c.l.b16 %v820
  %v1083 = vunpack.c.h.b16 %v820
  %v1084 = vunpack.c.l.b16 %v821
  %v1085 = vunpack.c.h.b16 %v821
  %v1086 = vunpack.c.l.b16 %v822
  %v1087 = vunpack.c.h.b16 %v822
  %v1088 = vunpack.c.l.b16 %v823
  %v1089 = vunpack.c.h.b16 %v823
  %v1090 = vunpack.c.l.b16 %v824
  %v1091 = vunpack.c.h.b16 %v824
  %v1092 = vunpack.c.l.b16 %v825
  %v1093 = vunpack.c.h.b16 %v825
  %v1094 = vunpack.c.l.b16 %v826
  %v1095 = vunpack.c.h.b16 %v826
  %v1096 = vunpack.c.l.b16 %v827
  %v1097 = vunpack.c.h.b16 %v827
  %v1098 = vunpack.c.l.b16 %v828
  %v1099 = vunpack.c.h.b16 %v828
  %v1100 = vunpack.c.l.b16 %v829
  %v1101 = vunpack.c.h.b16 %v829
  %v1102 = vunpack.c.l.b16 %v830
  %v1103 = vunpack.c.h.b16 %v830
  %v1104 = vunpack.c.l.b16 %v831
  %v1105 = vunpack.c.h.b16 %v831
  %v1106 = vunpack.c.l.b16 %v832
  %v1107 = vunpack.c.h.b16 %v832
  %v1108 = vunpack.c.l.b16 %v833
  %v1109 = vunpack.c.h.b16 %v833
  %v1110 = vunpack.c.l.b16 %v834
  %v1111 = vunpack.c.h.b16 %v834
  %v1112 = vunpack.c.l.b16 %v835
  %v1113 = vunpack.c.h.b16 %v835
  %v1114 = vunpack.c.l.b16 %v836
  %v1115 = vunpack.c.h.b16 %v836
  %v1116 = vunpack.c.l.b16 %v837
  %v1117 = vunpack.c.h.b16 %v837
  %v1118 = vunpack.c.l.b16 %v838
  %v1119 = vunpack.c.h.b16 %v838
  %v1120 = vunpack.c.l.b16 %v839
  %v1121 = vunpack.c.h.b16 %v839
  %v1122 = vunpack.c.l.b16 %v840
  %v1123 = vunpack.c.h.b16 %v840
  %v1124 = vunpack.c.l.b16 %v841
  %v1125 = vunpack.c.h.b16 %v841
  %v1126 = vunpack.c.l.b16 %v842
  %v1127 = vunpack.c.h.b16 %v842
  %v1128 = vunpack.c.l.b16 %v843
  %v1129 = vunpack.c.h.b16 %v843
  %v1130 = vunpack.c.l.b16 %v844
  %v1131 = vunpack.c.h.b16 %v844
  %v1132 = vunpack.c.l.b16 %v845
  %v1133 = vunpack.c.h.b16 %v845
  %v1134 = vunpack.c.l.b16 %v846
  %v1135 = vunpack.c.h.b16 %v846
  %v1136 = vunpack.c.l.b16 %v847
  %v1137 = vunpack.c.h.b16 %v847
  %v1138 = vunpack.c.l.b16 %v848
  %v1139 = vunpack.c.h.b16 %v848
  %v1140 = vunpack.c.l.b16 %v849
  %v1141 = vunpack.c.h.b16 %v849
  %v1142 = vunpack.c.l.b16 %v850
  %v1143 = vunpack.c.h.b16 %v850
  %v1144 = vunpack.c.l.b16 %v851
  %v1145 = vunpack.c.h.b16 %v851
  %v1146 = vunpack.c.l.b16 %v852
  %v1147 = vunpack.c.h.b16 %v852
  %v1148 = vunpack.c.l.b16 %v853
  %v1149 = vunpack.c.h.b16 %v853
  %v1150 = vunpack.c.l.b16 %v854
  %v1151 = vunpack.c.h.b16 %v854
  %v1152 = vunpack.c.l.b16 %v855
  %v1153 = vunpack.c.h.b16 %v855
  %v1154 = vunpack.c.l.b16 %v856
  %v1155 = vunpack.c.h.b16 %v856
  %v1156 = vunpack.c.l.b16 %v857
  %v1157 = vunpack.c.h.b16 %v857
  %v1158 = vunpack.c.l.b16 %v858
  %v1159 = vunpack.c.h.b16 %v858
  %v1160 = vunpack.c.l.b16 %v859
  %v1161 = vunpack.c.h.b16 %v859
  %v1162 = vunpack.c.l.b16 %v860
  %v1163 = vunpack.c.h.b16 %v860
  %v1164 = vunpack.c.l.b16 %v861
  %v1165 = vunpack.c.h.b16 %v861
  %v1166 = vunpack.c.l.b16 %v862
  %v1167 = vunpack.c.h.b16 %v862
  %v1168 = vunpack.c.l.b16 %v863
  %v1169 = vunpack.c.h.b16 %v863
  %v1170 = vunpack.c.l.b16 %v864
  %v1171 = vunpack.c.h.b16 %v864
  %v1172 = vunpack.c.l.b16 %v865
  %v1173 = vunpack.c.h.b16 %v865
  %v1174 = vunpack.c.l.b16 %v866
  %v1175 = vunpack.c.h.b16 %v866
  %v1176 = vunpack.c.l.b16 %v867
  %v1177 = vunpack.c.h.b16 %v867
  %v1178 = vunpack.c.l.b16 %v868
  %v1179 = vunpack.c.h.b16 %v868
  %v1180 = vunpack.c.l.b16 %v869
  %v1181 = vunpack.c.h.b16 %v869
  %v1182 = vunpack.c.l.b16 %v870
  %v1183 = vunpack.c.h.b16 %v870
  %v1184 = vunpack.c.l.b16 %v871
  %v1185 = vunpack.c.h.b16 %v871
  %v1186 = vunpack.c.l.b16 %v872
  %v1187 = vunpack.c.h.b16 %v872
  %v1188 = vunpack.c.l.b16 %v873
  %v1189 = vunpack.c.h.b16 %v873
  %v1190 = vunpack.c.l.b16 %v874
  %v1191 = vunpack.c.h.b16 %v874
  %v1192 = vunpack.c.l.b16 %v875
  %v1193 = vunpack.c.h.b16 %v875
  %v1194 = vunpack.c.l.b16 %v876
  %v1195 = vunpack.c.h.b16 %v876
  %v1196 = vunpack.c.l.b16 %v877
  %v1197 = vunpack.c.h.b16 %v877
  %v1198 = vpack.c.b16 %v1012, %v1006
  %v1199 = vpack.c.b16 %v1013, %v1007
  %v1200 = vpack.c.b16 %v1014, %v1008
  %v1201 = vpack.c.b16 %v1015, %v1009
  %v1202 = vpack.c.b16 %v1016, %v1010
  %v1203 = vpack.c.b16 %v1017, %v1011
  %v1204 = vpack.c.b16 %v1024, %v1018
  %v1205 = vpack.c.b16 %v1025, %v1019
  %v1206 = vpack.c.b16 %v1026, %v1020
  %v1207 = vpack.c.b16 %v1027, %v1021
  %v1208 = vpack.c.b16 %v1028, %v1022
  %v1209 = vpack.c.b16 %v1029, %v1023
  %v1210 = vpack.c.b16 %v1036, %v1030
  %v1211 = vpack.c.b16 %v1037, %v1031
  %v1212 = vpack.c.b16 %v1038, %v1032
  %v1213 = vpack.c.b16 %v1039, %v1033
  %v1214 = vpack.c.b16 %v1040, %v1034
  %v1215 = vpack.c.b16 %v1041, %v1035
  %v1216 = vpack.c.b16 %v1048, %v1042
  %v1217 = vpack.c.b16 %v1049, %v1043
  %v1218 = vpack.c.b16 %v1050, %v1044
  %v1219 = vpack.c.b16 %v1051, %v1045
  %v1220 = vpack.c.b16 %v1052, %v1046
  %v1221 = vpack.c.b16 %v1053, %v1047
  %v1222 = vpack.c.b16 %v1060, %v1054
  %v1223 = vpack.c.b16 %v1061, %v1055
  %v1224 = vpack.c.b16 %v1062, %v1056
  %v1225 = vpack.c.b16 %v1063, %v1057
  %v1226 = vpack.c.b16 %v1064, %v1058
  %v1227 = vpack.c.b16 %v1065, %v1059
  %v1228 = vpack.c.b16 %v1072, %v1066
  %v1229 = vpack.c.b16 %v1073, %v1067
  %v1230 = vpack.c.b16 %v1074, %v1068
  %v1231 = vpack.c.b16 %v1075, %v1069
  %v1232 = vpack.c.b16 %v1076, %v1070
  %v1233 = vpack.c.b16 %v1077, %v1071
  %v1234 = vpack.c.b16 %v1084, %v1078
  %v1235 = vpack.c.b16 %v1085, %v1079
  %v1236 = vpack.c.b16 %v1086, %v1080
  %v1237 = vpack.c.b16 %v1087, %v1081
  %v1238 = vpack.c.b16 %v1088, %v1082
  %v1239 = vpack.c.b16 %v1089, %v1083
  %v1240 = vpack.c.b16 %v1096, %v1090
  %v1241 = vpack.c.b16 %v1097, %v1091
  %v1242 = vpack.c.b16 %v1098, %v1092
  %v1243 = vpack.c.b16 %v1099, %v1093
  %v1244 = vpack.c.b16 %v1100, %v1094
  %v1245 = vpack.c.b16 %v1101, %v1095
  %v1246 = vpack.c.b16 %v1108, %v1102
  %v1247 = vpack.c.b16 %v1109, %v1103
  %v1248 = vpack.c.b16 %v1110, %v1104
  %v1249 = vpack.c.b16 %v1111, %v1105
  %v1250 = vpack.c.b16 %v1112, %v1106
  %v1251 = vpack.c.b16 %v1113, %v1107
  %v1252 = vpack.c.b16 %v1120, %v1114
  %v1253 = vpack.c.b16 %v1121, %v1115
  %v1254 = vpack.c.b16 %v1122, %v1116
  %v1255 = vpack.c.b16 %v1123, %v1117
  %v1256 = vpack.c.b16 %v1124, %v1118
  %v1257 = vpack.c.b16 %v1125, %v1119
  %v1258 = vpack.c.b16 %v1132, %v1126
  %v1259 = vpack.c.b16 %v1133, %v1127
  %v1260 = vpack.c.b16 %v1134, %v1128
  %v1261 = vpack.c.b16 %v1135, %v1129
  %v1262 = vpack.c.b16 %v1136, %v1130
  %v1263 = vpack.c.b16 %v1137, %v1131
  %v1264 = vpack.c.b16 %v1144, %v1138
  %v1265 = vpack.c.b16 %v1145, %v1139
  %v1266 = vpack.c.b16 %v1146, %v1140
  %v1267 = vpack.c.b16 %v1147, %v1141
  %v1268 = vpack.c.b16 %v1148, %v1142
  %v1269 = vpack.c.b16 %v1149, %v1143
  %v1270 = vpack.c.b16 %v1156, %v1150
  %v1271 = vpack.c.b16 %v1157, %v1151
  %v1272 = vpack.c.b16 %v1158, %v1152
  %v1273 = vpack.c.b16 %v1159, %v1153
  %v1274 = vpack.c.b16 %v1160, %v1154
  %v1275 = vpack.c.b16 %v1161, %v1155
  %v1276 = vpack.c.b16 %v1168, %v1162
  %v1277 = vpack.c.b16 %v1169, %v1163
  %v1278 = vpack.c.b16 %v1170, %v1164
  %v1279 = vpack.c.b16 %v1171, %v1165
  %v1280 = vpack.c.b16 %v1172, %v1166
  %v1281 = vpack.c.b16 %v1173, %v1167
  %v1282 = vpack.c.b16 %v1180, %v1174
  %v1283 = vpack.c.b16 %v1181, %v1175
  %v1284 = vpack.c.b16 %v1182, %v1176
  %v1285 = vpack.c.b16 %v1183, %v1177
  %v1286 = vpack.c.b16 %v1184, %v1178
  %v1287 = vpack.c.b16 %v1185, %v1179
  %v1288 = vpack.c.b16 %v1192, %v1186
  %v1289 = vpack.c.b16 %v1193, %v1187
  %v1290 = vpack.c.b16 %v1194, %v1188
  %v1291 = vpack.c.b16 %v1195, %v1189
  %v1292 = vpack.c.b16 %v1196, %v1190
  %v1293 = vpack.c.b16 %v1197, %v1191
  %1390 = vmatprep.subr.bf16.mxu0 %v1199
  %1391 = vmatpush1.bf16.msra.mxu0 %v1198
  %1392 = vmatprep.subr.bf16.mxu0 %v1205
  %1393 = vmatpush1.bf16.msra.mxu0 %v1204
  %1394 = vmatprep.subr.bf16.mxu0 %v1211
  %1395 = vmatpush1.bf16.msra.mxu0 %v1210
  %1396 = vmatprep.subr.bf16.mxu0 %v1217
  %1397 = vmatpush1.bf16.msra.mxu0 %v1216
  %1398 = vmatprep.subr.bf16.mxu0 %v1223
  %1399 = vmatpush1.bf16.msra.mxu0 %v1222
  %1400 = vmatprep.subr.bf16.mxu0 %v1229
  %1401 = vmatpush1.bf16.msra.mxu0 %v1228
  %1402 = vmatprep.subr.bf16.mxu0 %v1235
  %1403 = vmatpush1.bf16.msra.mxu0 %v1234
  %1404 = vmatprep.subr.bf16.mxu0 %v1241
  %1405 = vmatpush1.bf16.msra.mxu0 %v1240
  %1406 = vmatprep.subr.bf16.mxu0 %v1247
  %1407 = vmatpush1.bf16.msra.mxu0 %v1246
  %1408 = vmatprep.subr.bf16.mxu0 %v1253
  %1409 = vmatpush1.bf16.msra.mxu0 %v1252
  %1410 = vmatprep.subr.bf16.mxu0 %v1259
  %1411 = vmatpush1.bf16.msra.mxu0 %v1258
  %1412 = vmatprep.subr.bf16.mxu0 %v1265
  %1413 = vmatpush1.bf16.msra.mxu0 %v1264
  %1414 = vmatprep.subr.bf16.mxu0 %v1271
  %1415 = vmatpush1.bf16.msra.mxu0 %v1270
  %1416 = vmatprep.subr.bf16.mxu0 %v1277
  %1417 = vmatpush1.bf16.msra.mxu0 %v1276
  %1418 = vmatprep.subr.bf16.mxu0 %v1283
  %1419 = vmatpush1.bf16.msra.mxu0 %v1282
  %1420 = vmatprep.subr.bf16.mxu0 %v1289
  %1421 = vmatpush1.bf16.msra.mxu0 %v1288
  %1422 = vmatprep.mubr.bf16.mxu0 0
  %1423 = vmatmul.mubr.bf16.gmra.mrb[0].mxu0 0
  %v1424 = vpop.f32.mrb[0].mxu0
  %v1425 = vadd.f32 %v883, %v1424
  %v1426 = vpop.f32.mrb[0].mxu0
  %v1427 = vadd.f32 %v887, %v1426
  %v1428 = vpop.f32.mrb[0].mxu0
  %v1429 = vpop.f32.mrb[0].mxu0
  %1430 = vdwg.mxu0
  %1431 = vmatprep.subr.bf16.mxu0 %v1201
  %1432 = vmatpush1.bf16.msra.mxu0 %v1200
  %1433 = vmatprep.subr.bf16.mxu0 %v1207
  %1434 = vmatpush1.bf16.msra.mxu0 %v1206
  %1435 = vmatprep.subr.bf16.mxu0 %v1213
  %1436 = vmatpush1.bf16.msra.mxu0 %v1212
  %1437 = vmatprep.subr.bf16.mxu0 %v1219
  %1438 = vmatpush1.bf16.msra.mxu0 %v1218
  %1439 = vmatprep.subr.bf16.mxu0 %v1225
  %1440 = vmatpush1.bf16.msra.mxu0 %v1224
  %1441 = vmatprep.subr.bf16.mxu0 %v1231
  %1442 = vmatpush1.bf16.msra.mxu0 %v1230
  %1443 = vmatprep.subr.bf16.mxu0 %v1237
  %1444 = vmatpush1.bf16.msra.mxu0 %v1236
  %1445 = vmatprep.subr.bf16.mxu0 %v1243
  %1446 = vmatpush1.bf16.msra.mxu0 %v1242
  %1447 = vmatprep.subr.bf16.mxu0 %v1249
  %1448 = vmatpush1.bf16.msra.mxu0 %v1248
  %1449 = vmatprep.subr.bf16.mxu0 %v1255
  %1450 = vmatpush1.bf16.msra.mxu0 %v1254
  %1451 = vmatprep.subr.bf16.mxu0 %v1261
  %1452 = vmatpush1.bf16.msra.mxu0 %v1260
  %1453 = vmatprep.subr.bf16.mxu0 %v1267
  %1454 = vmatpush1.bf16.msra.mxu0 %v1266
  %1455 = vmatprep.subr.bf16.mxu0 %v1273
  %1456 = vmatpush1.bf16.msra.mxu0 %v1272
  %1457 = vmatprep.subr.bf16.mxu0 %v1279
  %1458 = vmatpush1.bf16.msra.mxu0 %v1278
  %1459 = vmatprep.subr.bf16.mxu0 %v1285
  %1460 = vmatpush1.bf16.msra.mxu0 %v1284
  %1461 = vmatprep.subr.bf16.mxu0 %v1291
  %1462 = vmatpush1.bf16.msra.mxu0 %v1290
  %1463 = vmatprep.mubr.bf16.mxu0 0
  %1464 = vmatmul.mubr.bf16.gmra.mrb[0].mxu0 0
  %v1465 = vpop.f32.mrb[0].mxu0
  %v1466 = vadd.f32 %v891, %v1465
  %v1467 = vpop.f32.mrb[0].mxu0
  %v1468 = vadd.f32 %v895, %v1467
  %v1469 = vpop.f32.mrb[0].mxu0
  %v1470 = vpop.f32.mrb[0].mxu0
  %1471 = vdwg.mxu0
  %1472 = vmatprep.subr.bf16.mxu0 %v1203
  %1473 = vmatpush1.bf16.msra.mxu0 %v1202
  %1474 = vmatprep.subr.bf16.mxu0 %v1209
  %1475 = vmatpush1.bf16.msra.mxu0 %v1208
  %1476 = vmatprep.subr.bf16.mxu0 %v1215
  %1477 = vmatpush1.bf16.msra.mxu0 %v1214
  %1478 = vmatprep.subr.bf16.mxu0 %v1221
  %1479 = vmatpush1.bf16.msra.mxu0 %v1220
  %1480 = vmatprep.subr.bf16.mxu0 %v1227
  %1481 = vmatpush1.bf16.msra.mxu0 %v1226
  %1482 = vmatprep.subr.bf16.mxu0 %v1233
  %1483 = vmatpush1.bf16.msra.mxu0 %v1232
  %1484 = vmatprep.subr.bf16.mxu0 %v1239
  %1485 = vmatpush1.bf16.msra.mxu0 %v1238
  %1486 = vmatprep.subr.bf16.mxu0 %v1245
  %1487 = vmatpush1.bf16.msra.mxu0 %v1244
  %1488 = vmatprep.subr.bf16.mxu0 %v1251
  %1489 = vmatpush1.bf16.msra.mxu0 %v1250
  %1490 = vmatprep.subr.bf16.mxu0 %v1257
  %1491 = vmatpush1.bf16.msra.mxu0 %v1256
  %1492 = vmatprep.subr.bf16.mxu0 %v1263
  %1493 = vmatpush1.bf16.msra.mxu0 %v1262
  %1494 = vmatprep.subr.bf16.mxu0 %v1269
  %1495 = vmatpush1.bf16.msra.mxu0 %v1268
  %1496 = vmatprep.subr.bf16.mxu0 %v1275
  %1497 = vmatpush1.bf16.msra.mxu0 %v1274
  %1498 = vmatprep.subr.bf16.mxu0 %v1281
  %1499 = vmatpush1.bf16.msra.mxu0 %v1280
  %1500 = vmatprep.subr.bf16.mxu0 %v1287
  %1501 = vmatpush1.bf16.msra.mxu0 %v1286
  %1502 = vmatprep.subr.bf16.mxu0 %v1293
  %1503 = vmatpush1.bf16.msra.mxu0 %v1292
  %1504 = vmatprep.mubr.bf16.mxu0 0
  %1505 = vmatmul.mubr.bf16.gmra.mrb[0].mxu0 0
  %v1506 = vpop.f32.mrb[0].mxu0
  %v1507 = vadd.f32 %v899, %v1506
  %v1508 = vpop.f32.mrb[0].mxu0
  %v1509 = vadd.f32 %v903, %v1508
  %v1510 = vpop.f32.mrb[0].mxu0
  %v1511 = vpop.f32.mrb[0].mxu0
  %1512 = vdwg.mxu0
  %v1513 = vadd.f32 %v776, %v1425
  %v1514 = vadd.f32 %v777, %v1427
  %v1515 = vsub.f32 0.0, %v1513
  %v1516 = vsub.f32 0.0, %v1514
  %v1517 = vmul.f32 %v1515, 1.442695
  %v1518 = vpow.pop %v1517
  %v1519 = vmul.f32 %v1516, 1.442695
  %v1520 = vpow.pop %v1519
  %v1521 = vadd.f32 %v1518, 1.0
  %v1522 = vadd.f32 %v1520, 1.0
  %v1523 = vrcp.pop %v1521
  %v1524 = vmul.f32 1.0, %v1523
  %v1525 = vrcp.pop %v1522
  %v1526 = vmul.f32 1.0, %v1525
  %v1527 = vadd.f32 %v778, %v1466
  %v1528 = vadd.f32 %v779, %v1468
  %v1529 = vsub.f32 0.0, %v1527
  %v1530 = vsub.f32 0.0, %v1528
  %v1531 = vmul.f32 %v1529, 1.442695
  %v1532 = vpow.pop %v1531
  %v1533 = vmul.f32 %v1530, 1.442695
  %v1534 = vpow.pop %v1533
  %v1535 = vadd.f32 %v1532, 1.0
  %v1536 = vadd.f32 %v1534, 1.0
  %v1537 = vrcp.pop %v1535
  %v1538 = vmul.f32 1.0, %v1537
  %v1539 = vrcp.pop %v1536
  %v1540 = vmul.f32 1.0, %v1539
  %v1541 = vmul.f32 %v1524, %v1507
  %v1542 = vmul.f32 %v1526, %v1509
  %v1543 = vadd.f32 %v780, %v1541
  %v1544 = vadd.f32 %v781, %v1542
  %v1545 = vtanh.pop %v1543
  %v1546 = vtanh.pop %v1544
  %v1547 = vsub.f32 1.0, %v1538
  %v1548 = vsub.f32 1.0, %v1540
  %v1549 = vmul.f32 %v1547, %v1545
  %v1550 = vmul.f32 %v1548, %v1546
  %v1551 = vmul.f32 %v1538, 0.0
  %v1552 = vmul.f32 %v1540, 0.0
  %v1553 = vadd.f32 %v1549, %v1551
  %v1554 = vadd.f32 %v1550, %v1552
  %1555 = vst [vmem:[#allocation3] sm:$0x3] %v1553
  %1556 = vst [vmem:[#allocation3 + $0x8] sm:$0x3] %v1554
  %v1557 = vld [vmem:[#allocation2] sm:$0xc]
  %v1558 = vld [vmem:[#allocation2 + $0x8] sm:$0xc]
  %v1559 = vld [vmem:[#allocation2 + $0x10] sm:$0xc]
  %v1560 = vld [vmem:[#allocation2 + $0x18] sm:$0xc]
  %v1561 = vld [vmem:[#allocation2 + $0x20] sm:$0xc]
  %v1562 = vld [vmem:[#allocation2 + $0x28] sm:$0xc]
  %v1563 = vpack.c.bf16 %v1553, %v1553
  %v1564 = vpack.c.bf16 %v1554, %v1554
  %v1565 = vld [vmem:[%s2] sm:$0xff]
  %v1566 = vld [vmem:[%s2 + $0x8] sm:$0xff]
  %v1567 = vld [vmem:[%s2 + $0x10] sm:$0xff]
  %v1568 = vld [vmem:[%s2 + $0x18] sm:$0xff]
  %v1569 = vld [vmem:[%s2 + $0x20] sm:$0xff]
  %v1570 = vld [vmem:[%s2 + $0x28] sm:$0xff]
  %v1571 = vld [vmem:[%s2 + $0x30] sm:$0xff]
  %v1572 = vld [vmem:[%s2 + $0x38] sm:$0xff]
  %v1573 = vld [vmem:[%s2 + $0x40] sm:$0xff]
  %v1574 = vld [vmem:[%s2 + $0x48] sm:$0xff]
  %v1575 = vld [vmem:[%s2 + $0x50] sm:$0xff]
  %v1576 = vld [vmem:[%s2 + $0x58] sm:$0xff]
  %v1577 = vld [vmem:[%s2 + $0x60] sm:$0xff]
  %v1578 = vld [vmem:[%s2 + $0x68] sm:$0xff]
  %v1579 = vld [vmem:[%s2 + $0x70] sm:$0xff]
  %v1580 = vld [vmem:[%s2 + $0x78] sm:$0xff]
  %v1581 = vld [vmem:[%s2 + $0x80] sm:$0xff]
  %v1582 = vld [vmem:[%s2 + $0x88] sm:$0xff]
  %v1583 = vld [vmem:[%s2 + $0x90] sm:$0xff]
  %v1584 = vld [vmem:[%s2 + $0x98] sm:$0xff]
  %v1585 = vld [vmem:[%s2 + $0xa0] sm:$0xff]
  %v1586 = vld [vmem:[%s2 + $0xa8] sm:$0xff]
  %v1587 = vld [vmem:[%s2 + $0xb0] sm:$0xff]
  %v1588 = vld [vmem:[%s2 + $0xb8] sm:$0xff]
  %v1589 = vld [vmem:[%s2 + $0xc0] sm:$0xff]
  %v1590 = vld [vmem:[%s2 + $0xc8] sm:$0xff]
  %v1591 = vld [vmem:[%s2 + $0xd0] sm:$0xff]
  %v1592 = vld [vmem:[%s2 + $0xd8] sm:$0xff]
  %v1593 = vld [vmem:[%s2 + $0xe0] sm:$0xff]
  %v1594 = vld [vmem:[%s2 + $0xe8] sm:$0xff]
  %v1595 = vld [vmem:[%s2 + $0xf0] sm:$0xff]
  %v1596 = vld [vmem:[%s2 + $0xf8] sm:$0xff]
  %v1597 = vld [vmem:[%s2 + $0x100] sm:$0xff]
  %v1598 = vld [vmem:[%s2 + $0x108] sm:$0xff]
  %v1599 = vld [vmem:[%s2 + $0x110] sm:$0xff]
  %v1600 = vld [vmem:[%s2 + $0x118] sm:$0xff]
  %v1601 = vld [vmem:[%s2 + $0x120] sm:$0xff]
  %v1602 = vld [vmem:[%s2 + $0x128] sm:$0xff]
  %v1603 = vld [vmem:[%s2 + $0x130] sm:$0xff]
  %v1604 = vld [vmem:[%s2 + $0x138] sm:$0xff]
  %v1605 = vld [vmem:[%s2 + $0x140] sm:$0xff]
  %v1606 = vld [vmem:[%s2 + $0x148] sm:$0xff]
  %v1607 = vld [vmem:[%s2 + $0x150] sm:$0xff]
  %v1608 = vld [vmem:[%s2 + $0x158] sm:$0xff]
  %v1609 = vld [vmem:[%s2 + $0x160] sm:$0xff]
  %v1610 = vld [vmem:[%s2 + $0x168] sm:$0xff]
  %v1611 = vld [vmem:[%s2 + $0x170] sm:$0xff]
  %v1612 = vld [vmem:[%s2 + $0x178] sm:$0xff]
  %v1613 = vld [vmem:[%s2 + $0x180] sm:$0xff]
  %v1614 = vld [vmem:[%s2 + $0x188] sm:$0xff]
  %v1615 = vld [vmem:[%s2 + $0x190] sm:$0xff]
  %v1616 = vld [vmem:[%s2 + $0x198] sm:$0xff]
  %v1617 = vld [vmem:[%s2 + $0x1a0] sm:$0xff]
  %v1618 = vld [vmem:[%s2 + $0x1a8] sm:$0xff]
  %v1619 = vld [vmem:[%s2 + $0x1b0] sm:$0xff]
  %v1620 = vld [vmem:[%s2 + $0x1b8] sm:$0xff]
  %v1621 = vld [vmem:[%s2 + $0x1c0] sm:$0xff]
  %v1622 = vld [vmem:[%s2 + $0x1c8] sm:$0xff]
  %v1623 = vld [vmem:[%s2 + $0x1d0] sm:$0xff]
  %v1624 = vld [vmem:[%s2 + $0x1d8] sm:$0xff]
  %v1625 = vld [vmem:[%s2 + $0x1e0] sm:$0xff]
  %v1626 = vld [vmem:[%s2 + $0x1e8] sm:$0xff]
  %v1627 = vld [vmem:[%s2 + $0x1f0] sm:$0xff]
  %v1628 = vld [vmem:[%s2 + $0x1f8] sm:$0xff]
  %v1629 = vld [vmem:[%s2 + $0x200] sm:$0xff]
  %v1630 = vld [vmem:[%s2 + $0x208] sm:$0xff]
  %v1631 = vld [vmem:[%s2 + $0x210] sm:$0xff]
  %v1632 = vld [vmem:[%s2 + $0x218] sm:$0xff]
  %v1633 = vld [vmem:[%s2 + $0x220] sm:$0xff]
  %v1634 = vld [vmem:[%s2 + $0x228] sm:$0xff]
  %v1635 = vld [vmem:[%s2 + $0x230] sm:$0xff]
  %v1636 = vld [vmem:[%s2 + $0x238] sm:$0xff]
  %v1637 = vld [vmem:[%s2 + $0x240] sm:$0xff]
  %v1638 = vld [vmem:[%s2 + $0x248] sm:$0xff]
  %v1639 = vld [vmem:[%s2 + $0x250] sm:$0xff]
  %v1640 = vld [vmem:[%s2 + $0x258] sm:$0xff]
  %v1641 = vld [vmem:[%s2 + $0x260] sm:$0xff]
  %v1642 = vld [vmem:[%s2 + $0x268] sm:$0xff]
  %v1643 = vld [vmem:[%s2 + $0x270] sm:$0xff]
  %v1644 = vld [vmem:[%s2 + $0x278] sm:$0xff]
  %v1645 = vld [vmem:[%s2 + $0x280] sm:$0xff]
  %v1646 = vld [vmem:[%s2 + $0x288] sm:$0xff]
  %v1647 = vld [vmem:[%s2 + $0x290] sm:$0xff]
  %v1648 = vld [vmem:[%s2 + $0x298] sm:$0xff]
  %v1649 = vld [vmem:[%s2 + $0x2a0] sm:$0xff]
  %v1650 = vld [vmem:[%s2 + $0x2a8] sm:$0xff]
  %v1651 = vld [vmem:[%s2 + $0x2b0] sm:$0xff]
  %v1652 = vld [vmem:[%s2 + $0x2b8] sm:$0xff]
  %v1653 = vld [vmem:[%s2 + $0x2c0] sm:$0xff]
  %v1654 = vld [vmem:[%s2 + $0x2c8] sm:$0xff]
  %v1655 = vld [vmem:[%s2 + $0x2d0] sm:$0xff]
  %v1656 = vld [vmem:[%s2 + $0x2d8] sm:$0xff]
  %v1657 = vld [vmem:[%s2 + $0x2e0] sm:$0xff]
  %v1658 = vld [vmem:[%s2 + $0x2e8] sm:$0xff]
  %v1659 = vld [vmem:[%s2 + $0x2f0] sm:$0xff]
  %v1660 = vld [vmem:[%s2 + $0x2f8] sm:$0xff]
  %v1661 = vld [vmem:[%s4] sm:$0x3f]
  %v1663 = vlaneseq
  %v1664 = vshrl.u32 %v1663, 7
  %v1665 = vsub.s32 0, %v1664
  %v1666 = vrot.slane %v1661, %v1665
  %v1667 = vlaneseq
  %v1668 = vshrl.u32 %v1667, 7
  %v1669 = vsub.s32 1, %v1668
  %v1670 = vrot.slane %v1661, %v1669
  %v1671 = vlaneseq
  %v1672 = vshrl.u32 %v1671, 7
  %v1673 = vsub.s32 2, %v1672
  %v1674 = vrot.slane %v1661, %v1673
  %v1675 = vlaneseq
  %v1676 = vshrl.u32 %v1675, 7
  %v1677 = vsub.s32 3, %v1676
  %v1678 = vrot.slane %v1661, %v1677
  %v1679 = vlaneseq
  %v1680 = vshrl.u32 %v1679, 7
  %v1681 = vsub.s32 4, %v1680
  %v1682 = vrot.slane %v1661, %v1681
  %v1683 = vlaneseq
  %v1684 = vshrl.u32 %v1683, 7
  %v1685 = vsub.s32 5, %v1684
  %v1686 = vrot.slane %v1661, %v1685
  %v1789 = vunpack.c.l.b16 %v1565
  %v1790 = vunpack.c.h.b16 %v1565
  %v1791 = vunpack.c.l.b16 %v1566
  %v1792 = vunpack.c.h.b16 %v1566
  %v1793 = vunpack.c.l.b16 %v1567
  %v1794 = vunpack.c.h.b16 %v1567
  %v1795 = vunpack.c.l.b16 %v1568
  %v1796 = vunpack.c.h.b16 %v1568
  %v1797 = vunpack.c.l.b16 %v1569
  %v1798 = vunpack.c.h.b16 %v1569
  %v1799 = vunpack.c.l.b16 %v1570
  %v1800 = vunpack.c.h.b16 %v1570
  %v1801 = vunpack.c.l.b16 %v1571
  %v1802 = vunpack.c.h.b16 %v1571
  %v1803 = vunpack.c.l.b16 %v1572
  %v1804 = vunpack.c.h.b16 %v1572
  %v1805 = vunpack.c.l.b16 %v1573
  %v1806 = vunpack.c.h.b16 %v1573
  %v1807 = vunpack.c.l.b16 %v1574
  %v1808 = vunpack.c.h.b16 %v1574
  %v1809 = vunpack.c.l.b16 %v1575
  %v1810 = vunpack.c.h.b16 %v1575
  %v1811 = vunpack.c.l.b16 %v1576
  %v1812 = vunpack.c.h.b16 %v1576
  %v1813 = vunpack.c.l.b16 %v1577
  %v1814 = vunpack.c.h.b16 %v1577
  %v1815 = vunpack.c.l.b16 %v1578
  %v1816 = vunpack.c.h.b16 %v1578
  %v1817 = vunpack.c.l.b16 %v1579
  %v1818 = vunpack.c.h.b16 %v1579
  %v1819 = vunpack.c.l.b16 %v1580
  %v1820 = vunpack.c.h.b16 %v1580
  %v1821 = vunpack.c.l.b16 %v1581
  %v1822 = vunpack.c.h.b16 %v1581
  %v1823 = vunpack.c.l.b16 %v1582
  %v1824 = vunpack.c.h.b16 %v1582
  %v1825 = vunpack.c.l.b16 %v1583
  %v1826 = vunpack.c.h.b16 %v1583
  %v1827 = vunpack.c.l.b16 %v1584
  %v1828 = vunpack.c.h.b16 %v1584
  %v1829 = vunpack.c.l.b16 %v1585
  %v1830 = vunpack.c.h.b16 %v1585
  %v1831 = vunpack.c.l.b16 %v1586
  %v1832 = vunpack.c.h.b16 %v1586
  %v1833 = vunpack.c.l.b16 %v1587
  %v1834 = vunpack.c.h.b16 %v1587
  %v1835 = vunpack.c.l.b16 %v1588
  %v1836 = vunpack.c.h.b16 %v1588
  %v1837 = vunpack.c.l.b16 %v1589
  %v1838 = vunpack.c.h.b16 %v1589
  %v1839 = vunpack.c.l.b16 %v1590
  %v1840 = vunpack.c.h.b16 %v1590
  %v1841 = vunpack.c.l.b16 %v1591
  %v1842 = vunpack.c.h.b16 %v1591
  %v1843 = vunpack.c.l.b16 %v1592
  %v1844 = vunpack.c.h.b16 %v1592
  %v1845 = vunpack.c.l.b16 %v1593
  %v1846 = vunpack.c.h.b16 %v1593
  %v1847 = vunpack.c.l.b16 %v1594
  %v1848 = vunpack.c.h.b16 %v1594
  %v1849 = vunpack.c.l.b16 %v1595
  %v1850 = vunpack.c.h.b16 %v1595
  %v1851 = vunpack.c.l.b16 %v1596
  %v1852 = vunpack.c.h.b16 %v1596
  %v1853 = vunpack.c.l.b16 %v1597
  %v1854 = vunpack.c.h.b16 %v1597
  %v1855 = vunpack.c.l.b16 %v1598
  %v1856 = vunpack.c.h.b16 %v1598
  %v1857 = vunpack.c.l.b16 %v1599
  %v1858 = vunpack.c.h.b16 %v1599
  %v1859 = vunpack.c.l.b16 %v1600
  %v1860 = vunpack.c.h.b16 %v1600
  %v1861 = vunpack.c.l.b16 %v1601
  %v1862 = vunpack.c.h.b16 %v1601
  %v1863 = vunpack.c.l.b16 %v1602
  %v1864 = vunpack.c.h.b16 %v1602
  %v1865 = vunpack.c.l.b16 %v1603
  %v1866 = vunpack.c.h.b16 %v1603
  %v1867 = vunpack.c.l.b16 %v1604
  %v1868 = vunpack.c.h.b16 %v1604
  %v1869 = vunpack.c.l.b16 %v1605
  %v1870 = vunpack.c.h.b16 %v1605
  %v1871 = vunpack.c.l.b16 %v1606
  %v1872 = vunpack.c.h.b16 %v1606
  %v1873 = vunpack.c.l.b16 %v1607
  %v1874 = vunpack.c.h.b16 %v1607
  %v1875 = vunpack.c.l.b16 %v1608
  %v1876 = vunpack.c.h.b16 %v1608
  %v1877 = vunpack.c.l.b16 %v1609
  %v1878 = vunpack.c.h.b16 %v1609
  %v1879 = vunpack.c.l.b16 %v1610
  %v1880 = vunpack.c.h.b16 %v1610
  %v1881 = vunpack.c.l.b16 %v1611
  %v1882 = vunpack.c.h.b16 %v1611
  %v1883 = vunpack.c.l.b16 %v1612
  %v1884 = vunpack.c.h.b16 %v1612
  %v1885 = vunpack.c.l.b16 %v1613
  %v1886 = vunpack.c.h.b16 %v1613
  %v1887 = vunpack.c.l.b16 %v1614
  %v1888 = vunpack.c.h.b16 %v1614
  %v1889 = vunpack.c.l.b16 %v1615
  %v1890 = vunpack.c.h.b16 %v1615
  %v1891 = vunpack.c.l.b16 %v1616
  %v1892 = vunpack.c.h.b16 %v1616
  %v1893 = vunpack.c.l.b16 %v1617
  %v1894 = vunpack.c.h.b16 %v1617
  %v1895 = vunpack.c.l.b16 %v1618
  %v1896 = vunpack.c.h.b16 %v1618
  %v1897 = vunpack.c.l.b16 %v1619
  %v1898 = vunpack.c.h.b16 %v1619
  %v1899 = vunpack.c.l.b16 %v1620
  %v1900 = vunpack.c.h.b16 %v1620
  %v1901 = vunpack.c.l.b16 %v1621
  %v1902 = vunpack.c.h.b16 %v1621
  %v1903 = vunpack.c.l.b16 %v1622
  %v1904 = vunpack.c.h.b16 %v1622
  %v1905 = vunpack.c.l.b16 %v1623
  %v1906 = vunpack.c.h.b16 %v1623
  %v1907 = vunpack.c.l.b16 %v1624
  %v1908 = vunpack.c.h.b16 %v1624
  %v1909 = vunpack.c.l.b16 %v1625
  %v1910 = vunpack.c.h.b16 %v1625
  %v1911 = vunpack.c.l.b16 %v1626
  %v1912 = vunpack.c.h.b16 %v1626
  %v1913 = vunpack.c.l.b16 %v1627
  %v1914 = vunpack.c.h.b16 %v1627
  %v1915 = vunpack.c.l.b16 %v1628
  %v1916 = vunpack.c.h.b16 %v1628
  %v1917 = vunpack.c.l.b16 %v1629
  %v1918 = vunpack.c.h.b16 %v1629
  %v1919 = vunpack.c.l.b16 %v1630
  %v1920 = vunpack.c.h.b16 %v1630
  %v1921 = vunpack.c.l.b16 %v1631
  %v1922 = vunpack.c.h.b16 %v1631
  %v1923 = vunpack.c.l.b16 %v1632
  %v1924 = vunpack.c.h.b16 %v1632
  %v1925 = vunpack.c.l.b16 %v1633
  %v1926 = vunpack.c.h.b16 %v1633
  %v1927 = vunpack.c.l.b16 %v1634
  %v1928 = vunpack.c.h.b16 %v1634
  %v1929 = vunpack.c.l.b16 %v1635
  %v1930 = vunpack.c.h.b16 %v1635
  %v1931 = vunpack.c.l.b16 %v1636
  %v1932 = vunpack.c.h.b16 %v1636
  %v1933 = vunpack.c.l.b16 %v1637
  %v1934 = vunpack.c.h.b16 %v1637
  %v1935 = vunpack.c.l.b16 %v1638
  %v1936 = vunpack.c.h.b16 %v1638
  %v1937 = vunpack.c.l.b16 %v1639
  %v1938 = vunpack.c.h.b16 %v1639
  %v1939 = vunpack.c.l.b16 %v1640
  %v1940 = vunpack.c.h.b16 %v1640
  %v1941 = vunpack.c.l.b16 %v1641
  %v1942 = vunpack.c.h.b16 %v1641
  %v1943 = vunpack.c.l.b16 %v1642
  %v1944 = vunpack.c.h.b16 %v1642
  %v1945 = vunpack.c.l.b16 %v1643
  %v1946 = vunpack.c.h.b16 %v1643
  %v1947 = vunpack.c.l.b16 %v1644
  %v1948 = vunpack.c.h.b16 %v1644
  %v1949 = vunpack.c.l.b16 %v1645
  %v1950 = vunpack.c.h.b16 %v1645
  %v1951 = vunpack.c.l.b16 %v1646
  %v1952 = vunpack.c.h.b16 %v1646
  %v1953 = vunpack.c.l.b16 %v1647
  %v1954 = vunpack.c.h.b16 %v1647
  %v1955 = vunpack.c.l.b16 %v1648
  %v1956 = vunpack.c.h.b16 %v1648
  %v1957 = vunpack.c.l.b16 %v1649
  %v1958 = vunpack.c.h.b16 %v1649
  %v1959 = vunpack.c.l.b16 %v1650
  %v1960 = vunpack.c.h.b16 %v1650
  %v1961 = vunpack.c.l.b16 %v1651
  %v1962 = vunpack.c.h.b16 %v1651
  %v1963 = vunpack.c.l.b16 %v1652
  %v1964 = vunpack.c.h.b16 %v1652
  %v1965 = vunpack.c.l.b16 %v1653
  %v1966 = vunpack.c.h.b16 %v1653
  %v1967 = vunpack.c.l.b16 %v1654
  %v1968 = vunpack.c.h.b16 %v1654
  %v1969 = vunpack.c.l.b16 %v1655
  %v1970 = vunpack.c.h.b16 %v1655
  %v1971 = vunpack.c.l.b16 %v1656
  %v1972 = vunpack.c.h.b16 %v1656
  %v1973 = vunpack.c.l.b16 %v1657
  %v1974 = vunpack.c.h.b16 %v1657
  %v1975 = vunpack.c.l.b16 %v1658
  %v1976 = vunpack.c.h.b16 %v1658
  %v1977 = vunpack.c.l.b16 %v1659
  %v1978 = vunpack.c.h.b16 %v1659
  %v1979 = vunpack.c.l.b16 %v1660
  %v1980 = vunpack.c.h.b16 %v1660
  %v1981 = vpack.c.b16 %v1795, %v1789
  %v1982 = vpack.c.b16 %v1796, %v1790
  %v1983 = vpack.c.b16 %v1797, %v1791
  %v1984 = vpack.c.b16 %v1798, %v1792
  %v1985 = vpack.c.b16 %v1799, %v1793
  %v1986 = vpack.c.b16 %v1800, %v1794
  %v1987 = vpack.c.b16 %v1807, %v1801
  %v1988 = vpack.c.b16 %v1808, %v1802
  %v1989 = vpack.c.b16 %v1809, %v1803
  %v1990 = vpack.c.b16 %v1810, %v1804
  %v1991 = vpack.c.b16 %v1811, %v1805
  %v1992 = vpack.c.b16 %v1812, %v1806
  %v1993 = vpack.c.b16 %v1819, %v1813
  %v1994 = vpack.c.b16 %v1820, %v1814
  %v1995 = vpack.c.b16 %v1821, %v1815
  %v1996 = vpack.c.b16 %v1822, %v1816
  %v1997 = vpack.c.b16 %v1823, %v1817
  %v1998 = vpack.c.b16 %v1824, %v1818
  %v1999 = vpack.c.b16 %v1831, %v1825
  %v2000 = vpack.c.b16 %v1832, %v1826
  %v2001 = vpack.c.b16 %v1833, %v1827
  %v2002 = vpack.c.b16 %v1834, %v1828
  %v2003 = vpack.c.b16 %v1835, %v1829
  %v2004 = vpack.c.b16 %v1836, %v1830
  %v2005 = vpack.c.b16 %v1843, %v1837
  %v2006 = vpack.c.b16 %v1844, %v1838
  %v2007 = vpack.c.b16 %v1845, %v1839
  %v2008 = vpack.c.b16 %v1846, %v1840
  %v2009 = vpack.c.b16 %v1847, %v1841
  %v2010 = vpack.c.b16 %v1848, %v1842
  %v2011 = vpack.c.b16 %v1855, %v1849
  %v2012 = vpack.c.b16 %v1856, %v1850
  %v2013 = vpack.c.b16 %v1857, %v1851
  %v2014 = vpack.c.b16 %v1858, %v1852
  %v2015 = vpack.c.b16 %v1859, %v1853
  %v2016 = vpack.c.b16 %v1860, %v1854
  %v2017 = vpack.c.b16 %v1867, %v1861
  %v2018 = vpack.c.b16 %v1868, %v1862
  %v2019 = vpack.c.b16 %v1869, %v1863
  %v2020 = vpack.c.b16 %v1870, %v1864
  %v2021 = vpack.c.b16 %v1871, %v1865
  %v2022 = vpack.c.b16 %v1872, %v1866
  %v2023 = vpack.c.b16 %v1879, %v1873
  %v2024 = vpack.c.b16 %v1880, %v1874
  %v2025 = vpack.c.b16 %v1881, %v1875
  %v2026 = vpack.c.b16 %v1882, %v1876
  %v2027 = vpack.c.b16 %v1883, %v1877
  %v2028 = vpack.c.b16 %v1884, %v1878
  %v2029 = vpack.c.b16 %v1891, %v1885
  %v2030 = vpack.c.b16 %v1892, %v1886
  %v2031 = vpack.c.b16 %v1893, %v1887
  %v2032 = vpack.c.b16 %v1894, %v1888
  %v2033 = vpack.c.b16 %v1895, %v1889
  %v2034 = vpack.c.b16 %v1896, %v1890
  %v2035 = vpack.c.b16 %v1903, %v1897
  %v2036 = vpack.c.b16 %v1904, %v1898
  %v2037 = vpack.c.b16 %v1905, %v1899
  %v2038 = vpack.c.b16 %v1906, %v1900
  %v2039 = vpack.c.b16 %v1907, %v1901
  %v2040 = vpack.c.b16 %v1908, %v1902
  %v2041 = vpack.c.b16 %v1915, %v1909
  %v2042 = vpack.c.b16 %v1916, %v1910
  %v2043 = vpack.c.b16 %v1917, %v1911
  %v2044 = vpack.c.b16 %v1918, %v1912
  %v2045 = vpack.c.b16 %v1919, %v1913
  %v2046 = vpack.c.b16 %v1920, %v1914
  %v2047 = vpack.c.b16 %v1927, %v1921
  %v2048 = vpack.c.b16 %v1928, %v1922
  %v2049 = vpack.c.b16 %v1929, %v1923
  %v2050 = vpack.c.b16 %v1930, %v1924
  %v2051 = vpack.c.b16 %v1931, %v1925
  %v2052 = vpack.c.b16 %v1932, %v1926
  %v2053 = vpack.c.b16 %v1939, %v1933
  %v2054 = vpack.c.b16 %v1940, %v1934
  %v2055 = vpack.c.b16 %v1941, %v1935
  %v2056 = vpack.c.b16 %v1942, %v1936
  %v2057 = vpack.c.b16 %v1943, %v1937
  %v2058 = vpack.c.b16 %v1944, %v1938
  %v2059 = vpack.c.b16 %v1951, %v1945
  %v2060 = vpack.c.b16 %v1952, %v1946
  %v2061 = vpack.c.b16 %v1953, %v1947
  %v2062 = vpack.c.b16 %v1954, %v1948
  %v2063 = vpack.c.b16 %v1955, %v1949
  %v2064 = vpack.c.b16 %v1956, %v1950
  %v2065 = vpack.c.b16 %v1963, %v1957
  %v2066 = vpack.c.b16 %v1964, %v1958
  %v2067 = vpack.c.b16 %v1965, %v1959
  %v2068 = vpack.c.b16 %v1966, %v1960
  %v2069 = vpack.c.b16 %v1967, %v1961
  %v2070 = vpack.c.b16 %v1968, %v1962
  %v2071 = vpack.c.b16 %v1975, %v1969
  %v2072 = vpack.c.b16 %v1976, %v1970
  %v2073 = vpack.c.b16 %v1977, %v1971
  %v2074 = vpack.c.b16 %v1978, %v1972
  %v2075 = vpack.c.b16 %v1979, %v1973
  %v2076 = vpack.c.b16 %v1980, %v1974
  %2173 = vmatprep.subr.bf16.mxu0 %v1982
  %2174 = vmatpush1.bf16.msra.mxu0 %v1981
  %2175 = vmatprep.subr.bf16.mxu0 %v1988
  %2176 = vmatpush1.bf16.msra.mxu0 %v1987
  %2177 = vmatprep.subr.bf16.mxu0 %v1994
  %2178 = vmatpush1.bf16.msra.mxu0 %v1993
  %2179 = vmatprep.subr.bf16.mxu0 %v2000
  %2180 = vmatpush1.bf16.msra.mxu0 %v1999
  %2181 = vmatprep.subr.bf16.mxu0 %v2006
  %2182 = vmatpush1.bf16.msra.mxu0 %v2005
  %2183 = vmatprep.subr.bf16.mxu0 %v2012
  %2184 = vmatpush1.bf16.msra.mxu0 %v2011
  %2185 = vmatprep.subr.bf16.mxu0 %v2018
  %2186 = vmatpush1.bf16.msra.mxu0 %v2017
  %2187 = vmatprep.subr.bf16.mxu0 %v2024
  %2188 = vmatpush1.bf16.msra.mxu0 %v2023
  %2189 = vmatprep.subr.bf16.mxu0 %v2030
  %2190 = vmatpush1.bf16.msra.mxu0 %v2029
  %2191 = vmatprep.subr.bf16.mxu0 %v2036
  %2192 = vmatpush1.bf16.msra.mxu0 %v2035
  %2193 = vmatprep.subr.bf16.mxu0 %v2042
  %2194 = vmatpush1.bf16.msra.mxu0 %v2041
  %2195 = vmatprep.subr.bf16.mxu0 %v2048
  %2196 = vmatpush1.bf16.msra.mxu0 %v2047
  %2197 = vmatprep.subr.bf16.mxu0 %v2054
  %2198 = vmatpush1.bf16.msra.mxu0 %v2053
  %2199 = vmatprep.subr.bf16.mxu0 %v2060
  %2200 = vmatpush1.bf16.msra.mxu0 %v2059
  %2201 = vmatprep.subr.bf16.mxu0 %v2066
  %2202 = vmatpush1.bf16.msra.mxu0 %v2065
  %2203 = vmatprep.subr.bf16.mxu0 %v2072
  %2204 = vmatpush1.bf16.msra.mxu0 %v2071
  %2205 = vmatprep.mubr.bf16.mxu0 %v1564
  %2206 = vmatmul.mubr.bf16.gmra.mrb[0].mxu0 %v1563
  %v2207 = vpop.f32.mrb[0].mxu0
  %v2208 = vadd.f32 %v1666, %v2207
  %v2209 = vpop.f32.mrb[0].mxu0
  %v2210 = vadd.f32 %v1670, %v2209
  %v2211 = vpop.f32.mrb[0].mxu0
  %v2212 = vpop.f32.mrb[0].mxu0
  %2213 = vdwg.mxu0
  %2214 = vmatprep.subr.bf16.mxu0 %v1984
  %2215 = vmatpush1.bf16.msra.mxu0 %v1983
  %2216 = vmatprep.subr.bf16.mxu0 %v1990
  %2217 = vmatpush1.bf16.msra.mxu0 %v1989
  %2218 = vmatprep.subr.bf16.mxu0 %v1996
  %2219 = vmatpush1.bf16.msra.mxu0 %v1995
  %2220 = vmatprep.subr.bf16.mxu0 %v2002
  %2221 = vmatpush1.bf16.msra.mxu0 %v2001
  %2222 = vmatprep.subr.bf16.mxu0 %v2008
  %2223 = vmatpush1.bf16.msra.mxu0 %v2007
  %2224 = vmatprep.subr.bf16.mxu0 %v2014
  %2225 = vmatpush1.bf16.msra.mxu0 %v2013
  %2226 = vmatprep.subr.bf16.mxu0 %v2020
  %2227 = vmatpush1.bf16.msra.mxu0 %v2019
  %2228 = vmatprep.subr.bf16.mxu0 %v2026
  %2229 = vmatpush1.bf16.msra.mxu0 %v2025
  %2230 = vmatprep.subr.bf16.mxu0 %v2032
  %2231 = vmatpush1.bf16.msra.mxu0 %v2031
  %2232 = vmatprep.subr.bf16.mxu0 %v2038
  %2233 = vmatpush1.bf16.msra.mxu0 %v2037
  %2234 = vmatprep.subr.bf16.mxu0 %v2044
  %2235 = vmatpush1.bf16.msra.mxu0 %v2043
  %2236 = vmatprep.subr.bf16.mxu0 %v2050
  %2237 = vmatpush1.bf16.msra.mxu0 %v2049
  %2238 = vmatprep.subr.bf16.mxu0 %v2056
  %2239 = vmatpush1.bf16.msra.mxu0 %v2055
  %2240 = vmatprep.subr.bf16.mxu0 %v2062
  %2241 = vmatpush1.bf16.msra.mxu0 %v2061
  %2242 = vmatprep.subr.bf16.mxu0 %v2068
  %2243 = vmatpush1.bf16.msra.mxu0 %v2067
  %2244 = vmatprep.subr.bf16.mxu0 %v2074
  %2245 = vmatpush1.bf16.msra.mxu0 %v2073
  %2246 = vmatprep.mubr.bf16.mxu0 %v1564
  %2247 = vmatmul.mubr.bf16.gmra.mrb[0].mxu0 %v1563
  %v2248 = vpop.f32.mrb[0].mxu0
  %v2249 = vadd.f32 %v1674, %v2248
  %v2250 = vpop.f32.mrb[0].mxu0
  %v2251 = vadd.f32 %v1678, %v2250
  %v2252 = vpop.f32.mrb[0].mxu0
  %v2253 = vpop.f32.mrb[0].mxu0
  %2254 = vdwg.mxu0
  %2255 = vmatprep.subr.bf16.mxu0 %v1986
  %2256 = vmatpush1.bf16.msra.mxu0 %v1985
  %2257 = vmatprep.subr.bf16.mxu0 %v1992
  %2258 = vmatpush1.bf16.msra.mxu0 %v1991
  %2259 = vmatprep.subr.bf16.mxu0 %v1998
  %2260 = vmatpush1.bf16.msra.mxu0 %v1997
  %2261 = vmatprep.subr.bf16.mxu0 %v2004
  %2262 = vmatpush1.bf16.msra.mxu0 %v2003
  %2263 = vmatprep.subr.bf16.mxu0 %v2010
  %2264 = vmatpush1.bf16.msra.mxu0 %v2009
  %2265 = vmatprep.subr.bf16.mxu0 %v2016
  %2266 = vmatpush1.bf16.msra.mxu0 %v2015
  %2267 = vmatprep.subr.bf16.mxu0 %v2022
  %2268 = vmatpush1.bf16.msra.mxu0 %v2021
  %2269 = vmatprep.subr.bf16.mxu0 %v2028
  %2270 = vmatpush1.bf16.msra.mxu0 %v2027
  %2271 = vmatprep.subr.bf16.mxu0 %v2034
  %2272 = vmatpush1.bf16.msra.mxu0 %v2033
  %2273 = vmatprep.subr.bf16.mxu0 %v2040
  %2274 = vmatpush1.bf16.msra.mxu0 %v2039
  %2275 = vmatprep.subr.bf16.mxu0 %v2046
  %2276 = vmatpush1.bf16.msra.mxu0 %v2045
  %2277 = vmatprep.subr.bf16.mxu0 %v2052
  %2278 = vmatpush1.bf16.msra.mxu0 %v2051
  %2279 = vmatprep.subr.bf16.mxu0 %v2058
  %2280 = vmatpush1.bf16.msra.mxu0 %v2057
  %2281 = vmatprep.subr.bf16.mxu0 %v2064
  %2282 = vmatpush1.bf16.msra.mxu0 %v2063
  %2283 = vmatprep.subr.bf16.mxu0 %v2070
  %2284 = vmatpush1.bf16.msra.mxu0 %v2069
  %2285 = vmatprep.subr.bf16.mxu0 %v2076
  %2286 = vmatpush1.bf16.msra.mxu0 %v2075
  %2287 = vmatprep.mubr.bf16.mxu0 %v1564
  %2288 = vmatmul.mubr.bf16.gmra.mrb[0].mxu0 %v1563
  %v2289 = vpop.f32.mrb[0].mxu0
  %v2290 = vadd.f32 %v1682, %v2289
  %v2291 = vpop.f32.mrb[0].mxu0
  %v2292 = vadd.f32 %v1686, %v2291
  %v2293 = vpop.f32.mrb[0].mxu0
  %v2294 = vpop.f32.mrb[0].mxu0
  %2295 = vdwg.mxu0
  %v2298 = vrot.slane %v2208, 6
  %v2299 = vrot.slane %v2210, 6
  %v2302 = vadd.f32 %v1557, %v2298
  %v2303 = vadd.f32 %v1558, %v2299
  %v2304 = vsub.f32 0.0, %v2302
  %v2305 = vsub.f32 0.0, %v2303
  %v2306 = vmul.f32 %v2304, 1.442695
  %v2307 = vpow.pop %v2306
  %v2308 = vmul.f32 %v2305, 1.442695
  %v2309 = vpow.pop %v2308
  %v2310 = vadd.f32 %v2307, 1.0
  %v2311 = vadd.f32 %v2309, 1.0
  %v2312 = vrcp.pop %v2310
  %v2313 = vmul.f32 1.0, %v2312
  %v2314 = vrcp.pop %v2311
  %v2315 = vmul.f32 1.0, %v2314
  %v2318 = vrot.slane %v2249, 6
  %v2319 = vrot.slane %v2251, 6
  %v2322 = vadd.f32 %v1559, %v2318
  %v2323 = vadd.f32 %v1560, %v2319
  %v2324 = vsub.f32 0.0, %v2322
  %v2325 = vsub.f32 0.0, %v2323
  %v2326 = vmul.f32 %v2324, 1.442695
  %v2327 = vpow.pop %v2326
  %v2328 = vmul.f32 %v2325, 1.442695
  %v2329 = vpow.pop %v2328
  %v2330 = vadd.f32 %v2327, 1.0
  %v2331 = vadd.f32 %v2329, 1.0
  %v2332 = vrcp.pop %v2330
  %v2333 = vmul.f32 1.0, %v2332
  %v2334 = vrcp.pop %v2331
  %v2335 = vmul.f32 1.0, %v2334
  %v2338 = vrot.slane %v2290, 6
  %v2339 = vrot.slane %v2292, 6
  %v2342 = vmul.f32 %v2313, %v2338
  %v2343 = vmul.f32 %v2315, %v2339
  %v2344 = vadd.f32 %v1561, %v2342
  %v2345 = vadd.f32 %v1562, %v2343
  %v2346 = vtanh.pop %v2344
  %v2347 = vtanh.pop %v2345
  %v2348 = vsub.f32 1.0, %v2333
  %v2349 = vsub.f32 1.0, %v2335
  %v2350 = vmul.f32 %v2348, %v2346
  %v2351 = vmul.f32 %v2349, %v2347
  %v2354 = vrot.slane %v1553, 6
  %v2355 = vrot.slane %v1554, 6
  %v2358 = vmul.f32 %v2333, %v2354
  %v2359 = vmul.f32 %v2335, %v2355
  %v2360 = vadd.f32 %v2350, %v2358
  %v2361 = vadd.f32 %v2351, %v2359
  %2362 = vst [vmem:[#allocation3] sm:$0xc] %v2360
  %2363 = vst [vmem:[#allocation3 + $0x8] sm:$0xc] %v2361
  %v2364 = vld [vmem:[#allocation2] sm:$0x30]
  %v2365 = vld [vmem:[#allocation2 + $0x8] sm:$0x30]
  %v2366 = vld [vmem:[#allocation2 + $0x10] sm:$0x30]
  %v2367 = vld [vmem:[#allocation2 + $0x18] sm:$0x30]
  %v2368 = vld [vmem:[#allocation2 + $0x20] sm:$0x30]
  %v2369 = vld [vmem:[#allocation2 + $0x28] sm:$0x30]
  %v2370 = vpack.c.bf16 %v2360, %v2360
  %v2371 = vpack.c.bf16 %v2361, %v2361
  %v2372 = vld [vmem:[%s2] sm:$0xff]
  %v2373 = vld [vmem:[%s2 + $0x8] sm:$0xff]
  %v2374 = vld [vmem:[%s2 + $0x10] sm:$0xff]
  %v2375 = vld [vmem:[%s2 + $0x18] sm:$0xff]
  %v2376 = vld [vmem:[%s2 + $0x20] sm:$0xff]
  %v2377 = vld [vmem:[%s2 + $0x28] sm:$0xff]
  %v2378 = vld [vmem:[%s2 + $0x30] sm:$0xff]
  %v2379 = vld [vmem:[%s2 + $0x38] sm:$0xff]
  %v2380 = vld [vmem:[%s2 + $0x40] sm:$0xff]
  %v2381 = vld [vmem:[%s2 + $0x48] sm:$0xff]
  %v2382 = vld [vmem:[%s2 + $0x50] sm:$0xff]
  %v2383 = vld [vmem:[%s2 + $0x58] sm:$0xff]
  %v2384 = vld [vmem:[%s2 + $0x60] sm:$0xff]
  %v2385 = vld [vmem:[%s2 + $0x68] sm:$0xff]
  %v2386 = vld [vmem:[%s2 + $0x70] sm:$0xff]
  %v2387 = vld [vmem:[%s2 + $0x78] sm:$0xff]
  %v2388 = vld [vmem:[%s2 + $0x80] sm:$0xff]
  %v2389 = vld [vmem:[%s2 + $0x88] sm:$0xff]
  %v2390 = vld [vmem:[%s2 + $0x90] sm:$0xff]
  %v2391 = vld [vmem:[%s2 + $0x98] sm:$0xff]
  %v2392 = vld [vmem:[%s2 + $0xa0] sm:$0xff]
  %v2393 = vld [vmem:[%s2 + $0xa8] sm:$0xff]
  %v2394 = vld [vmem:[%s2 + $0xb0] sm:$0xff]
  %v2395 = vld [vmem:[%s2 + $0xb8] sm:$0xff]
  %v2396 = vld [vmem:[%s2 + $0xc0] sm:$0xff]
  %v2397 = vld [vmem:[%s2 + $0xc8] sm:$0xff]
  %v2398 = vld [vmem:[%s2 + $0xd0] sm:$0xff]
  %v2399 = vld [vmem:[%s2 + $0xd8] sm:$0xff]
  %v2400 = vld [vmem:[%s2 + $0xe0] sm:$0xff]
  %v2401 = vld [vmem:[%s2 + $0xe8] sm:$0xff]
  %v2402 = vld [vmem:[%s2 + $0xf0] sm:$0xff]
  %v2403 = vld [vmem:[%s2 + $0xf8] sm:$0xff]
  %v2404 = vld [vmem:[%s2 + $0x100] sm:$0xff]
  %v2405 = vld [vmem:[%s2 + $0x108] sm:$0xff]
  %v2406 = vld [vmem:[%s2 + $0x110] sm:$0xff]
  %v2407 = vld [vmem:[%s2 + $0x118] sm:$0xff]
  %v2408 = vld [vmem:[%s2 + $0x120] sm:$0xff]
  %v2409 = vld [vmem:[%s2 + $0x128] sm:$0xff]
  %v2410 = vld [vmem:[%s2 + $0x130] sm:$0xff]
  %v2411 = vld [vmem:[%s2 + $0x138] sm:$0xff]
  %v2412 = vld [vmem:[%s2 + $0x140] sm:$0xff]
  %v2413 = vld [vmem:[%s2 + $0x148] sm:$0xff]
  %v2414 = vld [vmem:[%s2 + $0x150] sm:$0xff]
  %v2415 = vld [vmem:[%s2 + $0x158] sm:$0xff]
  %v2416 = vld [vmem:[%s2 + $0x160] sm:$0xff]
  %v2417 = vld [vmem:[%s2 + $0x168] sm:$0xff]
  %v2418 = vld [vmem:[%s2 + $0x170] sm:$0xff]
  %v2419 = vld [vmem:[%s2 + $0x178] sm:$0xff]
  %v2420 = vld [vmem:[%s2 + $0x180] sm:$0xff]
  %v2421 = vld [vmem:[%s2 + $0x188] sm:$0xff]
  %v2422 = vld [vmem:[%s2 + $0x190] sm:$0xff]
  %v2423 = vld [vmem:[%s2 + $0x198] sm:$0xff]
  %v2424 = vld [vmem:[%s2 + $0x1a0] sm:$0xff]
  %v2425 = vld [vmem:[%s2 + $0x1a8] sm:$0xff]
  %v2426 = vld [vmem:[%s2 + $0x1b0] sm:$0xff]
  %v2427 = vld [vmem:[%s2 + $0x1b8] sm:$0xff]
  %v2428 = vld [vmem:[%s2 + $0x1c0] sm:$0xff]
  %v2429 = vld [vmem:[%s2 + $0x1c8] sm:$0xff]
  %v2430 = vld [vmem:[%s2 + $0x1d0] sm:$0xff]
  %v2431 = vld [vmem:[%s2 + $0x1d8] sm:$0xff]
  %v2432 = vld [vmem:[%s2 + $0x1e0] sm:$0xff]
  %v2433 = vld [vmem:[%s2 + $0x1e8] sm:$0xff]
  %v2434 = vld [vmem:[%s2 + $0x1f0] sm:$0xff]
  %v2435 = vld [vmem:[%s2 + $0x1f8] sm:$0xff]
  %v2436 = vld [vmem:[%s2 + $0x200] sm:$0xff]
  %v2437 = vld [vmem:[%s2 + $0x208] sm:$0xff]
  %v2438 = vld [vmem:[%s2 + $0x210] sm:$0xff]
  %v2439 = vld [vmem:[%s2 + $0x218] sm:$0xff]
  %v2440 = vld [vmem:[%s2 + $0x220] sm:$0xff]
  %v2441 = vld [vmem:[%s2 + $0x228] sm:$0xff]
  %v2442 = vld [vmem:[%s2 + $0x230] sm:$0xff]
  %v2443 = vld [vmem:[%s2 + $0x238] sm:$0xff]
  %v2444 = vld [vmem:[%s2 + $0x240] sm:$0xff]
  %v2445 = vld [vmem:[%s2 + $0x248] sm:$0xff]
  %v2446 = vld [vmem:[%s2 + $0x250] sm:$0xff]
  %v2447 = vld [vmem:[%s2 + $0x258] sm:$0xff]
  %v2448 = vld [vmem:[%s2 + $0x260] sm:$0xff]
  %v2449 = vld [vmem:[%s2 + $0x268] sm:$0xff]
  %v2450 = vld [vmem:[%s2 + $0x270] sm:$0xff]
  %v2451 = vld [vmem:[%s2 + $0x278] sm:$0xff]
  %v2452 = vld [vmem:[%s2 + $0x280] sm:$0xff]
  %v2453 = vld [vmem:[%s2 + $0x288] sm:$0xff]
  %v2454 = vld [vmem:[%s2 + $0x290] sm:$0xff]
  %v2455 = vld [vmem:[%s2 + $0x298] sm:$0xff]
  %v2456 = vld [vmem:[%s2 + $0x2a0] sm:$0xff]
  %v2457 = vld [vmem:[%s2 + $0x2a8] sm:$0xff]
  %v2458 = vld [vmem:[%s2 + $0x2b0] sm:$0xff]
  %v2459 = vld [vmem:[%s2 + $0x2b8] sm:$0xff]
  %v2460 = vld [vmem:[%s2 + $0x2c0] sm:$0xff]
  %v2461 = vld [vmem:[%s2 + $0x2c8] sm:$0xff]
  %v2462 = vld [vmem:[%s2 + $0x2d0] sm:$0xff]
  %v2463 = vld [vmem:[%s2 + $0x2d8] sm:$0xff]
  %v2464 = vld [vmem:[%s2 + $0x2e0] sm:$0xff]
  %v2465 = vld [vmem:[%s2 + $0x2e8] sm:$0xff]
  %v2466 = vld [vmem:[%s2 + $0x2f0] sm:$0xff]
  %v2467 = vld [vmem:[%s2 + $0x2f8] sm:$0xff]
  %v2468 = vld [vmem:[%s4] sm:$0x3f]
  %v2470 = vlaneseq
  %v2471 = vshrl.u32 %v2470, 7
  %v2472 = vsub.s32 0, %v2471
  %v2473 = vrot.slane %v2468, %v2472
  %v2474 = vlaneseq
  %v2475 = vshrl.u32 %v2474, 7
  %v2476 = vsub.s32 1, %v2475
  %v2477 = vrot.slane %v2468, %v2476
  %v2478 = vlaneseq
  %v2479 = vshrl.u32 %v2478, 7
  %v2480 = vsub.s32 2, %v2479
  %v2481 = vrot.slane %v2468, %v2480
  %v2482 = vlaneseq
  %v2483 = vshrl.u32 %v2482, 7
  %v2484 = vsub.s32 3, %v2483
  %v2485 = vrot.slane %v2468, %v2484
  %v2486 = vlaneseq
  %v2487 = vshrl.u32 %v2486, 7
  %v2488 = vsub.s32 4, %v2487
  %v2489 = vrot.slane %v2468, %v2488
  %v2490 = vlaneseq
  %v2491 = vshrl.u32 %v2490, 7
  %v2492 = vsub.s32 5, %v2491
  %v2493 = vrot.slane %v2468, %v2492
  %v2502 = vrot.slane %v2370, 1
  %v2503 = vrot.slane %v2371, 1
  %v2602 = vunpack.c.l.b16 %v2372
  %v2603 = vunpack.c.h.b16 %v2372
  %v2604 = vunpack.c.l.b16 %v2373
  %v2605 = vunpack.c.h.b16 %v2373
  %v2606 = vunpack.c.l.b16 %v2374
  %v2607 = vunpack.c.h.b16 %v2374
  %v2608 = vunpack.c.l.b16 %v2375
  %v2609 = vunpack.c.h.b16 %v2375
  %v2610 = vunpack.c.l.b16 %v2376
  %v2611 = vunpack.c.h.b16 %v2376
  %v2612 = vunpack.c.l.b16 %v2377
  %v2613 = vunpack.c.h.b16 %v2377
  %v2614 = vunpack.c.l.b16 %v2378
  %v2615 = vunpack.c.h.b16 %v2378
  %v2616 = vunpack.c.l.b16 %v2379
  %v2617 = vunpack.c.h.b16 %v2379
  %v2618 = vunpack.c.l.b16 %v2380
  %v2619 = vunpack.c.h.b16 %v2380
  %v2620 = vunpack.c.l.b16 %v2381
  %v2621 = vunpack.c.h.b16 %v2381
  %v2622 = vunpack.c.l.b16 %v2382
  %v2623 = vunpack.c.h.b16 %v2382
  %v2624 = vunpack.c.l.b16 %v2383
  %v2625 = vunpack.c.h.b16 %v2383
  %v2626 = vunpack.c.l.b16 %v2384
  %v2627 = vunpack.c.h.b16 %v2384
  %v2628 = vunpack.c.l.b16 %v2385
  %v2629 = vunpack.c.h.b16 %v2385
  %v2630 = vunpack.c.l.b16 %v2386
  %v2631 = vunpack.c.h.b16 %v2386
  %v2632 = vunpack.c.l.b16 %v2387
  %v2633 = vunpack.c.h.b16 %v2387
  %v2634 = vunpack.c.l.b16 %v2388
  %v2635 = vunpack.c.h.b16 %v2388
  %v2636 = vunpack.c.l.b16 %v2389
  %v2637 = vunpack.c.h.b16 %v2389
  %v2638 = vunpack.c.l.b16 %v2390
  %v2639 = vunpack.c.h.b16 %v2390
  %v2640 = vunpack.c.l.b16 %v2391
  %v2641 = vunpack.c.h.b16 %v2391
  %v2642 = vunpack.c.l.b16 %v2392
  %v2643 = vunpack.c.h.b16 %v2392
  %v2644 = vunpack.c.l.b16 %v2393
  %v2645 = vunpack.c.h.b16 %v2393
  %v2646 = vunpack.c.l.b16 %v2394
  %v2647 = vunpack.c.h.b16 %v2394
  %v2648 = vunpack.c.l.b16 %v2395
  %v2649 = vunpack.c.h.b16 %v2395
  %v2650 = vunpack.c.l.b16 %v2396
  %v2651 = vunpack.c.h.b16 %v2396
  %v2652 = vunpack.c.l.b16 %v2397
  %v2653 = vunpack.c.h.b16 %v2397
  %v2654 = vunpack.c.l.b16 %v2398
  %v2655 = vunpack.c.h.b16 %v2398
  %v2656 = vunpack.c.l.b16 %v2399
  %v2657 = vunpack.c.h.b16 %v2399
  %v2658 = vunpack.c.l.b16 %v2400
  %v2659 = vunpack.c.h.b16 %v2400
  %v2660 = vunpack.c.l.b16 %v2401
  %v2661 = vunpack.c.h.b16 %v2401
  %v2662 = vunpack.c.l.b16 %v2402
  %v2663 = vunpack.c.h.b16 %v2402
  %v2664 = vunpack.c.l.b16 %v2403
  %v2665 = vunpack.c.h.b16 %v2403
  %v2666 = vunpack.c.l.b16 %v2404
  %v2667 = vunpack.c.h.b16 %v2404
  %v2668 = vunpack.c.l.b16 %v2405
  %v2669 = vunpack.c.h.b16 %v2405
  %v2670 = vunpack.c.l.b16 %v2406
  %v2671 = vunpack.c.h.b16 %v2406
  %v2672 = vunpack.c.l.b16 %v2407
  %v2673 = vunpack.c.h.b16 %v2407
  %v2674 = vunpack.c.l.b16 %v2408
  %v2675 = vunpack.c.h.b16 %v2408
  %v2676 = vunpack.c.l.b16 %v2409
  %v2677 = vunpack.c.h.b16 %v2409
  %v2678 = vunpack.c.l.b16 %v2410
  %v2679 = vunpack.c.h.b16 %v2410
  %v2680 = vunpack.c.l.b16 %v2411
  %v2681 = vunpack.c.h.b16 %v2411
  %v2682 = vunpack.c.l.b16 %v2412
  %v2683 = vunpack.c.h.b16 %v2412
  %v2684 = vunpack.c.l.b16 %v2413
  %v2685 = vunpack.c.h.b16 %v2413
  %v2686 = vunpack.c.l.b16 %v2414
  %v2687 = vunpack.c.h.b16 %v2414
  %v2688 = vunpack.c.l.b16 %v2415
  %v2689 = vunpack.c.h.b16 %v2415
  %v2690 = vunpack.c.l.b16 %v2416
  %v2691 = vunpack.c.h.b16 %v2416
  %v2692 = vunpack.c.l.b16 %v2417
  %v2693 = vunpack.c.h.b16 %v2417
  %v2694 = vunpack.c.l.b16 %v2418
  %v2695 = vunpack.c.h.b16 %v2418
  %v2696 = vunpack.c.l.b16 %v2419
  %v2697 = vunpack.c.h.b16 %v2419
  %v2698 = vunpack.c.l.b16 %v2420
  %v2699 = vunpack.c.h.b16 %v2420
  %v2700 = vunpack.c.l.b16 %v2421
  %v2701 = vunpack.c.h.b16 %v2421
  %v2702 = vunpack.c.l.b16 %v2422
  %v2703 = vunpack.c.h.b16 %v2422
  %v2704 = vunpack.c.l.b16 %v2423
  %v2705 = vunpack.c.h.b16 %v2423
  %v2706 = vunpack.c.l.b16 %v2424
  %v2707 = vunpack.c.h.b16 %v2424
  %v2708 = vunpack.c.l.b16 %v2425
  %v2709 = vunpack.c.h.b16 %v2425
  %v2710 = vunpack.c.l.b16 %v2426
  %v2711 = vunpack.c.h.b16 %v2426
  %v2712 = vunpack.c.l.b16 %v2427
  %v2713 = vunpack.c.h.b16 %v2427
  %v2714 = vunpack.c.l.b16 %v2428
  %v2715 = vunpack.c.h.b16 %v2428
  %v2716 = vunpack.c.l.b16 %v2429
  %v2717 = vunpack.c.h.b16 %v2429
  %v2718 = vunpack.c.l.b16 %v2430
  %v2719 = vunpack.c.h.b16 %v2430
  %v2720 = vunpack.c.l.b16 %v2431
  %v2721 = vunpack.c.h.b16 %v2431
  %v2722 = vunpack.c.l.b16 %v2432
  %v2723 = vunpack.c.h.b16 %v2432
  %v2724 = vunpack.c.l.b16 %v2433
  %v2725 = vunpack.c.h.b16 %v2433
  %v2726 = vunpack.c.l.b16 %v2434
  %v2727 = vunpack.c.h.b16 %v2434
  %v2728 = vunpack.c.l.b16 %v2435
  %v2729 = vunpack.c.h.b16 %v2435
  %v2730 = vunpack.c.l.b16 %v2436
  %v2731 = vunpack.c.h.b16 %v2436
  %v2732 = vunpack.c.l.b16 %v2437
  %v2733 = vunpack.c.h.b16 %v2437
  %v2734 = vunpack.c.l.b16 %v2438
  %v2735 = vunpack.c.h.b16 %v2438
  %v2736 = vunpack.c.l.b16 %v2439
  %v2737 = vunpack.c.h.b16 %v2439
  %v2738 = vunpack.c.l.b16 %v2440
  %v2739 = vunpack.c.h.b16 %v2440
  %v2740 = vunpack.c.l.b16 %v2441
  %v2741 = vunpack.c.h.b16 %v2441
  %v2742 = vunpack.c.l.b16 %v2442
  %v2743 = vunpack.c.h.b16 %v2442
  %v2744 = vunpack.c.l.b16 %v2443
  %v2745 = vunpack.c.h.b16 %v2443
  %v2746 = vunpack.c.l.b16 %v2444
  %v2747 = vunpack.c.h.b16 %v2444
  %v2748 = vunpack.c.l.b16 %v2445
  %v2749 = vunpack.c.h.b16 %v2445
  %v2750 = vunpack.c.l.b16 %v2446
  %v2751 = vunpack.c.h.b16 %v2446
  %v2752 = vunpack.c.l.b16 %v2447
  %v2753 = vunpack.c.h.b16 %v2447
  %v2754 = vunpack.c.l.b16 %v2448
  %v2755 = vunpack.c.h.b16 %v2448
  %v2756 = vunpack.c.l.b16 %v2449
  %v2757 = vunpack.c.h.b16 %v2449
  %v2758 = vunpack.c.l.b16 %v2450
  %v2759 = vunpack.c.h.b16 %v2450
  %v2760 = vunpack.c.l.b16 %v2451
  %v2761 = vunpack.c.h.b16 %v2451
  %v2762 = vunpack.c.l.b16 %v2452
  %v2763 = vunpack.c.h.b16 %v2452
  %v2764 = vunpack.c.l.b16 %v2453
  %v2765 = vunpack.c.h.b16 %v2453
  %v2766 = vunpack.c.l.b16 %v2454
  %v2767 = vunpack.c.h.b16 %v2454
  %v2768 = vunpack.c.l.b16 %v2455
  %v2769 = vunpack.c.h.b16 %v2455
  %v2770 = vunpack.c.l.b16 %v2456
  %v2771 = vunpack.c.h.b16 %v2456
  %v2772 = vunpack.c.l.b16 %v2457
  %v2773 = vunpack.c.h.b16 %v2457
  %v2774 = vunpack.c.l.b16 %v2458
  %v2775 = vunpack.c.h.b16 %v2458
  %v2776 = vunpack.c.l.b16 %v2459
  %v2777 = vunpack.c.h.b16 %v2459
  %v2778 = vunpack.c.l.b16 %v2460
  %v2779 = vunpack.c.h.b16 %v2460
  %v2780 = vunpack.c.l.b16 %v2461
  %v2781 = vunpack.c.h.b16 %v2461
  %v2782 = vunpack.c.l.b16 %v2462
  %v2783 = vunpack.c.h.b16 %v2462
  %v2784 = vunpack.c.l.b16 %v2463
  %v2785 = vunpack.c.h.b16 %v2463
  %v2786 = vunpack.c.l.b16 %v2464
  %v2787 = vunpack.c.h.b16 %v2464
  %v2788 = vunpack.c.l.b16 %v2465
  %v2789 = vunpack.c.h.b16 %v2465
  %v2790 = vunpack.c.l.b16 %v2466
  %v2791 = vunpack.c.h.b16 %v2466
  %v2792 = vunpack.c.l.b16 %v2467
  %v2793 = vunpack.c.h.b16 %v2467
  %v2794 = vpack.c.b16 %v2608, %v2602
  %v2795 = vpack.c.b16 %v2609, %v2603
  %v2796 = vpack.c.b16 %v2610, %v2604
  %v2797 = vpack.c.b16 %v2611, %v2605
  %v2798 = vpack.c.b16 %v2612, %v2606
  %v2799 = vpack.c.b16 %v2613, %v2607
  %v2800 = vpack.c.b16 %v2620, %v2614
  %v2801 = vpack.c.b16 %v2621, %v2615
  %v2802 = vpack.c.b16 %v2622, %v2616
  %v2803 = vpack.c.b16 %v2623, %v2617
  %v2804 = vpack.c.b16 %v2624, %v2618
  %v2805 = vpack.c.b16 %v2625, %v2619
  %v2806 = vpack.c.b16 %v2632, %v2626
  %v2807 = vpack.c.b16 %v2633, %v2627
  %v2808 = vpack.c.b16 %v2634, %v2628
  %v2809 = vpack.c.b16 %v2635, %v2629
  %v2810 = vpack.c.b16 %v2636, %v2630
  %v2811 = vpack.c.b16 %v2637, %v2631
  %v2812 = vpack.c.b16 %v2644, %v2638
  %v2813 = vpack.c.b16 %v2645, %v2639
  %v2814 = vpack.c.b16 %v2646, %v2640
  %v2815 = vpack.c.b16 %v2647, %v2641
  %v2816 = vpack.c.b16 %v2648, %v2642
  %v2817 = vpack.c.b16 %v2649, %v2643
  %v2818 = vpack.c.b16 %v2656, %v2650
  %v2819 = vpack.c.b16 %v2657, %v2651
  %v2820 = vpack.c.b16 %v2658, %v2652
  %v2821 = vpack.c.b16 %v2659, %v2653
  %v2822 = vpack.c.b16 %v2660, %v2654
  %v2823 = vpack.c.b16 %v2661, %v2655
  %v2824 = vpack.c.b16 %v2668, %v2662
  %v2825 = vpack.c.b16 %v2669, %v2663
  %v2826 = vpack.c.b16 %v2670, %v2664
  %v2827 = vpack.c.b16 %v2671, %v2665
  %v2828 = vpack.c.b16 %v2672, %v2666
  %v2829 = vpack.c.b16 %v2673, %v2667
  %v2830 = vpack.c.b16 %v2680, %v2674
  %v2831 = vpack.c.b16 %v2681, %v2675
  %v2832 = vpack.c.b16 %v2682, %v2676
  %v2833 = vpack.c.b16 %v2683, %v2677
  %v2834 = vpack.c.b16 %v2684, %v2678
  %v2835 = vpack.c.b16 %v2685, %v2679
  %v2836 = vpack.c.b16 %v2692, %v2686
  %v2837 = vpack.c.b16 %v2693, %v2687
  %v2838 = vpack.c.b16 %v2694, %v2688
  %v2839 = vpack.c.b16 %v2695, %v2689
  %v2840 = vpack.c.b16 %v2696, %v2690
  %v2841 = vpack.c.b16 %v2697, %v2691
  %v2842 = vpack.c.b16 %v2704, %v2698
  %v2843 = vpack.c.b16 %v2705, %v2699
  %v2844 = vpack.c.b16 %v2706, %v2700
  %v2845 = vpack.c.b16 %v2707, %v2701
  %v2846 = vpack.c.b16 %v2708, %v2702
  %v2847 = vpack.c.b16 %v2709, %v2703
  %v2848 = vpack.c.b16 %v2716, %v2710
  %v2849 = vpack.c.b16 %v2717, %v2711
  %v2850 = vpack.c.b16 %v2718, %v2712
  %v2851 = vpack.c.b16 %v2719, %v2713
  %v2852 = vpack.c.b16 %v2720, %v2714
  %v2853 = vpack.c.b16 %v2721, %v2715
  %v2854 = vpack.c.b16 %v2728, %v2722
  %v2855 = vpack.c.b16 %v2729, %v2723
  %v2856 = vpack.c.b16 %v2730, %v2724
  %v2857 = vpack.c.b16 %v2731, %v2725
  %v2858 = vpack.c.b16 %v2732, %v2726
  %v2859 = vpack.c.b16 %v2733, %v2727
  %v2860 = vpack.c.b16 %v2740, %v2734
  %v2861 = vpack.c.b16 %v2741, %v2735
  %v2862 = vpack.c.b16 %v2742, %v2736
  %v2863 = vpack.c.b16 %v2743, %v2737
  %v2864 = vpack.c.b16 %v2744, %v2738
  %v2865 = vpack.c.b16 %v2745, %v2739
  %v2866 = vpack.c.b16 %v2752, %v2746
  %v2867 = vpack.c.b16 %v2753, %v2747
  %v2868 = vpack.c.b16 %v2754, %v2748
  %v2869 = vpack.c.b16 %v2755, %v2749
  %v2870 = vpack.c.b16 %v2756, %v2750
  %v2871 = vpack.c.b16 %v2757, %v2751
  %v2872 = vpack.c.b16 %v2764, %v2758
  %v2873 = vpack.c.b16 %v2765, %v2759
  %v2874 = vpack.c.b16 %v2766, %v2760
  %v2875 = vpack.c.b16 %v2767, %v2761
  %v2876 = vpack.c.b16 %v2768, %v2762
  %v2877 = vpack.c.b16 %v2769, %v2763
  %v2878 = vpack.c.b16 %v2776, %v2770
  %v2879 = vpack.c.b16 %v2777, %v2771
  %v2880 = vpack.c.b16 %v2778, %v2772
  %v2881 = vpack.c.b16 %v2779, %v2773
  %v2882 = vpack.c.b16 %v2780, %v2774
  %v2883 = vpack.c.b16 %v2781, %v2775
  %v2884 = vpack.c.b16 %v2788, %v2782
  %v2885 = vpack.c.b16 %v2789, %v2783
  %v2886 = vpack.c.b16 %v2790, %v2784
  %v2887 = vpack.c.b16 %v2791, %v2785
  %v2888 = vpack.c.b16 %v2792, %v2786
  %v2889 = vpack.c.b16 %v2793, %v2787
  %2986 = vmatprep.subr.bf16.mxu0 %v2795
  %2987 = vmatpush1.bf16.msra.mxu0 %v2794
  %2988 = vmatprep.subr.bf16.mxu0 %v2801
  %2989 = vmatpush1.bf16.msra.mxu0 %v2800
  %2990 = vmatprep.subr.bf16.mxu0 %v2807
  %2991 = vmatpush1.bf16.msra.mxu0 %v2806
  %2992 = vmatprep.subr.bf16.mxu0 %v2813
  %2993 = vmatpush1.bf16.msra.mxu0 %v2812
  %2994 = vmatprep.subr.bf16.mxu0 %v2819
  %2995 = vmatpush1.bf16.msra.mxu0 %v2818
  %2996 = vmatprep.subr.bf16.mxu0 %v2825
  %2997 = vmatpush1.bf16.msra.mxu0 %v2824
  %2998 = vmatprep.subr.bf16.mxu0 %v2831
  %2999 = vmatpush1.bf16.msra.mxu0 %v2830
  %3000 = vmatprep.subr.bf16.mxu0 %v2837
  %3001 = vmatpush1.bf16.msra.mxu0 %v2836
  %3002 = vmatprep.subr.bf16.mxu0 %v2843
  %3003 = vmatpush1.bf16.msra.mxu0 %v2842
  %3004 = vmatprep.subr.bf16.mxu0 %v2849
  %3005 = vmatpush1.bf16.msra.mxu0 %v2848
  %3006 = vmatprep.subr.bf16.mxu0 %v2855
  %3007 = vmatpush1.bf16.msra.mxu0 %v2854
  %3008 = vmatprep.subr.bf16.mxu0 %v2861
  %3009 = vmatpush1.bf16.msra.mxu0 %v2860
  %3010 = vmatprep.subr.bf16.mxu0 %v2867
  %3011 = vmatpush1.bf16.msra.mxu0 %v2866
  %3012 = vmatprep.subr.bf16.mxu0 %v2873
  %3013 = vmatpush1.bf16.msra.mxu0 %v2872
  %3014 = vmatprep.subr.bf16.mxu0 %v2879
  %3015 = vmatpush1.bf16.msra.mxu0 %v2878
  %3016 = vmatprep.subr.bf16.mxu0 %v2885
  %3017 = vmatpush1.bf16.msra.mxu0 %v2884
  %3018 = vmatprep.mubr.bf16.mxu0 %v2503
  %3019 = vmatmul.mubr.bf16.gmra.mrb[0].mxu0 %v2502
  %v3020 = vpop.f32.mrb[0].mxu0
  %v3021 = vadd.f32 %v2473, %v3020
  %v3022 = vpop.f32.mrb[0].mxu0
  %v3023 = vadd.f32 %v2477, %v3022
  %v3024 = vpop.f32.mrb[0].mxu0
  %v3025 = vpop.f32.mrb[0].mxu0
  %3026 = vdwg.mxu0
  %3027 = vmatprep.subr.bf16.mxu0 %v2797
  %3028 = vmatpush1.bf16.msra.mxu0 %v2796
  %3029 = vmatprep.subr.bf16.mxu0 %v2803
  %3030 = vmatpush1.bf16.msra.mxu0 %v2802
  %3031 = vmatprep.subr.bf16.mxu0 %v2809
  %3032 = vmatpush1.bf16.msra.mxu0 %v2808
  %3033 = vmatprep.subr.bf16.mxu0 %v2815
  %3034 = vmatpush1.bf16.msra.mxu0 %v2814
  %3035 = vmatprep.subr.bf16.mxu0 %v2821
  %3036 = vmatpush1.bf16.msra.mxu0 %v2820
  %3037 = vmatprep.subr.bf16.mxu0 %v2827
  %3038 = vmatpush1.bf16.msra.mxu0 %v2826
  %3039 = vmatprep.subr.bf16.mxu0 %v2833
  %3040 = vmatpush1.bf16.msra.mxu0 %v2832
  %3041 = vmatprep.subr.bf16.mxu0 %v2839
  %3042 = vmatpush1.bf16.msra.mxu0 %v2838
  %3043 = vmatprep.subr.bf16.mxu0 %v2845
  %3044 = vmatpush1.bf16.msra.mxu0 %v2844
  %3045 = vmatprep.subr.bf16.mxu0 %v2851
  %3046 = vmatpush1.bf16.msra.mxu0 %v2850
  %3047 = vmatprep.subr.bf16.mxu0 %v2857
  %3048 = vmatpush1.bf16.msra.mxu0 %v2856
  %3049 = vmatprep.subr.bf16.mxu0 %v2863
  %3050 = vmatpush1.bf16.msra.mxu0 %v2862
  %3051 = vmatprep.subr.bf16.mxu0 %v2869
  %3052 = vmatpush1.bf16.msra.mxu0 %v2868
  %3053 = vmatprep.subr.bf16.mxu0 %v2875
  %3054 = vmatpush1.bf16.msra.mxu0 %v2874
  %3055 = vmatprep.subr.bf16.mxu0 %v2881
  %3056 = vmatpush1.bf16.msra.mxu0 %v2880
  %3057 = vmatprep.subr.bf16.mxu0 %v2887
  %3058 = vmatpush1.bf16.msra.mxu0 %v2886
  %3059 = vmatprep.mubr.bf16.mxu0 %v2503
  %3060 = vmatmul.mubr.bf16.gmra.mrb[0].mxu0 %v2502
  %v3061 = vpop.f32.mrb[0].mxu0
  %v3062 = vadd.f32 %v2481, %v3061
  %v3063 = vpop.f32.mrb[0].mxu0
  %v3064 = vadd.f32 %v2485, %v3063
  %v3065 = vpop.f32.mrb[0].mxu0
  %v3066 = vpop.f32.mrb[0].mxu0
  %3067 = vdwg.mxu0
  %3068 = vmatprep.subr.bf16.mxu0 %v2799
  %3069 = vmatpush1.bf16.msra.mxu0 %v2798
  %3070 = vmatprep.subr.bf16.mxu0 %v2805
  %3071 = vmatpush1.bf16.msra.mxu0 %v2804
  %3072 = vmatprep.subr.bf16.mxu0 %v2811
  %3073 = vmatpush1.bf16.msra.mxu0 %v2810
  %3074 = vmatprep.subr.bf16.mxu0 %v2817
  %3075 = vmatpush1.bf16.msra.mxu0 %v2816
  %3076 = vmatprep.subr.bf16.mxu0 %v2823
  %3077 = vmatpush1.bf16.msra.mxu0 %v2822
  %3078 = vmatprep.subr.bf16.mxu0 %v2829
  %3079 = vmatpush1.bf16.msra.mxu0 %v2828
  %3080 = vmatprep.subr.bf16.mxu0 %v2835
  %3081 = vmatpush1.bf16.msra.mxu0 %v2834
  %3082 = vmatprep.subr.bf16.mxu0 %v2841
  %3083 = vmatpush1.bf16.msra.mxu0 %v2840
  %3084 = vmatprep.subr.bf16.mxu0 %v2847
  %3085 = vmatpush1.bf16.msra.mxu0 %v2846
  %3086 = vmatprep.subr.bf16.mxu0 %v2853
  %3087 = vmatpush1.bf16.msra.mxu0 %v2852
  %3088 = vmatprep.subr.bf16.mxu0 %v2859
  %3089 = vmatpush1.bf16.msra.mxu0 %v2858
  %3090 = vmatprep.subr.bf16.mxu0 %v2865
  %3091 = vmatpush1.bf16.msra.mxu0 %v2864
  %3092 = vmatprep.subr.bf16.mxu0 %v2871
  %3093 = vmatpush1.bf16.msra.mxu0 %v2870
  %3094 = vmatprep.subr.bf16.mxu0 %v2877
  %3095 = vmatpush1.bf16.msra.mxu0 %v2876
  %3096 = vmatprep.subr.bf16.mxu0 %v2883
  %3097 = vmatpush1.bf16.msra.mxu0 %v2882
  %3098 = vmatprep.subr.bf16.mxu0 %v2889
  %3099 = vmatpush1.bf16.msra.mxu0 %v2888
  %3100 = vmatprep.mubr.bf16.mxu0 %v2503
  %3101 = vmatmul.mubr.bf16.gmra.mrb[0].mxu0 %v2502
  %v3102 = vpop.f32.mrb[0].mxu0
  %v3103 = vadd.f32 %v2489, %v3102
  %v3104 = vpop.f32.mrb[0].mxu0
  %v3105 = vadd.f32 %v2493, %v3104
  %v3106 = vpop.f32.mrb[0].mxu0
  %v3107 = vpop.f32.mrb[0].mxu0
  %3108 = vdwg.mxu0
  %v3111 = vrot.slane %v3021, 4
  %v3112 = vrot.slane %v3023, 4
  %v3115 = vadd.f32 %v2364, %v3111
  %v3116 = vadd.f32 %v2365, %v3112
  %v3117 = vsub.f32 0.0, %v3115
  %v3118 = vsub.f32 0.0, %v3116
  %v3119 = vmul.f32 %v3117, 1.442695
  %v3120 = vpow.pop %v3119
  %v3121 = vmul.f32 %v3118, 1.442695
  %v3122 = vpow.pop %v3121
  %v3123 = vadd.f32 %v3120, 1.0
  %v3124 = vadd.f32 %v3122, 1.0
  %v3125 = vrcp.pop %v3123
  %v3126 = vmul.f32 1.0, %v3125
  %v3127 = vrcp.pop %v3124
  %v3128 = vmul.f32 1.0, %v3127
  %v3131 = vrot.slane %v3062, 4
  %v3132 = vrot.slane %v3064, 4
  %v3135 = vadd.f32 %v2366, %v3131
  %v3136 = vadd.f32 %v2367, %v3132
  %v3137 = vsub.f32 0.0, %v3135
  %v3138 = vsub.f32 0.0, %v3136
  %v3139 = vmul.f32 %v3137, 1.442695
  %v3140 = vpow.pop %v3139
  %v3141 = vmul.f32 %v3138, 1.442695
  %v3142 = vpow.pop %v3141
  %v3143 = vadd.f32 %v3140, 1.0
  %v3144 = vadd.f32 %v3142, 1.0
  %v3145 = vrcp.pop %v3143
  %v3146 = vmul.f32 1.0, %v3145
  %v3147 = vrcp.pop %v3144
  %v3148 = vmul.f32 1.0, %v3147
  %v3151 = vrot.slane %v3103, 4
  %v3152 = vrot.slane %v3105, 4
  %v3155 = vmul.f32 %v3126, %v3151
  %v3156 = vmul.f32 %v3128, %v3152
  %v3157 = vadd.f32 %v2368, %v3155
  %v3158 = vadd.f32 %v2369, %v3156
  %v3159 = vtanh.pop %v3157
  %v3160 = vtanh.pop %v3158
  %v3161 = vsub.f32 1.0, %v3146
  %v3162 = vsub.f32 1.0, %v3148
  %v3163 = vmul.f32 %v3161, %v3159
  %v3164 = vmul.f32 %v3162, %v3160
  %v3167 = vrot.slane %v2360, 6
  %v3168 = vrot.slane %v2361, 6
  %v3171 = vmul.f32 %v3146, %v3167
  %v3172 = vmul.f32 %v3148, %v3168
  %v3173 = vadd.f32 %v3163, %v3171
  %v3174 = vadd.f32 %v3164, %v3172
  %3175 = vst [vmem:[#allocation3] sm:$0x30] %v3173
  %3176 = vst [vmem:[#allocation3 + $0x8] sm:$0x30] %v3174
  %v3177 = vld [vmem:[#allocation2] sm:$0xc0]
  %v3178 = vld [vmem:[#allocation2 + $0x8] sm:$0xc0]
  %v3179 = vld [vmem:[#allocation2 + $0x10] sm:$0xc0]
  %v3180 = vld [vmem:[#allocation2 + $0x18] sm:$0xc0]
  %v3181 = vld [vmem:[#allocation2 + $0x20] sm:$0xc0]
  %v3182 = vld [vmem:[#allocation2 + $0x28] sm:$0xc0]
  %v3183 = vpack.c.bf16 %v3173, %v3173
  %v3184 = vpack.c.bf16 %v3174, %v3174
  %v3185 = vld [vmem:[%s2] sm:$0xff]
  %v3186 = vld [vmem:[%s2 + $0x8] sm:$0xff]
  %v3187 = vld [vmem:[%s2 + $0x10] sm:$0xff]
  %v3188 = vld [vmem:[%s2 + $0x18] sm:$0xff]
  %v3189 = vld [vmem:[%s2 + $0x20] sm:$0xff]
  %v3190 = vld [vmem:[%s2 + $0x28] sm:$0xff]
  %v3191 = vld [vmem:[%s2 + $0x30] sm:$0xff]
  %v3192 = vld [vmem:[%s2 + $0x38] sm:$0xff]
  %v3193 = vld [vmem:[%s2 + $0x40] sm:$0xff]
  %v3194 = vld [vmem:[%s2 + $0x48] sm:$0xff]
  %v3195 = vld [vmem:[%s2 + $0x50] sm:$0xff]
  %v3196 = vld [vmem:[%s2 + $0x58] sm:$0xff]
  %v3197 = vld [vmem:[%s2 + $0x60] sm:$0xff]
  %v3198 = vld [vmem:[%s2 + $0x68] sm:$0xff]
  %v3199 = vld [vmem:[%s2 + $0x70] sm:$0xff]
  %v3200 = vld [vmem:[%s2 + $0x78] sm:$0xff]
  %v3201 = vld [vmem:[%s2 + $0x80] sm:$0xff]
  %v3202 = vld [vmem:[%s2 + $0x88] sm:$0xff]
  %v3203 = vld [vmem:[%s2 + $0x90] sm:$0xff]
  %v3204 = vld [vmem:[%s2 + $0x98] sm:$0xff]
  %v3205 = vld [vmem:[%s2 + $0xa0] sm:$0xff]
  %v3206 = vld [vmem:[%s2 + $0xa8] sm:$0xff]
  %v3207 = vld [vmem:[%s2 + $0xb0] sm:$0xff]
  %v3208 = vld [vmem:[%s2 + $0xb8] sm:$0xff]
  %v3209 = vld [vmem:[%s2 + $0xc0] sm:$0xff]
  %v3210 = vld [vmem:[%s2 + $0xc8] sm:$0xff]
  %v3211 = vld [vmem:[%s2 + $0xd0] sm:$0xff]
  %v3212 = vld [vmem:[%s2 + $0xd8] sm:$0xff]
  %v3213 = vld [vmem:[%s2 + $0xe0] sm:$0xff]
  %v3214 = vld [vmem:[%s2 + $0xe8] sm:$0xff]
  %v3215 = vld [vmem:[%s2 + $0xf0] sm:$0xff]
  %v3216 = vld [vmem:[%s2 + $0xf8] sm:$0xff]
  %v3217 = vld [vmem:[%s2 + $0x100] sm:$0xff]
  %v3218 = vld [vmem:[%s2 + $0x108] sm:$0xff]
  %v3219 = vld [vmem:[%s2 + $0x110] sm:$0xff]
  %v3220 = vld [vmem:[%s2 + $0x118] sm:$0xff]
  %v3221 = vld [vmem:[%s2 + $0x120] sm:$0xff]
  %v3222 = vld [vmem:[%s2 + $0x128] sm:$0xff]
  %v3223 = vld [vmem:[%s2 + $0x130] sm:$0xff]
  %v3224 = vld [vmem:[%s2 + $0x138] sm:$0xff]
  %v3225 = vld [vmem:[%s2 + $0x140] sm:$0xff]
  %v3226 = vld [vmem:[%s2 + $0x148] sm:$0xff]
  %v3227 = vld [vmem:[%s2 + $0x150] sm:$0xff]
  %v3228 = vld [vmem:[%s2 + $0x158] sm:$0xff]
  %v3229 = vld [vmem:[%s2 + $0x160] sm:$0xff]
  %v3230 = vld [vmem:[%s2 + $0x168] sm:$0xff]
  %v3231 = vld [vmem:[%s2 + $0x170] sm:$0xff]
  %v3232 = vld [vmem:[%s2 + $0x178] sm:$0xff]
  %v3233 = vld [vmem:[%s2 + $0x180] sm:$0xff]
  %v3234 = vld [vmem:[%s2 + $0x188] sm:$0xff]
  %v3235 = vld [vmem:[%s2 + $0x190] sm:$0xff]
  %v3236 = vld [vmem:[%s2 + $0x198] sm:$0xff]
  %v3237 = vld [vmem:[%s2 + $0x1a0] sm:$0xff]
  %v3238 = vld [vmem:[%s2 + $0x1a8] sm:$0xff]
  %v3239 = vld [vmem:[%s2 + $0x1b0] sm:$0xff]
  %v3240 = vld [vmem:[%s2 + $0x1b8] sm:$0xff]
  %v3241 = vld [vmem:[%s2 + $0x1c0] sm:$0xff]
  %v3242 = vld [vmem:[%s2 + $0x1c8] sm:$0xff]
  %v3243 = vld [vmem:[%s2 + $0x1d0] sm:$0xff]
  %v3244 = vld [vmem:[%s2 + $0x1d8] sm:$0xff]
  %v3245 = vld [vmem:[%s2 + $0x1e0] sm:$0xff]
  %v3246 = vld [vmem:[%s2 + $0x1e8] sm:$0xff]
  %v3247 = vld [vmem:[%s2 + $0x1f0] sm:$0xff]
  %v3248 = vld [vmem:[%s2 + $0x1f8] sm:$0xff]
  %v3249 = vld [vmem:[%s2 + $0x200] sm:$0xff]
  %v3250 = vld [vmem:[%s2 + $0x208] sm:$0xff]
  %v3251 = vld [vmem:[%s2 + $0x210] sm:$0xff]
  %v3252 = vld [vmem:[%s2 + $0x218] sm:$0xff]
  %v3253 = vld [vmem:[%s2 + $0x220] sm:$0xff]
  %v3254 = vld [vmem:[%s2 + $0x228] sm:$0xff]
  %v3255 = vld [vmem:[%s2 + $0x230] sm:$0xff]
  %v3256 = vld [vmem:[%s2 + $0x238] sm:$0xff]
  %v3257 = vld [vmem:[%s2 + $0x240] sm:$0xff]
  %v3258 = vld [vmem:[%s2 + $0x248] sm:$0xff]
  %v3259 = vld [vmem:[%s2 + $0x250] sm:$0xff]
  %v3260 = vld [vmem:[%s2 + $0x258] sm:$0xff]
  %v3261 = vld [vmem:[%s2 + $0x260] sm:$0xff]
  %v3262 = vld [vmem:[%s2 + $0x268] sm:$0xff]
  %v3263 = vld [vmem:[%s2 + $0x270] sm:$0xff]
  %v3264 = vld [vmem:[%s2 + $0x278] sm:$0xff]
  %v3265 = vld [vmem:[%s2 + $0x280] sm:$0xff]
  %v3266 = vld [vmem:[%s2 + $0x288] sm:$0xff]
  %v3267 = vld [vmem:[%s2 + $0x290] sm:$0xff]
  %v3268 = vld [vmem:[%s2 + $0x298] sm:$0xff]
  %v3269 = vld [vmem:[%s2 + $0x2a0] sm:$0xff]
  %v3270 = vld [vmem:[%s2 + $0x2a8] sm:$0xff]
  %v3271 = vld [vmem:[%s2 + $0x2b0] sm:$0xff]
  %v3272 = vld [vmem:[%s2 + $0x2b8] sm:$0xff]
  %v3273 = vld [vmem:[%s2 + $0x2c0] sm:$0xff]
  %v3274 = vld [vmem:[%s2 + $0x2c8] sm:$0xff]
  %v3275 = vld [vmem:[%s2 + $0x2d0] sm:$0xff]
  %v3276 = vld [vmem:[%s2 + $0x2d8] sm:$0xff]
  %v3277 = vld [vmem:[%s2 + $0x2e0] sm:$0xff]
  %v3278 = vld [vmem:[%s2 + $0x2e8] sm:$0xff]
  %v3279 = vld [vmem:[%s2 + $0x2f0] sm:$0xff]
  %v3280 = vld [vmem:[%s2 + $0x2f8] sm:$0xff]
  %v3281 = vld [vmem:[%s4] sm:$0x3f]
  %v3283 = vlaneseq
  %v3284 = vshrl.u32 %v3283, 7
  %v3285 = vsub.s32 0, %v3284
  %v3286 = vrot.slane %v3281, %v3285
  %v3287 = vlaneseq
  %v3288 = vshrl.u32 %v3287, 7
  %v3289 = vsub.s32 1, %v3288
  %v3290 = vrot.slane %v3281, %v3289
  %v3291 = vlaneseq
  %v3292 = vshrl.u32 %v3291, 7
  %v3293 = vsub.s32 2, %v3292
  %v3294 = vrot.slane %v3281, %v3293
  %v3295 = vlaneseq
  %v3296 = vshrl.u32 %v3295, 7
  %v3297 = vsub.s32 3, %v3296
  %v3298 = vrot.slane %v3281, %v3297
  %v3299 = vlaneseq
  %v3300 = vshrl.u32 %v3299, 7
  %v3301 = vsub.s32 4, %v3300
  %v3302 = vrot.slane %v3281, %v3301
  %v3303 = vlaneseq
  %v3304 = vshrl.u32 %v3303, 7
  %v3305 = vsub.s32 5, %v3304
  %v3306 = vrot.slane %v3281, %v3305
  %v3315 = vrot.slane %v3183, 2
  %v3316 = vrot.slane %v3184, 2
  %v3415 = vunpack.c.l.b16 %v3185
  %v3416 = vunpack.c.h.b16 %v3185
  %v3417 = vunpack.c.l.b16 %v3186
  %v3418 = vunpack.c.h.b16 %v3186
  %v3419 = vunpack.c.l.b16 %v3187
  %v3420 = vunpack.c.h.b16 %v3187
  %v3421 = vunpack.c.l.b16 %v3188
  %v3422 = vunpack.c.h.b16 %v3188
  %v3423 = vunpack.c.l.b16 %v3189
  %v3424 = vunpack.c.h.b16 %v3189
  %v3425 = vunpack.c.l.b16 %v3190
  %v3426 = vunpack.c.h.b16 %v3190
  %v3427 = vunpack.c.l.b16 %v3191
  %v3428 = vunpack.c.h.b16 %v3191
  %v3429 = vunpack.c.l.b16 %v3192
  %v3430 = vunpack.c.h.b16 %v3192
  %v3431 = vunpack.c.l.b16 %v3193
  %v3432 = vunpack.c.h.b16 %v3193
  %v3433 = vunpack.c.l.b16 %v3194
  %v3434 = vunpack.c.h.b16 %v3194
  %v3435 = vunpack.c.l.b16 %v3195
  %v3436 = vunpack.c.h.b16 %v3195
  %v3437 = vunpack.c.l.b16 %v3196
  %v3438 = vunpack.c.h.b16 %v3196
  %v3439 = vunpack.c.l.b16 %v3197
  %v3440 = vunpack.c.h.b16 %v3197
  %v3441 = vunpack.c.l.b16 %v3198
  %v3442 = vunpack.c.h.b16 %v3198
  %v3443 = vunpack.c.l.b16 %v3199
  %v3444 = vunpack.c.h.b16 %v3199
  %v3445 = vunpack.c.l.b16 %v3200
  %v3446 = vunpack.c.h.b16 %v3200
  %v3447 = vunpack.c.l.b16 %v3201
  %v3448 = vunpack.c.h.b16 %v3201
  %v3449 = vunpack.c.l.b16 %v3202
  %v3450 = vunpack.c.h.b16 %v3202
  %v3451 = vunpack.c.l.b16 %v3203
  %v3452 = vunpack.c.h.b16 %v3203
  %v3453 = vunpack.c.l.b16 %v3204
  %v3454 = vunpack.c.h.b16 %v3204
  %v3455 = vunpack.c.l.b16 %v3205
  %v3456 = vunpack.c.h.b16 %v3205
  %v3457 = vunpack.c.l.b16 %v3206
  %v3458 = vunpack.c.h.b16 %v3206
  %v3459 = vunpack.c.l.b16 %v3207
  %v3460 = vunpack.c.h.b16 %v3207
  %v3461 = vunpack.c.l.b16 %v3208
  %v3462 = vunpack.c.h.b16 %v3208
  %v3463 = vunpack.c.l.b16 %v3209
  %v3464 = vunpack.c.h.b16 %v3209
  %v3465 = vunpack.c.l.b16 %v3210
  %v3466 = vunpack.c.h.b16 %v3210
  %v3467 = vunpack.c.l.b16 %v3211
  %v3468 = vunpack.c.h.b16 %v3211
  %v3469 = vunpack.c.l.b16 %v3212
  %v3470 = vunpack.c.h.b16 %v3212
  %v3471 = vunpack.c.l.b16 %v3213
  %v3472 = vunpack.c.h.b16 %v3213
  %v3473 = vunpack.c.l.b16 %v3214
  %v3474 = vunpack.c.h.b16 %v3214
  %v3475 = vunpack.c.l.b16 %v3215
  %v3476 = vunpack.c.h.b16 %v3215
  %v3477 = vunpack.c.l.b16 %v3216
  %v3478 = vunpack.c.h.b16 %v3216
  %v3479 = vunpack.c.l.b16 %v3217
  %v3480 = vunpack.c.h.b16 %v3217
  %v3481 = vunpack.c.l.b16 %v3218
  %v3482 = vunpack.c.h.b16 %v3218
  %v3483 = vunpack.c.l.b16 %v3219
  %v3484 = vunpack.c.h.b16 %v3219
  %v3485 = vunpack.c.l.b16 %v3220
  %v3486 = vunpack.c.h.b16 %v3220
  %v3487 = vunpack.c.l.b16 %v3221
  %v3488 = vunpack.c.h.b16 %v3221
  %v3489 = vunpack.c.l.b16 %v3222
  %v3490 = vunpack.c.h.b16 %v3222
  %v3491 = vunpack.c.l.b16 %v3223
  %v3492 = vunpack.c.h.b16 %v3223
  %v3493 = vunpack.c.l.b16 %v3224
  %v3494 = vunpack.c.h.b16 %v3224
  %v3495 = vunpack.c.l.b16 %v3225
  %v3496 = vunpack.c.h.b16 %v3225
  %v3497 = vunpack.c.l.b16 %v3226
  %v3498 = vunpack.c.h.b16 %v3226
  %v3499 = vunpack.c.l.b16 %v3227
  %v3500 = vunpack.c.h.b16 %v3227
  %v3501 = vunpack.c.l.b16 %v3228
  %v3502 = vunpack.c.h.b16 %v3228
  %v3503 = vunpack.c.l.b16 %v3229
  %v3504 = vunpack.c.h.b16 %v3229
  %v3505 = vunpack.c.l.b16 %v3230
  %v3506 = vunpack.c.h.b16 %v3230
  %v3507 = vunpack.c.l.b16 %v3231
  %v3508 = vunpack.c.h.b16 %v3231
  %v3509 = vunpack.c.l.b16 %v3232
  %v3510 = vunpack.c.h.b16 %v3232
  %v3511 = vunpack.c.l.b16 %v3233
  %v3512 = vunpack.c.h.b16 %v3233
  %v3513 = vunpack.c.l.b16 %v3234
  %v3514 = vunpack.c.h.b16 %v3234
  %v3515 = vunpack.c.l.b16 %v3235
  %v3516 = vunpack.c.h.b16 %v3235
  %v3517 = vunpack.c.l.b16 %v3236
  %v3518 = vunpack.c.h.b16 %v3236
  %v3519 = vunpack.c.l.b16 %v3237
  %v3520 = vunpack.c.h.b16 %v3237
  %v3521 = vunpack.c.l.b16 %v3238
  %v3522 = vunpack.c.h.b16 %v3238
  %v3523 = vunpack.c.l.b16 %v3239
  %v3524 = vunpack.c.h.b16 %v3239
  %v3525 = vunpack.c.l.b16 %v3240
  %v3526 = vunpack.c.h.b16 %v3240
  %v3527 = vunpack.c.l.b16 %v3241
  %v3528 = vunpack.c.h.b16 %v3241
  %v3529 = vunpack.c.l.b16 %v3242
  %v3530 = vunpack.c.h.b16 %v3242
  %v3531 = vunpack.c.l.b16 %v3243
  %v3532 = vunpack.c.h.b16 %v3243
  %v3533 = vunpack.c.l.b16 %v3244
  %v3534 = vunpack.c.h.b16 %v3244
  %v3535 = vunpack.c.l.b16 %v3245
  %v3536 = vunpack.c.h.b16 %v3245
  %v3537 = vunpack.c.l.b16 %v3246
  %v3538 = vunpack.c.h.b16 %v3246
  %v3539 = vunpack.c.l.b16 %v3247
  %v3540 = vunpack.c.h.b16 %v3247
  %v3541 = vunpack.c.l.b16 %v3248
  %v3542 = vunpack.c.h.b16 %v3248
  %v3543 = vunpack.c.l.b16 %v3249
  %v3544 = vunpack.c.h.b16 %v3249
  %v3545 = vunpack.c.l.b16 %v3250
  %v3546 = vunpack.c.h.b16 %v3250
  %v3547 = vunpack.c.l.b16 %v3251
  %v3548 = vunpack.c.h.b16 %v3251
  %v3549 = vunpack.c.l.b16 %v3252
  %v3550 = vunpack.c.h.b16 %v3252
  %v3551 = vunpack.c.l.b16 %v3253
  %v3552 = vunpack.c.h.b16 %v3253
  %v3553 = vunpack.c.l.b16 %v3254
  %v3554 = vunpack.c.h.b16 %v3254
  %v3555 = vunpack.c.l.b16 %v3255
  %v3556 = vunpack.c.h.b16 %v3255
  %v3557 = vunpack.c.l.b16 %v3256
  %v3558 = vunpack.c.h.b16 %v3256
  %v3559 = vunpack.c.l.b16 %v3257
  %v3560 = vunpack.c.h.b16 %v3257
  %v3561 = vunpack.c.l.b16 %v3258
  %v3562 = vunpack.c.h.b16 %v3258
  %v3563 = vunpack.c.l.b16 %v3259
  %v3564 = vunpack.c.h.b16 %v3259
  %v3565 = vunpack.c.l.b16 %v3260
  %v3566 = vunpack.c.h.b16 %v3260
  %v3567 = vunpack.c.l.b16 %v3261
  %v3568 = vunpack.c.h.b16 %v3261
  %v3569 = vunpack.c.l.b16 %v3262
  %v3570 = vunpack.c.h.b16 %v3262
  %v3571 = vunpack.c.l.b16 %v3263
  %v3572 = vunpack.c.h.b16 %v3263
  %v3573 = vunpack.c.l.b16 %v3264
  %v3574 = vunpack.c.h.b16 %v3264
  %v3575 = vunpack.c.l.b16 %v3265
  %v3576 = vunpack.c.h.b16 %v3265
  %v3577 = vunpack.c.l.b16 %v3266
  %v3578 = vunpack.c.h.b16 %v3266
  %v3579 = vunpack.c.l.b16 %v3267
  %v3580 = vunpack.c.h.b16 %v3267
  %v3581 = vunpack.c.l.b16 %v3268
  %v3582 = vunpack.c.h.b16 %v3268
  %v3583 = vunpack.c.l.b16 %v3269
  %v3584 = vunpack.c.h.b16 %v3269
  %v3585 = vunpack.c.l.b16 %v3270
  %v3586 = vunpack.c.h.b16 %v3270
  %v3587 = vunpack.c.l.b16 %v3271
  %v3588 = vunpack.c.h.b16 %v3271
  %v3589 = vunpack.c.l.b16 %v3272
  %v3590 = vunpack.c.h.b16 %v3272
  %v3591 = vunpack.c.l.b16 %v3273
  %v3592 = vunpack.c.h.b16 %v3273
  %v3593 = vunpack.c.l.b16 %v3274
  %v3594 = vunpack.c.h.b16 %v3274
  %v3595 = vunpack.c.l.b16 %v3275
  %v3596 = vunpack.c.h.b16 %v3275
  %v3597 = vunpack.c.l.b16 %v3276
  %v3598 = vunpack.c.h.b16 %v3276
  %v3599 = vunpack.c.l.b16 %v3277
  %v3600 = vunpack.c.h.b16 %v3277
  %v3601 = vunpack.c.l.b16 %v3278
  %v3602 = vunpack.c.h.b16 %v3278
  %v3603 = vunpack.c.l.b16 %v3279
  %v3604 = vunpack.c.h.b16 %v3279
  %v3605 = vunpack.c.l.b16 %v3280
  %v3606 = vunpack.c.h.b16 %v3280
  %v3607 = vpack.c.b16 %v3421, %v3415
  %v3608 = vpack.c.b16 %v3422, %v3416
  %v3609 = vpack.c.b16 %v3423, %v3417
  %v3610 = vpack.c.b16 %v3424, %v3418
  %v3611 = vpack.c.b16 %v3425, %v3419
  %v3612 = vpack.c.b16 %v3426, %v3420
  %v3613 = vpack.c.b16 %v3433, %v3427
  %v3614 = vpack.c.b16 %v3434, %v3428
  %v3615 = vpack.c.b16 %v3435, %v3429
  %v3616 = vpack.c.b16 %v3436, %v3430
  %v3617 = vpack.c.b16 %v3437, %v3431
  %v3618 = vpack.c.b16 %v3438, %v3432
  %v3619 = vpack.c.b16 %v3445, %v3439
  %v3620 = vpack.c.b16 %v3446, %v3440
  %v3621 = vpack.c.b16 %v3447, %v3441
  %v3622 = vpack.c.b16 %v3448, %v3442
  %v3623 = vpack.c.b16 %v3449, %v3443
  %v3624 = vpack.c.b16 %v3450, %v3444
  %v3625 = vpack.c.b16 %v3457, %v3451
  %v3626 = vpack.c.b16 %v3458, %v3452
  %v3627 = vpack.c.b16 %v3459, %v3453
  %v3628 = vpack.c.b16 %v3460, %v3454
  %v3629 = vpack.c.b16 %v3461, %v3455
  %v3630 = vpack.c.b16 %v3462, %v3456
  %v3631 = vpack.c.b16 %v3469, %v3463
  %v3632 = vpack.c.b16 %v3470, %v3464
  %v3633 = vpack.c.b16 %v3471, %v3465
  %v3634 = vpack.c.b16 %v3472, %v3466
  %v3635 = vpack.c.b16 %v3473, %v3467
  %v3636 = vpack.c.b16 %v3474, %v3468
  %v3637 = vpack.c.b16 %v3481, %v3475
  %v3638 = vpack.c.b16 %v3482, %v3476
  %v3639 = vpack.c.b16 %v3483, %v3477
  %v3640 = vpack.c.b16 %v3484, %v3478
  %v3641 = vpack.c.b16 %v3485, %v3479
  %v3642 = vpack.c.b16 %v3486, %v3480
  %v3643 = vpack.c.b16 %v3493, %v3487
  %v3644 = vpack.c.b16 %v3494, %v3488
  %v3645 = vpack.c.b16 %v3495, %v3489
  %v3646 = vpack.c.b16 %v3496, %v3490
  %v3647 = vpack.c.b16 %v3497, %v3491
  %v3648 = vpack.c.b16 %v3498, %v3492
  %v3649 = vpack.c.b16 %v3505, %v3499
  %v3650 = vpack.c.b16 %v3506, %v3500
  %v3651 = vpack.c.b16 %v3507, %v3501
  %v3652 = vpack.c.b16 %v3508, %v3502
  %v3653 = vpack.c.b16 %v3509, %v3503
  %v3654 = vpack.c.b16 %v3510, %v3504
  %v3655 = vpack.c.b16 %v3517, %v3511
  %v3656 = vpack.c.b16 %v3518, %v3512
  %v3657 = vpack.c.b16 %v3519, %v3513
  %v3658 = vpack.c.b16 %v3520, %v3514
  %v3659 = vpack.c.b16 %v3521, %v3515
  %v3660 = vpack.c.b16 %v3522, %v3516
  %v3661 = vpack.c.b16 %v3529, %v3523
  %v3662 = vpack.c.b16 %v3530, %v3524
  %v3663 = vpack.c.b16 %v3531, %v3525
  %v3664 = vpack.c.b16 %v3532, %v3526
  %v3665 = vpack.c.b16 %v3533, %v3527
  %v3666 = vpack.c.b16 %v3534, %v3528
  %v3667 = vpack.c.b16 %v3541, %v3535
  %v3668 = vpack.c.b16 %v3542, %v3536
  %v3669 = vpack.c.b16 %v3543, %v3537
  %v3670 = vpack.c.b16 %v3544, %v3538
  %v3671 = vpack.c.b16 %v3545, %v3539
  %v3672 = vpack.c.b16 %v3546, %v3540
  %v3673 = vpack.c.b16 %v3553, %v3547
  %v3674 = vpack.c.b16 %v3554, %v3548
  %v3675 = vpack.c.b16 %v3555, %v3549
  %v3676 = vpack.c.b16 %v3556, %v3550
  %v3677 = vpack.c.b16 %v3557, %v3551
  %v3678 = vpack.c.b16 %v3558, %v3552
  %v3679 = vpack.c.b16 %v3565, %v3559
  %v3680 = vpack.c.b16 %v3566, %v3560
  %v3681 = vpack.c.b16 %v3567, %v3561
  %v3682 = vpack.c.b16 %v3568, %v3562
  %v3683 = vpack.c.b16 %v3569, %v3563
  %v3684 = vpack.c.b16 %v3570, %v3564
  %v3685 = vpack.c.b16 %v3577, %v3571
  %v3686 = vpack.c.b16 %v3578, %v3572
  %v3687 = vpack.c.b16 %v3579, %v3573
  %v3688 = vpack.c.b16 %v3580, %v3574
  %v3689 = vpack.c.b16 %v3581, %v3575
  %v3690 = vpack.c.b16 %v3582, %v3576
  %v3691 = vpack.c.b16 %v3589, %v3583
  %v3692 = vpack.c.b16 %v3590, %v3584
  %v3693 = vpack.c.b16 %v3591, %v3585
  %v3694 = vpack.c.b16 %v3592, %v3586
  %v3695 = vpack.c.b16 %v3593, %v3587
  %v3696 = vpack.c.b16 %v3594, %v3588
  %v3697 = vpack.c.b16 %v3601, %v3595
  %v3698 = vpack.c.b16 %v3602, %v3596
  %v3699 = vpack.c.b16 %v3603, %v3597
  %v3700 = vpack.c.b16 %v3604, %v3598
  %v3701 = vpack.c.b16 %v3605, %v3599
  %v3702 = vpack.c.b16 %v3606, %v3600
  %3799 = vmatprep.subr.bf16.mxu0 %v3608
  %3800 = vmatpush1.bf16.msra.mxu0 %v3607
  %3801 = vmatprep.subr.bf16.mxu0 %v3614
  %3802 = vmatpush1.bf16.msra.mxu0 %v3613
  %3803 = vmatprep.subr.bf16.mxu0 %v3620
  %3804 = vmatpush1.bf16.msra.mxu0 %v3619
  %3805 = vmatprep.subr.bf16.mxu0 %v3626
  %3806 = vmatpush1.bf16.msra.mxu0 %v3625
  %3807 = vmatprep.subr.bf16.mxu0 %v3632
  %3808 = vmatpush1.bf16.msra.mxu0 %v3631
  %3809 = vmatprep.subr.bf16.mxu0 %v3638
  %3810 = vmatpush1.bf16.msra.mxu0 %v3637
  %3811 = vmatprep.subr.bf16.mxu0 %v3644
  %3812 = vmatpush1.bf16.msra.mxu0 %v3643
  %3813 = vmatprep.subr.bf16.mxu0 %v3650
  %3814 = vmatpush1.bf16.msra.mxu0 %v3649
  %3815 = vmatprep.subr.bf16.mxu0 %v3656
  %3816 = vmatpush1.bf16.msra.mxu0 %v3655
  %3817 = vmatprep.subr.bf16.mxu0 %v3662
  %3818 = vmatpush1.bf16.msra.mxu0 %v3661
  %3819 = vmatprep.subr.bf16.mxu0 %v3668
  %3820 = vmatpush1.bf16.msra.mxu0 %v3667
  %3821 = vmatprep.subr.bf16.mxu0 %v3674
  %3822 = vmatpush1.bf16.msra.mxu0 %v3673
  %3823 = vmatprep.subr.bf16.mxu0 %v3680
  %3824 = vmatpush1.bf16.msra.mxu0 %v3679
  %3825 = vmatprep.subr.bf16.mxu0 %v3686
  %3826 = vmatpush1.bf16.msra.mxu0 %v3685
  %3827 = vmatprep.subr.bf16.mxu0 %v3692
  %3828 = vmatpush1.bf16.msra.mxu0 %v3691
  %3829 = vmatprep.subr.bf16.mxu0 %v3698
  %3830 = vmatpush1.bf16.msra.mxu0 %v3697
  %3831 = vmatprep.mubr.bf16.mxu0 %v3316
  %3832 = vmatmul.mubr.bf16.gmra.mrb[0].mxu0 %v3315
  %v3833 = vpop.f32.mrb[0].mxu0
  %v3834 = vadd.f32 %v3286, %v3833
  %v3835 = vpop.f32.mrb[0].mxu0
  %v3836 = vadd.f32 %v3290, %v3835
  %v3837 = vpop.f32.mrb[0].mxu0
  %v3838 = vpop.f32.mrb[0].mxu0
  %3839 = vdwg.mxu0
  %3840 = vmatprep.subr.bf16.mxu0 %v3610
  %3841 = vmatpush1.bf16.msra.mxu0 %v3609
  %3842 = vmatprep.subr.bf16.mxu0 %v3616
  %3843 = vmatpush1.bf16.msra.mxu0 %v3615
  %3844 = vmatprep.subr.bf16.mxu0 %v3622
  %3845 = vmatpush1.bf16.msra.mxu0 %v3621
  %3846 = vmatprep.subr.bf16.mxu0 %v3628
  %3847 = vmatpush1.bf16.msra.mxu0 %v3627
  %3848 = vmatprep.subr.bf16.mxu0 %v3634
  %3849 = vmatpush1.bf16.msra.mxu0 %v3633
  %3850 = vmatprep.subr.bf16.mxu0 %v3640
  %3851 = vmatpush1.bf16.msra.mxu0 %v3639
  %3852 = vmatprep.subr.bf16.mxu0 %v3646
  %3853 = vmatpush1.bf16.msra.mxu0 %v3645
  %3854 = vmatprep.subr.bf16.mxu0 %v3652
  %3855 = vmatpush1.bf16.msra.mxu0 %v3651
  %3856 = vmatprep.subr.bf16.mxu0 %v3658
  %3857 = vmatpush1.bf16.msra.mxu0 %v3657
  %3858 = vmatprep.subr.bf16.mxu0 %v3664
  %3859 = vmatpush1.bf16.msra.mxu0 %v3663
  %3860 = vmatprep.subr.bf16.mxu0 %v3670
  %3861 = vmatpush1.bf16.msra.mxu0 %v3669
  %3862 = vmatprep.subr.bf16.mxu0 %v3676
  %3863 = vmatpush1.bf16.msra.mxu0 %v3675
  %3864 = vmatprep.subr.bf16.mxu0 %v3682
  %3865 = vmatpush1.bf16.msra.mxu0 %v3681
  %3866 = vmatprep.subr.bf16.mxu0 %v3688
  %3867 = vmatpush1.bf16.msra.mxu0 %v3687
  %3868 = vmatprep.subr.bf16.mxu0 %v3694
  %3869 = vmatpush1.bf16.msra.mxu0 %v3693
  %3870 = vmatprep.subr.bf16.mxu0 %v3700
  %3871 = vmatpush1.bf16.msra.mxu0 %v3699
  %3872 = vmatprep.mubr.bf16.mxu0 %v3316
  %3873 = vmatmul.mubr.bf16.gmra.mrb[0].mxu0 %v3315
  %v3874 = vpop.f32.mrb[0].mxu0
  %v3875 = vadd.f32 %v3294, %v3874
  %v3876 = vpop.f32.mrb[0].mxu0
  %v3877 = vadd.f32 %v3298, %v3876
  %v3878 = vpop.f32.mrb[0].mxu0
  %v3879 = vpop.f32.mrb[0].mxu0
  %3880 = vdwg.mxu0
  %3881 = vmatprep.subr.bf16.mxu0 %v3612
  %3882 = vmatpush1.bf16.msra.mxu0 %v3611
  %3883 = vmatprep.subr.bf16.mxu0 %v3618
  %3884 = vmatpush1.bf16.msra.mxu0 %v3617
  %3885 = vmatprep.subr.bf16.mxu0 %v3624
  %3886 = vmatpush1.bf16.msra.mxu0 %v3623
  %3887 = vmatprep.subr.bf16.mxu0 %v3630
  %3888 = vmatpush1.bf16.msra.mxu0 %v3629
  %3889 = vmatprep.subr.bf16.mxu0 %v3636
  %3890 = vmatpush1.bf16.msra.mxu0 %v3635
  %3891 = vmatprep.subr.bf16.mxu0 %v3642
  %3892 = vmatpush1.bf16.msra.mxu0 %v3641
  %3893 = vmatprep.subr.bf16.mxu0 %v3648
  %3894 = vmatpush1.bf16.msra.mxu0 %v3647
  %3895 = vmatprep.subr.bf16.mxu0 %v3654
  %3896 = vmatpush1.bf16.msra.mxu0 %v3653
  %3897 = vmatprep.subr.bf16.mxu0 %v3660
  %3898 = vmatpush1.bf16.msra.mxu0 %v3659
  %3899 = vmatprep.subr.bf16.mxu0 %v3666
  %3900 = vmatpush1.bf16.msra.mxu0 %v3665
  %3901 = vmatprep.subr.bf16.mxu0 %v3672
  %3902 = vmatpush1.bf16.msra.mxu0 %v3671
  %3903 = vmatprep.subr.bf16.mxu0 %v3678
  %3904 = vmatpush1.bf16.msra.mxu0 %v3677
  %3905 = vmatprep.subr.bf16.mxu0 %v3684
  %3906 = vmatpush1.bf16.msra.mxu0 %v3683
  %3907 = vmatprep.subr.bf16.mxu0 %v3690
  %3908 = vmatpush1.bf16.msra.mxu0 %v3689
  %3909 = vmatprep.subr.bf16.mxu0 %v3696
  %3910 = vmatpush1.bf16.msra.mxu0 %v3695
  %3911 = vmatprep.subr.bf16.mxu0 %v3702
  %3912 = vmatpush1.bf16.msra.mxu0 %v3701
  %3913 = vmatprep.mubr.bf16.mxu0 %v3316
  %3914 = vmatmul.mubr.bf16.gmra.mrb[0].mxu0 %v3315
  %v3915 = vpop.f32.mrb[0].mxu0
  %v3916 = vadd.f32 %v3302, %v3915
  %v3917 = vpop.f32.mrb[0].mxu0
  %v3918 = vadd.f32 %v3306, %v3917
  %v3919 = vpop.f32.mrb[0].mxu0
  %v3920 = vpop.f32.mrb[0].mxu0
  %3921 = vdwg.mxu0
  %v3924 = vrot.slane %v3834, 2
  %v3925 = vrot.slane %v3836, 2
  %v3928 = vadd.f32 %v3177, %v3924
  %v3929 = vadd.f32 %v3178, %v3925
  %v3930 = vsub.f32 0.0, %v3928
  %v3931 = vsub.f32 0.0, %v3929
  %v3932 = vmul.f32 %v3930, 1.442695
  %v3933 = vpow.pop %v3932
  %v3934 = vmul.f32 %v3931, 1.442695
  %v3935 = vpow.pop %v3934
  %v3936 = vadd.f32 %v3933, 1.0
  %v3937 = vadd.f32 %v3935, 1.0
  %v3938 = vrcp.pop %v3936
  %v3939 = vmul.f32 1.0, %v3938
  %v3940 = vrcp.pop %v3937
  %v3941 = vmul.f32 1.0, %v3940
  %v3944 = vrot.slane %v3875, 2
  %v3945 = vrot.slane %v3877, 2
  %v3948 = vadd.f32 %v3179, %v3944
  %v3949 = vadd.f32 %v3180, %v3945
  %v3950 = vsub.f32 0.0, %v3948
  %v3951 = vsub.f32 0.0, %v3949
  %v3952 = vmul.f32 %v3950, 1.442695
  %v3953 = vpow.pop %v3952
  %v3954 = vmul.f32 %v3951, 1.442695
  %v3955 = vpow.pop %v3954
  %v3956 = vadd.f32 %v3953, 1.0
  %v3957 = vadd.f32 %v3955, 1.0
  %v3958 = vrcp.pop %v3956
  %v3959 = vmul.f32 1.0, %v3958
  %v3960 = vrcp.pop %v3957
  %v3961 = vmul.f32 1.0, %v3960
  %v3964 = vrot.slane %v3916, 2
  %v3965 = vrot.slane %v3918, 2
  %v3968 = vmul.f32 %v3939, %v3964
  %v3969 = vmul.f32 %v3941, %v3965
  %v3970 = vadd.f32 %v3181, %v3968
  %v3971 = vadd.f32 %v3182, %v3969
  %v3972 = vtanh.pop %v3970
  %v3973 = vtanh.pop %v3971
  %v3974 = vsub.f32 1.0, %v3959
  %v3975 = vsub.f32 1.0, %v3961
  %v3976 = vmul.f32 %v3974, %v3972
  %v3977 = vmul.f32 %v3975, %v3973
  %v3980 = vrot.slane %v3173, 6
  %v3981 = vrot.slane %v3174, 6
  %v3984 = vmul.f32 %v3959, %v3980
  %v3985 = vmul.f32 %v3961, %v3981
  %v3986 = vadd.f32 %v3976, %v3984
  %v3987 = vadd.f32 %v3977, %v3985
  %3988 = vst [vmem:[#allocation3] sm:$0xc0] %v3986
  %3989 = vst [vmem:[#allocation3 + $0x8] sm:$0xc0] %v3987
  %v3990 = vld [vmem:[#allocation2 + $0x30] sm:$0x3]
  %v3991 = vld [vmem:[#allocation2 + $0x38] sm:$0x3]
  %v3992 = vld [vmem:[#allocation2 + $0x40] sm:$0x3]
  %v3993 = vld [vmem:[#allocation2 + $0x48] sm:$0x3]
  %v3994 = vld [vmem:[#allocation2 + $0x50] sm:$0x3]
  %v3995 = vld [vmem:[#allocation2 + $0x58] sm:$0x3]
  %v3996 = vpack.c.bf16 %v3986, %v3986
  %v3997 = vpack.c.bf16 %v3987, %v3987
  %v3998 = vld [vmem:[%s2] sm:$0xff]
  %v3999 = vld [vmem:[%s2 + $0x8] sm:$0xff]
  %v4000 = vld [vmem:[%s2 + $0x10] sm:$0xff]
  %v4001 = vld [vmem:[%s2 + $0x18] sm:$0xff]
  %v4002 = vld [vmem:[%s2 + $0x20] sm:$0xff]
  %v4003 = vld [vmem:[%s2 + $0x28] sm:$0xff]
  %v4004 = vld [vmem:[%s2 + $0x30] sm:$0xff]
  %v4005 = vld [vmem:[%s2 + $0x38] sm:$0xff]
  %v4006 = vld [vmem:[%s2 + $0x40] sm:$0xff]
  %v4007 = vld [vmem:[%s2 + $0x48] sm:$0xff]
  %v4008 = vld [vmem:[%s2 + $0x50] sm:$0xff]
  %v4009 = vld [vmem:[%s2 + $0x58] sm:$0xff]
  %v4010 = vld [vmem:[%s2 + $0x60] sm:$0xff]
  %v4011 = vld [vmem:[%s2 + $0x68] sm:$0xff]
  %v4012 = vld [vmem:[%s2 + $0x70] sm:$0xff]
  %v4013 = vld [vmem:[%s2 + $0x78] sm:$0xff]
  %v4014 = vld [vmem:[%s2 + $0x80] sm:$0xff]
  %v4015 = vld [vmem:[%s2 + $0x88] sm:$0xff]
  %v4016 = vld [vmem:[%s2 + $0x90] sm:$0xff]
  %v4017 = vld [vmem:[%s2 + $0x98] sm:$0xff]
  %v4018 = vld [vmem:[%s2 + $0xa0] sm:$0xff]
  %v4019 = vld [vmem:[%s2 + $0xa8] sm:$0xff]
  %v4020 = vld [vmem:[%s2 + $0xb0] sm:$0xff]
  %v4021 = vld [vmem:[%s2 + $0xb8] sm:$0xff]
  %v4022 = vld [vmem:[%s2 + $0xc0] sm:$0xff]
  %v4023 = vld [vmem:[%s2 + $0xc8] sm:$0xff]
  %v4024 = vld [vmem:[%s2 + $0xd0] sm:$0xff]
  %v4025 = vld [vmem:[%s2 + $0xd8] sm:$0xff]
  %v4026 = vld [vmem:[%s2 + $0xe0] sm:$0xff]
  %v4027 = vld [vmem:[%s2 + $0xe8] sm:$0xff]
  %v4028 = vld [vmem:[%s2 + $0xf0] sm:$0xff]
  %v4029 = vld [vmem:[%s2 + $0xf8] sm:$0xff]
  %v4030 = vld [vmem:[%s2 + $0x100] sm:$0xff]
  %v4031 = vld [vmem:[%s2 + $0x108] sm:$0xff]
  %v4032 = vld [vmem:[%s2 + $0x110] sm:$0xff]
  %v4033 = vld [vmem:[%s2 + $0x118] sm:$0xff]
  %v4034 = vld [vmem:[%s2 + $0x120] sm:$0xff]
  %v4035 = vld [vmem:[%s2 + $0x128] sm:$0xff]
  %v4036 = vld [vmem:[%s2 + $0x130] sm:$0xff]
  %v4037 = vld [vmem:[%s2 + $0x138] sm:$0xff]
  %v4038 = vld [vmem:[%s2 + $0x140] sm:$0xff]
  %v4039 = vld [vmem:[%s2 + $0x148] sm:$0xff]
  %v4040 = vld [vmem:[%s2 + $0x150] sm:$0xff]
  %v4041 = vld [vmem:[%s2 + $0x158] sm:$0xff]
  %v4042 = vld [vmem:[%s2 + $0x160] sm:$0xff]
  %v4043 = vld [vmem:[%s2 + $0x168] sm:$0xff]
  %v4044 = vld [vmem:[%s2 + $0x170] sm:$0xff]
  %v4045 = vld [vmem:[%s2 + $0x178] sm:$0xff]
  %v4046 = vld [vmem:[%s2 + $0x180] sm:$0xff]
  %v4047 = vld [vmem:[%s2 + $0x188] sm:$0xff]
  %v4048 = vld [vmem:[%s2 + $0x190] sm:$0xff]
  %v4049 = vld [vmem:[%s2 + $0x198] sm:$0xff]
  %v4050 = vld [vmem:[%s2 + $0x1a0] sm:$0xff]
  %v4051 = vld [vmem:[%s2 + $0x1a8] sm:$0xff]
  %v4052 = vld [vmem:[%s2 + $0x1b0] sm:$0xff]
  %v4053 = vld [vmem:[%s2 + $0x1b8] sm:$0xff]
  %v4054 = vld [vmem:[%s2 + $0x1c0] sm:$0xff]
  %v4055 = vld [vmem:[%s2 + $0x1c8] sm:$0xff]
  %v4056 = vld [vmem:[%s2 + $0x1d0] sm:$0xff]
  %v4057 = vld [vmem:[%s2 + $0x1d8] sm:$0xff]
  %v4058 = vld [vmem:[%s2 + $0x1e0] sm:$0xff]
  %v4059 = vld [vmem:[%s2 + $0x1e8] sm:$0xff]
  %v4060 = vld [vmem:[%s2 + $0x1f0] sm:$0xff]
  %v4061 = vld [vmem:[%s2 + $0x1f8] sm:$0xff]
  %v4062 = vld [vmem:[%s2 + $0x200] sm:$0xff]
  %v4063 = vld [vmem:[%s2 + $0x208] sm:$0xff]
  %v4064 = vld [vmem:[%s2 + $0x210] sm:$0xff]
  %v4065 = vld [vmem:[%s2 + $0x218] sm:$0xff]
  %v4066 = vld [vmem:[%s2 + $0x220] sm:$0xff]
  %v4067 = vld [vmem:[%s2 + $0x228] sm:$0xff]
  %v4068 = vld [vmem:[%s2 + $0x230] sm:$0xff]
  %v4069 = vld [vmem:[%s2 + $0x238] sm:$0xff]
  %v4070 = vld [vmem:[%s2 + $0x240] sm:$0xff]
  %v4071 = vld [vmem:[%s2 + $0x248] sm:$0xff]
  %v4072 = vld [vmem:[%s2 + $0x250] sm:$0xff]
  %v4073 = vld [vmem:[%s2 + $0x258] sm:$0xff]
  %v4074 = vld [vmem:[%s2 + $0x260] sm:$0xff]
  %v4075 = vld [vmem:[%s2 + $0x268] sm:$0xff]
  %v4076 = vld [vmem:[%s2 + $0x270] sm:$0xff]
  %v4077 = vld [vmem:[%s2 + $0x278] sm:$0xff]
  %v4078 = vld [vmem:[%s2 + $0x280] sm:$0xff]
  %v4079 = vld [vmem:[%s2 + $0x288] sm:$0xff]
  %v4080 = vld [vmem:[%s2 + $0x290] sm:$0xff]
  %v4081 = vld [vmem:[%s2 + $0x298] sm:$0xff]
  %v4082 = vld [vmem:[%s2 + $0x2a0] sm:$0xff]
  %v4083 = vld [vmem:[%s2 + $0x2a8] sm:$0xff]
  %v4084 = vld [vmem:[%s2 + $0x2b0] sm:$0xff]
  %v4085 = vld [vmem:[%s2 + $0x2b8] sm:$0xff]
  %v4086 = vld [vmem:[%s2 + $0x2c0] sm:$0xff]
  %v4087 = vld [vmem:[%s2 + $0x2c8] sm:$0xff]
  %v4088 = vld [vmem:[%s2 + $0x2d0] sm:$0xff]
  %v4089 = vld [vmem:[%s2 + $0x2d8] sm:$0xff]
  %v4090 = vld [vmem:[%s2 + $0x2e0] sm:$0xff]
  %v4091 = vld [vmem:[%s2 + $0x2e8] sm:$0xff]
  %v4092 = vld [vmem:[%s2 + $0x2f0] sm:$0xff]
  %v4093 = vld [vmem:[%s2 + $0x2f8] sm:$0xff]
  %v4094 = vld [vmem:[%s4] sm:$0x3f]
  %v4096 = vlaneseq
  %v4097 = vshrl.u32 %v4096, 7
  %v4098 = vsub.s32 0, %v4097
  %v4099 = vrot.slane %v4094, %v4098
  %v4100 = vlaneseq
  %v4101 = vshrl.u32 %v4100, 7
  %v4102 = vsub.s32 1, %v4101
  %v4103 = vrot.slane %v4094, %v4102
  %v4104 = vlaneseq
  %v4105 = vshrl.u32 %v4104, 7
  %v4106 = vsub.s32 2, %v4105
  %v4107 = vrot.slane %v4094, %v4106
  %v4108 = vlaneseq
  %v4109 = vshrl.u32 %v4108, 7
  %v4110 = vsub.s32 3, %v4109
  %v4111 = vrot.slane %v4094, %v4110
  %v4112 = vlaneseq
  %v4113 = vshrl.u32 %v4112, 7
  %v4114 = vsub.s32 4, %v4113
  %v4115 = vrot.slane %v4094, %v4114
  %v4116 = vlaneseq
  %v4117 = vshrl.u32 %v4116, 7
  %v4118 = vsub.s32 5, %v4117
  %v4119 = vrot.slane %v4094, %v4118
  %v4128 = vrot.slane %v3996, 3
  %v4129 = vrot.slane %v3997, 3
  %v4228 = vunpack.c.l.b16 %v3998
  %v4229 = vunpack.c.h.b16 %v3998
  %v4230 = vunpack.c.l.b16 %v3999
  %v4231 = vunpack.c.h.b16 %v3999
  %v4232 = vunpack.c.l.b16 %v4000
  %v4233 = vunpack.c.h.b16 %v4000
  %v4234 = vunpack.c.l.b16 %v4001
  %v4235 = vunpack.c.h.b16 %v4001
  %v4236 = vunpack.c.l.b16 %v4002
  %v4237 = vunpack.c.h.b16 %v4002
  %v4238 = vunpack.c.l.b16 %v4003
  %v4239 = vunpack.c.h.b16 %v4003
  %v4240 = vunpack.c.l.b16 %v4004
  %v4241 = vunpack.c.h.b16 %v4004
  %v4242 = vunpack.c.l.b16 %v4005
  %v4243 = vunpack.c.h.b16 %v4005
  %v4244 = vunpack.c.l.b16 %v4006
  %v4245 = vunpack.c.h.b16 %v4006
  %v4246 = vunpack.c.l.b16 %v4007
  %v4247 = vunpack.c.h.b16 %v4007
  %v4248 = vunpack.c.l.b16 %v4008
  %v4249 = vunpack.c.h.b16 %v4008
  %v4250 = vunpack.c.l.b16 %v4009
  %v4251 = vunpack.c.h.b16 %v4009
  %v4252 = vunpack.c.l.b16 %v4010
  %v4253 = vunpack.c.h.b16 %v4010
  %v4254 = vunpack.c.l.b16 %v4011
  %v4255 = vunpack.c.h.b16 %v4011
  %v4256 = vunpack.c.l.b16 %v4012
  %v4257 = vunpack.c.h.b16 %v4012
  %v4258 = vunpack.c.l.b16 %v4013
  %v4259 = vunpack.c.h.b16 %v4013
  %v4260 = vunpack.c.l.b16 %v4014
  %v4261 = vunpack.c.h.b16 %v4014
  %v4262 = vunpack.c.l.b16 %v4015
  %v4263 = vunpack.c.h.b16 %v4015
  %v4264 = vunpack.c.l.b16 %v4016
  %v4265 = vunpack.c.h.b16 %v4016
  %v4266 = vunpack.c.l.b16 %v4017
  %v4267 = vunpack.c.h.b16 %v4017
  %v4268 = vunpack.c.l.b16 %v4018
  %v4269 = vunpack.c.h.b16 %v4018
  %v4270 = vunpack.c.l.b16 %v4019
  %v4271 = vunpack.c.h.b16 %v4019
  %v4272 = vunpack.c.l.b16 %v4020
  %v4273 = vunpack.c.h.b16 %v4020
  %v4274 = vunpack.c.l.b16 %v4021
  %v4275 = vunpack.c.h.b16 %v4021
  %v4276 = vunpack.c.l.b16 %v4022
  %v4277 = vunpack.c.h.b16 %v4022
  %v4278 = vunpack.c.l.b16 %v4023
  %v4279 = vunpack.c.h.b16 %v4023
  %v4280 = vunpack.c.l.b16 %v4024
  %v4281 = vunpack.c.h.b16 %v4024
  %v4282 = vunpack.c.l.b16 %v4025
  %v4283 = vunpack.c.h.b16 %v4025
  %v4284 = vunpack.c.l.b16 %v4026
  %v4285 = vunpack.c.h.b16 %v4026
  %v4286 = vunpack.c.l.b16 %v4027
  %v4287 = vunpack.c.h.b16 %v4027
  %v4288 = vunpack.c.l.b16 %v4028
  %v4289 = vunpack.c.h.b16 %v4028
  %v4290 = vunpack.c.l.b16 %v4029
  %v4291 = vunpack.c.h.b16 %v4029
  %v4292 = vunpack.c.l.b16 %v4030
  %v4293 = vunpack.c.h.b16 %v4030
  %v4294 = vunpack.c.l.b16 %v4031
  %v4295 = vunpack.c.h.b16 %v4031
  %v4296 = vunpack.c.l.b16 %v4032
  %v4297 = vunpack.c.h.b16 %v4032
  %v4298 = vunpack.c.l.b16 %v4033
  %v4299 = vunpack.c.h.b16 %v4033
  %v4300 = vunpack.c.l.b16 %v4034
  %v4301 = vunpack.c.h.b16 %v4034
  %v4302 = vunpack.c.l.b16 %v4035
  %v4303 = vunpack.c.h.b16 %v4035
  %v4304 = vunpack.c.l.b16 %v4036
  %v4305 = vunpack.c.h.b16 %v4036
  %v4306 = vunpack.c.l.b16 %v4037
  %v4307 = vunpack.c.h.b16 %v4037
  %v4308 = vunpack.c.l.b16 %v4038
  %v4309 = vunpack.c.h.b16 %v4038
  %v4310 = vunpack.c.l.b16 %v4039
  %v4311 = vunpack.c.h.b16 %v4039
  %v4312 = vunpack.c.l.b16 %v4040
  %v4313 = vunpack.c.h.b16 %v4040
  %v4314 = vunpack.c.l.b16 %v4041
  %v4315 = vunpack.c.h.b16 %v4041
  %v4316 = vunpack.c.l.b16 %v4042
  %v4317 = vunpack.c.h.b16 %v4042
  %v4318 = vunpack.c.l.b16 %v4043
  %v4319 = vunpack.c.h.b16 %v4043
  %v4320 = vunpack.c.l.b16 %v4044
  %v4321 = vunpack.c.h.b16 %v4044
  %v4322 = vunpack.c.l.b16 %v4045
  %v4323 = vunpack.c.h.b16 %v4045
  %v4324 = vunpack.c.l.b16 %v4046
  %v4325 = vunpack.c.h.b16 %v4046
  %v4326 = vunpack.c.l.b16 %v4047
  %v4327 = vunpack.c.h.b16 %v4047
  %v4328 = vunpack.c.l.b16 %v4048
  %v4329 = vunpack.c.h.b16 %v4048
  %v4330 = vunpack.c.l.b16 %v4049
  %v4331 = vunpack.c.h.b16 %v4049
  %v4332 = vunpack.c.l.b16 %v4050
  %v4333 = vunpack.c.h.b16 %v4050
  %v4334 = vunpack.c.l.b16 %v4051
  %v4335 = vunpack.c.h.b16 %v4051
  %v4336 = vunpack.c.l.b16 %v4052
  %v4337 = vunpack.c.h.b16 %v4052
  %v4338 = vunpack.c.l.b16 %v4053
  %v4339 = vunpack.c.h.b16 %v4053
  %v4340 = vunpack.c.l.b16 %v4054
  %v4341 = vunpack.c.h.b16 %v4054
  %v4342 = vunpack.c.l.b16 %v4055
  %v4343 = vunpack.c.h.b16 %v4055
  %v4344 = vunpack.c.l.b16 %v4056
  %v4345 = vunpack.c.h.b16 %v4056
  %v4346 = vunpack.c.l.b16 %v4057
  %v4347 = vunpack.c.h.b16 %v4057
  %v4348 = vunpack.c.l.b16 %v4058
  %v4349 = vunpack.c.h.b16 %v4058
  %v4350 = vunpack.c.l.b16 %v4059
  %v4351 = vunpack.c.h.b16 %v4059
  %v4352 = vunpack.c.l.b16 %v4060
  %v4353 = vunpack.c.h.b16 %v4060
  %v4354 = vunpack.c.l.b16 %v4061
  %v4355 = vunpack.c.h.b16 %v4061
  %v4356 = vunpack.c.l.b16 %v4062
  %v4357 = vunpack.c.h.b16 %v4062
  %v4358 = vunpack.c.l.b16 %v4063
  %v4359 = vunpack.c.h.b16 %v4063
  %v4360 = vunpack.c.l.b16 %v4064
  %v4361 = vunpack.c.h.b16 %v4064
  %v4362 = vunpack.c.l.b16 %v4065
  %v4363 = vunpack.c.h.b16 %v4065
  %v4364 = vunpack.c.l.b16 %v4066
  %v4365 = vunpack.c.h.b16 %v4066
  %v4366 = vunpack.c.l.b16 %v4067
  %v4367 = vunpack.c.h.b16 %v4067
  %v4368 = vunpack.c.l.b16 %v4068
  %v4369 = vunpack.c.h.b16 %v4068
  %v4370 = vunpack.c.l.b16 %v4069
  %v4371 = vunpack.c.h.b16 %v4069
  %v4372 = vunpack.c.l.b16 %v4070
  %v4373 = vunpack.c.h.b16 %v4070
  %v4374 = vunpack.c.l.b16 %v4071
  %v4375 = vunpack.c.h.b16 %v4071
  %v4376 = vunpack.c.l.b16 %v4072
  %v4377 = vunpack.c.h.b16 %v4072
  %v4378 = vunpack.c.l.b16 %v4073
  %v4379 = vunpack.c.h.b16 %v4073
  %v4380 = vunpack.c.l.b16 %v4074
  %v4381 = vunpack.c.h.b16 %v4074
  %v4382 = vunpack.c.l.b16 %v4075
  %v4383 = vunpack.c.h.b16 %v4075
  %v4384 = vunpack.c.l.b16 %v4076
  %v4385 = vunpack.c.h.b16 %v4076
  %v4386 = vunpack.c.l.b16 %v4077
  %v4387 = vunpack.c.h.b16 %v4077
  %v4388 = vunpack.c.l.b16 %v4078
  %v4389 = vunpack.c.h.b16 %v4078
  %v4390 = vunpack.c.l.b16 %v4079
  %v4391 = vunpack.c.h.b16 %v4079
  %v4392 = vunpack.c.l.b16 %v4080
  %v4393 = vunpack.c.h.b16 %v4080
  %v4394 = vunpack.c.l.b16 %v4081
  %v4395 = vunpack.c.h.b16 %v4081
  %v4396 = vunpack.c.l.b16 %v4082
  %v4397 = vunpack.c.h.b16 %v4082
  %v4398 = vunpack.c.l.b16 %v4083
  %v4399 = vunpack.c.h.b16 %v4083
  %v4400 = vunpack.c.l.b16 %v4084
  %v4401 = vunpack.c.h.b16 %v4084
  %v4402 = vunpack.c.l.b16 %v4085
  %v4403 = vunpack.c.h.b16 %v4085
  %v4404 = vunpack.c.l.b16 %v4086
  %v4405 = vunpack.c.h.b16 %v4086
  %v4406 = vunpack.c.l.b16 %v4087
  %v4407 = vunpack.c.h.b16 %v4087
  %v4408 = vunpack.c.l.b16 %v4088
  %v4409 = vunpack.c.h.b16 %v4088
  %v4410 = vunpack.c.l.b16 %v4089
  %v4411 = vunpack.c.h.b16 %v4089
  %v4412 = vunpack.c.l.b16 %v4090
  %v4413 = vunpack.c.h.b16 %v4090
  %v4414 = vunpack.c.l.b16 %v4091
  %v4415 = vunpack.c.h.b16 %v4091
  %v4416 = vunpack.c.l.b16 %v4092
  %v4417 = vunpack.c.h.b16 %v4092
  %v4418 = vunpack.c.l.b16 %v4093
  %v4419 = vunpack.c.h.b16 %v4093
  %v4420 = vpack.c.b16 %v4234, %v4228
  %v4421 = vpack.c.b16 %v4235, %v4229
  %v4422 = vpack.c.b16 %v4236, %v4230
  %v4423 = vpack.c.b16 %v4237, %v4231
  %v4424 = vpack.c.b16 %v4238, %v4232
  %v4425 = vpack.c.b16 %v4239, %v4233
  %v4426 = vpack.c.b16 %v4246, %v4240
  %v4427 = vpack.c.b16 %v4247, %v4241
  %v4428 = vpack.c.b16 %v4248, %v4242
  %v4429 = vpack.c.b16 %v4249, %v4243
  %v4430 = vpack.c.b16 %v4250, %v4244
  %v4431 = vpack.c.b16 %v4251, %v4245
  %v4432 = vpack.c.b16 %v4258, %v4252
  %v4433 = vpack.c.b16 %v4259, %v4253
  %v4434 = vpack.c.b16 %v4260, %v4254
  %v4435 = vpack.c.b16 %v4261, %v4255
  %v4436 = vpack.c.b16 %v4262, %v4256
  %v4437 = vpack.c.b16 %v4263, %v4257
  %v4438 = vpack.c.b16 %v4270, %v4264
  %v4439 = vpack.c.b16 %v4271, %v4265
  %v4440 = vpack.c.b16 %v4272, %v4266
  %v4441 = vpack.c.b16 %v4273, %v4267
  %v4442 = vpack.c.b16 %v4274, %v4268
  %v4443 = vpack.c.b16 %v4275, %v4269
  %v4444 = vpack.c.b16 %v4282, %v4276
  %v4445 = vpack.c.b16 %v4283, %v4277
  %v4446 = vpack.c.b16 %v4284, %v4278
  %v4447 = vpack.c.b16 %v4285, %v4279
  %v4448 = vpack.c.b16 %v4286, %v4280
  %v4449 = vpack.c.b16 %v4287, %v4281
  %v4450 = vpack.c.b16 %v4294, %v4288
  %v4451 = vpack.c.b16 %v4295, %v4289
  %v4452 = vpack.c.b16 %v4296, %v4290
  %v4453 = vpack.c.b16 %v4297, %v4291
  %v4454 = vpack.c.b16 %v4298, %v4292
  %v4455 = vpack.c.b16 %v4299, %v4293
  %v4456 = vpack.c.b16 %v4306, %v4300
  %v4457 = vpack.c.b16 %v4307, %v4301
  %v4458 = vpack.c.b16 %v4308, %v4302
  %v4459 = vpack.c.b16 %v4309, %v4303
  %v4460 = vpack.c.b16 %v4310, %v4304
  %v4461 = vpack.c.b16 %v4311, %v4305
  %v4462 = vpack.c.b16 %v4318, %v4312
  %v4463 = vpack.c.b16 %v4319, %v4313
  %v4464 = vpack.c.b16 %v4320, %v4314
  %v4465 = vpack.c.b16 %v4321, %v4315
  %v4466 = vpack.c.b16 %v4322, %v4316
  %v4467 = vpack.c.b16 %v4323, %v4317
  %v4468 = vpack.c.b16 %v4330, %v4324
  %v4469 = vpack.c.b16 %v4331, %v4325
  %v4470 = vpack.c.b16 %v4332, %v4326
  %v4471 = vpack.c.b16 %v4333, %v4327
  %v4472 = vpack.c.b16 %v4334, %v4328
  %v4473 = vpack.c.b16 %v4335, %v4329
  %v4474 = vpack.c.b16 %v4342, %v4336
  %v4475 = vpack.c.b16 %v4343, %v4337
  %v4476 = vpack.c.b16 %v4344, %v4338
  %v4477 = vpack.c.b16 %v4345, %v4339
  %v4478 = vpack.c.b16 %v4346, %v4340
  %v4479 = vpack.c.b16 %v4347, %v4341
  %v4480 = vpack.c.b16 %v4354, %v4348
  %v4481 = vpack.c.b16 %v4355, %v4349
  %v4482 = vpack.c.b16 %v4356, %v4350
  %v4483 = vpack.c.b16 %v4357, %v4351
  %v4484 = vpack.c.b16 %v4358, %v4352
  %v4485 = vpack.c.b16 %v4359, %v4353
  %v4486 = vpack.c.b16 %v4366, %v4360
  %v4487 = vpack.c.b16 %v4367, %v4361
  %v4488 = vpack.c.b16 %v4368, %v4362
  %v4489 = vpack.c.b16 %v4369, %v4363
  %v4490 = vpack.c.b16 %v4370, %v4364
  %v4491 = vpack.c.b16 %v4371, %v4365
  %v4492 = vpack.c.b16 %v4378, %v4372
  %v4493 = vpack.c.b16 %v4379, %v4373
  %v4494 = vpack.c.b16 %v4380, %v4374
  %v4495 = vpack.c.b16 %v4381, %v4375
  %v4496 = vpack.c.b16 %v4382, %v4376
  %v4497 = vpack.c.b16 %v4383, %v4377
  %v4498 = vpack.c.b16 %v4390, %v4384
  %v4499 = vpack.c.b16 %v4391, %v4385
  %v4500 = vpack.c.b16 %v4392, %v4386
  %v4501 = vpack.c.b16 %v4393, %v4387
  %v4502 = vpack.c.b16 %v4394, %v4388
  %v4503 = vpack.c.b16 %v4395, %v4389
  %v4504 = vpack.c.b16 %v4402, %v4396
  %v4505 = vpack.c.b16 %v4403, %v4397
  %v4506 = vpack.c.b16 %v4404, %v4398
  %v4507 = vpack.c.b16 %v4405, %v4399
  %v4508 = vpack.c.b16 %v4406, %v4400
  %v4509 = vpack.c.b16 %v4407, %v4401
  %v4510 = vpack.c.b16 %v4414, %v4408
  %v4511 = vpack.c.b16 %v4415, %v4409
  %v4512 = vpack.c.b16 %v4416, %v4410
  %v4513 = vpack.c.b16 %v4417, %v4411
  %v4514 = vpack.c.b16 %v4418, %v4412
  %v4515 = vpack.c.b16 %v4419, %v4413
  %4612 = vmatprep.subr.bf16.mxu0 %v4421
  %4613 = vmatpush1.bf16.msra.mxu0 %v4420
  %4614 = vmatprep.subr.bf16.mxu0 %v4427
  %4615 = vmatpush1.bf16.msra.mxu0 %v4426
  %4616 = vmatprep.subr.bf16.mxu0 %v4433
  %4617 = vmatpush1.bf16.msra.mxu0 %v4432
  %4618 = vmatprep.subr.bf16.mxu0 %v4439
  %4619 = vmatpush1.bf16.msra.mxu0 %v4438
  %4620 = vmatprep.subr.bf16.mxu0 %v4445
  %4621 = vmatpush1.bf16.msra.mxu0 %v4444
  %4622 = vmatprep.subr.bf16.mxu0 %v4451
  %4623 = vmatpush1.bf16.msra.mxu0 %v4450
  %4624 = vmatprep.subr.bf16.mxu0 %v4457
  %4625 = vmatpush1.bf16.msra.mxu0 %v4456
  %4626 = vmatprep.subr.bf16.mxu0 %v4463
  %4627 = vmatpush1.bf16.msra.mxu0 %v4462
  %4628 = vmatprep.subr.bf16.mxu0 %v4469
  %4629 = vmatpush1.bf16.msra.mxu0 %v4468
  %4630 = vmatprep.subr.bf16.mxu0 %v4475
  %4631 = vmatpush1.bf16.msra.mxu0 %v4474
  %4632 = vmatprep.subr.bf16.mxu0 %v4481
  %4633 = vmatpush1.bf16.msra.mxu0 %v4480
  %4634 = vmatprep.subr.bf16.mxu0 %v4487
  %4635 = vmatpush1.bf16.msra.mxu0 %v4486
  %4636 = vmatprep.subr.bf16.mxu0 %v4493
  %4637 = vmatpush1.bf16.msra.mxu0 %v4492
  %4638 = vmatprep.subr.bf16.mxu0 %v4499
  %4639 = vmatpush1.bf16.msra.mxu0 %v4498
  %4640 = vmatprep.subr.bf16.mxu0 %v4505
  %4641 = vmatpush1.bf16.msra.mxu0 %v4504
  %4642 = vmatprep.subr.bf16.mxu0 %v4511
  %4643 = vmatpush1.bf16.msra.mxu0 %v4510
  %4644 = vmatprep.mubr.bf16.mxu0 %v4129
  %4645 = vmatmul.mubr.bf16.gmra.mrb[0].mxu0 %v4128
  %v4646 = vpop.f32.mrb[0].mxu0
  %v4647 = vadd.f32 %v4099, %v4646
  %v4648 = vpop.f32.mrb[0].mxu0
  %v4649 = vadd.f32 %v4103, %v4648
  %v4650 = vpop.f32.mrb[0].mxu0
  %v4651 = vpop.f32.mrb[0].mxu0
  %4652 = vdwg.mxu0
  %4653 = vmatprep.subr.bf16.mxu0 %v4423
  %4654 = vmatpush1.bf16.msra.mxu0 %v4422
  %4655 = vmatprep.subr.bf16.mxu0 %v4429
  %4656 = vmatpush1.bf16.msra.mxu0 %v4428
  %4657 = vmatprep.subr.bf16.mxu0 %v4435
  %4658 = vmatpush1.bf16.msra.mxu0 %v4434
  %4659 = vmatprep.subr.bf16.mxu0 %v4441
  %4660 = vmatpush1.bf16.msra.mxu0 %v4440
  %4661 = vmatprep.subr.bf16.mxu0 %v4447
  %4662 = vmatpush1.bf16.msra.mxu0 %v4446
  %4663 = vmatprep.subr.bf16.mxu0 %v4453
  %4664 = vmatpush1.bf16.msra.mxu0 %v4452
  %4665 = vmatprep.subr.bf16.mxu0 %v4459
  %4666 = vmatpush1.bf16.msra.mxu0 %v4458
  %4667 = vmatprep.subr.bf16.mxu0 %v4465
  %4668 = vmatpush1.bf16.msra.mxu0 %v4464
  %4669 = vmatprep.subr.bf16.mxu0 %v4471
  %4670 = vmatpush1.bf16.msra.mxu0 %v4470
  %4671 = vmatprep.subr.bf16.mxu0 %v4477
  %4672 = vmatpush1.bf16.msra.mxu0 %v4476
  %4673 = vmatprep.subr.bf16.mxu0 %v4483
  %4674 = vmatpush1.bf16.msra.mxu0 %v4482
  %4675 = vmatprep.subr.bf16.mxu0 %v4489
  %4676 = vmatpush1.bf16.msra.mxu0 %v4488
  %4677 = vmatprep.subr.bf16.mxu0 %v4495
  %4678 = vmatpush1.bf16.msra.mxu0 %v4494
  %4679 = vmatprep.subr.bf16.mxu0 %v4501
  %4680 = vmatpush1.bf16.msra.mxu0 %v4500
  %4681 = vmatprep.subr.bf16.mxu0 %v4507
  %4682 = vmatpush1.bf16.msra.mxu0 %v4506
  %4683 = vmatprep.subr.bf16.mxu0 %v4513
  %4684 = vmatpush1.bf16.msra.mxu0 %v4512
  %4685 = vmatprep.mubr.bf16.mxu0 %v4129
  %4686 = vmatmul.mubr.bf16.gmra.mrb[0].mxu0 %v4128
  %v4687 = vpop.f32.mrb[0].mxu0
  %v4688 = vadd.f32 %v4107, %v4687
  %v4689 = vpop.f32.mrb[0].mxu0
  %v4690 = vadd.f32 %v4111, %v4689
  %v4691 = vpop.f32.mrb[0].mxu0
  %v4692 = vpop.f32.mrb[0].mxu0
  %4693 = vdwg.mxu0
  %4694 = vmatprep.subr.bf16.mxu0 %v4425
  %4695 = vmatpush1.bf16.msra.mxu0 %v4424
  %4696 = vmatprep.subr.bf16.mxu0 %v4431
  %4697 = vmatpush1.bf16.msra.mxu0 %v4430
  %4698 = vmatprep.subr.bf16.mxu0 %v4437
  %4699 = vmatpush1.bf16.msra.mxu0 %v4436
  %4700 = vmatprep.subr.bf16.mxu0 %v4443
  %4701 = vmatpush1.bf16.msra.mxu0 %v4442
  %4702 = vmatprep.subr.bf16.mxu0 %v4449
  %4703 = vmatpush1.bf16.msra.mxu0 %v4448
  %4704 = vmatprep.subr.bf16.mxu0 %v4455
  %4705 = vmatpush1.bf16.msra.mxu0 %v4454
  %4706 = vmatprep.subr.bf16.mxu0 %v4461
  %4707 = vmatpush1.bf16.msra.mxu0 %v4460
  %4708 = vmatprep.subr.bf16.mxu0 %v4467
  %4709 = vmatpush1.bf16.msra.mxu0 %v4466
  %4710 = vmatprep.subr.bf16.mxu0 %v4473
  %4711 = vmatpush1.bf16.msra.mxu0 %v4472
  %4712 = vmatprep.subr.bf16.mxu0 %v4479
  %4713 = vmatpush1.bf16.msra.mxu0 %v4478
  %4714 = vmatprep.subr.bf16.mxu0 %v4485
  %4715 = vmatpush1.bf16.msra.mxu0 %v4484
  %4716 = vmatprep.subr.bf16.mxu0 %v4491
  %4717 = vmatpush1.bf16.msra.mxu0 %v4490
  %4718 = vmatprep.subr.bf16.mxu0 %v4497
  %4719 = vmatpush1.bf16.msra.mxu0 %v4496
  %4720 = vmatprep.subr.bf16.mxu0 %v4503
  %4721 = vmatpush1.bf16.msra.mxu0 %v4502
  %4722 = vmatprep.subr.bf16.mxu0 %v4509
  %4723 = vmatpush1.bf16.msra.mxu0 %v4508
  %4724 = vmatprep.subr.bf16.mxu0 %v4515
  %4725 = vmatpush1.bf16.msra.mxu0 %v4514
  %4726 = vmatprep.mubr.bf16.mxu0 %v4129
  %4727 = vmatmul.mubr.bf16.gmra.mrb[0].mxu0 %v4128
  %v4728 = vpop.f32.mrb[0].mxu0
  %v4729 = vadd.f32 %v4115, %v4728
  %v4730 = vpop.f32.mrb[0].mxu0
  %v4731 = vadd.f32 %v4119, %v4730
  %v4732 = vpop.f32.mrb[0].mxu0
  %v4733 = vpop.f32.mrb[0].mxu0
  %4734 = vdwg.mxu0
  %v4735 = vadd.f32 %v3990, %v4647
  %v4736 = vadd.f32 %v3991, %v4649
  %v4737 = vsub.f32 0.0, %v4735
  %v4738 = vsub.f32 0.0, %v4736
  %v4739 = vmul.f32 %v4737, 1.442695
  %v4740 = vpow.pop %v4739
  %v4741 = vmul.f32 %v4738, 1.442695
  %v4742 = vpow.pop %v4741
  %v4743 = vadd.f32 %v4740, 1.0
  %v4744 = vadd.f32 %v4742, 1.0
  %v4745 = vrcp.pop %v4743
  %v4746 = vmul.f32 1.0, %v4745
  %v4747 = vrcp.pop %v4744
  %v4748 = vmul.f32 1.0, %v4747
  %v4749 = vadd.f32 %v3992, %v4688
  %v4750 = vadd.f32 %v3993, %v4690
  %v4751 = vsub.f32 0.0, %v4749
  %v4752 = vsub.f32 0.0, %v4750
  %v4753 = vmul.f32 %v4751, 1.442695
  %v4754 = vpow.pop %v4753
  %v4755 = vmul.f32 %v4752, 1.442695
  %v4756 = vpow.pop %v4755
  %v4757 = vadd.f32 %v4754, 1.0
  %v4758 = vadd.f32 %v4756, 1.0
  %v4759 = vrcp.pop %v4757
  %v4760 = vmul.f32 1.0, %v4759
  %v4761 = vrcp.pop %v4758
  %v4762 = vmul.f32 1.0, %v4761
  %v4763 = vmul.f32 %v4746, %v4729
  %v4764 = vmul.f32 %v4748, %v4731
  %v4765 = vadd.f32 %v3994, %v4763
  %v4766 = vadd.f32 %v3995, %v4764
  %v4767 = vtanh.pop %v4765
  %v4768 = vtanh.pop %v4766
  %v4769 = vsub.f32 1.0, %v4760
  %v4770 = vsub.f32 1.0, %v4762
  %v4771 = vmul.f32 %v4769, %v4767
  %v4772 = vmul.f32 %v4770, %v4768
  %v4775 = vrot.slane %v3986, 6
  %v4776 = vrot.slane %v3987, 6
  %v4779 = vmul.f32 %v4760, %v4775
  %v4780 = vmul.f32 %v4762, %v4776
  %v4781 = vadd.f32 %v4771, %v4779
  %v4782 = vadd.f32 %v4772, %v4780
  %4783 = vst [vmem:[#allocation3 + $0x10] sm:$0x3] %v4781
  %4784 = vst [vmem:[#allocation3 + $0x18] sm:$0x3] %v4782
  %v4785 = vld [vmem:[#allocation2 + $0x30] sm:$0xc]
  %v4786 = vld [vmem:[#allocation2 + $0x38] sm:$0xc]
  %v4787 = vld [vmem:[#allocation2 + $0x40] sm:$0xc]
  %v4788 = vld [vmem:[#allocation2 + $0x48] sm:$0xc]
  %v4789 = vld [vmem:[#allocation2 + $0x50] sm:$0xc]
  %v4790 = vld [vmem:[#allocation2 + $0x58] sm:$0xc]
  %v4791 = vpack.c.bf16 %v4781, %v4781
  %v4792 = vpack.c.bf16 %v4782, %v4782
  %v4793 = vld [vmem:[%s2] sm:$0xff]
  %v4794 = vld [vmem:[%s2 + $0x8] sm:$0xff]
  %v4795 = vld [vmem:[%s2 + $0x10] sm:$0xff]
  %v4796 = vld [vmem:[%s2 + $0x18] sm:$0xff]
  %v4797 = vld [vmem:[%s2 + $0x20] sm:$0xff]
  %v4798 = vld [vmem:[%s2 + $0x28] sm:$0xff]
  %v4799 = vld [vmem:[%s2 + $0x30] sm:$0xff]
  %v4800 = vld [vmem:[%s2 + $0x38] sm:$0xff]
  %v4801 = vld [vmem:[%s2 + $0x40] sm:$0xff]
  %v4802 = vld [vmem:[%s2 + $0x48] sm:$0xff]
  %v4803 = vld [vmem:[%s2 + $0x50] sm:$0xff]
  %v4804 = vld [vmem:[%s2 + $0x58] sm:$0xff]
  %v4805 = vld [vmem:[%s2 + $0x60] sm:$0xff]
  %v4806 = vld [vmem:[%s2 + $0x68] sm:$0xff]
  %v4807 = vld [vmem:[%s2 + $0x70] sm:$0xff]
  %v4808 = vld [vmem:[%s2 + $0x78] sm:$0xff]
  %v4809 = vld [vmem:[%s2 + $0x80] sm:$0xff]
  %v4810 = vld [vmem:[%s2 + $0x88] sm:$0xff]
  %v4811 = vld [vmem:[%s2 + $0x90] sm:$0xff]
  %v4812 = vld [vmem:[%s2 + $0x98] sm:$0xff]
  %v4813 = vld [vmem:[%s2 + $0xa0] sm:$0xff]
  %v4814 = vld [vmem:[%s2 + $0xa8] sm:$0xff]
  %v4815 = vld [vmem:[%s2 + $0xb0] sm:$0xff]
  %v4816 = vld [vmem:[%s2 + $0xb8] sm:$0xff]
  %v4817 = vld [vmem:[%s2 + $0xc0] sm:$0xff]
  %v4818 = vld [vmem:[%s2 + $0xc8] sm:$0xff]
  %v4819 = vld [vmem:[%s2 + $0xd0] sm:$0xff]
  %v4820 = vld [vmem:[%s2 + $0xd8] sm:$0xff]
  %v4821 = vld [vmem:[%s2 + $0xe0] sm:$0xff]
  %v4822 = vld [vmem:[%s2 + $0xe8] sm:$0xff]
  %v4823 = vld [vmem:[%s2 + $0xf0] sm:$0xff]
  %v4824 = vld [vmem:[%s2 + $0xf8] sm:$0xff]
  %v4825 = vld [vmem:[%s2 + $0x100] sm:$0xff]
  %v4826 = vld [vmem:[%s2 + $0x108] sm:$0xff]
  %v4827 = vld [vmem:[%s2 + $0x110] sm:$0xff]
  %v4828 = vld [vmem:[%s2 + $0x118] sm:$0xff]
  %v4829 = vld [vmem:[%s2 + $0x120] sm:$0xff]
  %v4830 = vld [vmem:[%s2 + $0x128] sm:$0xff]
  %v4831 = vld [vmem:[%s2 + $0x130] sm:$0xff]
  %v4832 = vld [vmem:[%s2 + $0x138] sm:$0xff]
  %v4833 = vld [vmem:[%s2 + $0x140] sm:$0xff]
  %v4834 = vld [vmem:[%s2 + $0x148] sm:$0xff]
  %v4835 = vld [vmem:[%s2 + $0x150] sm:$0xff]
  %v4836 = vld [vmem:[%s2 + $0x158] sm:$0xff]
  %v4837 = vld [vmem:[%s2 + $0x160] sm:$0xff]
  %v4838 = vld [vmem:[%s2 + $0x168] sm:$0xff]
  %v4839 = vld [vmem:[%s2 + $0x170] sm:$0xff]
  %v4840 = vld [vmem:[%s2 + $0x178] sm:$0xff]
  %v4841 = vld [vmem:[%s2 + $0x180] sm:$0xff]
  %v4842 = vld [vmem:[%s2 + $0x188] sm:$0xff]
  %v4843 = vld [vmem:[%s2 + $0x190] sm:$0xff]
  %v4844 = vld [vmem:[%s2 + $0x198] sm:$0xff]
  %v4845 = vld [vmem:[%s2 + $0x1a0] sm:$0xff]
  %v4846 = vld [vmem:[%s2 + $0x1a8] sm:$0xff]
  %v4847 = vld [vmem:[%s2 + $0x1b0] sm:$0xff]
  %v4848 = vld [vmem:[%s2 + $0x1b8] sm:$0xff]
  %v4849 = vld [vmem:[%s2 + $0x1c0] sm:$0xff]
  %v4850 = vld [vmem:[%s2 + $0x1c8] sm:$0xff]
  %v4851 = vld [vmem:[%s2 + $0x1d0] sm:$0xff]
  %v4852 = vld [vmem:[%s2 + $0x1d8] sm:$0xff]
  %v4853 = vld [vmem:[%s2 + $0x1e0] sm:$0xff]
  %v4854 = vld [vmem:[%s2 + $0x1e8] sm:$0xff]
  %v4855 = vld [vmem:[%s2 + $0x1f0] sm:$0xff]
  %v4856 = vld [vmem:[%s2 + $0x1f8] sm:$0xff]
  %v4857 = vld [vmem:[%s2 + $0x200] sm:$0xff]
  %v4858 = vld [vmem:[%s2 + $0x208] sm:$0xff]
  %v4859 = vld [vmem:[%s2 + $0x210] sm:$0xff]
  %v4860 = vld [vmem:[%s2 + $0x218] sm:$0xff]
  %v4861 = vld [vmem:[%s2 + $0x220] sm:$0xff]
  %v4862 = vld [vmem:[%s2 + $0x228] sm:$0xff]
  %v4863 = vld [vmem:[%s2 + $0x230] sm:$0xff]
  %v4864 = vld [vmem:[%s2 + $0x238] sm:$0xff]
  %v4865 = vld [vmem:[%s2 + $0x240] sm:$0xff]
  %v4866 = vld [vmem:[%s2 + $0x248] sm:$0xff]
  %v4867 = vld [vmem:[%s2 + $0x250] sm:$0xff]
  %v4868 = vld [vmem:[%s2 + $0x258] sm:$0xff]
  %v4869 = vld [vmem:[%s2 + $0x260] sm:$0xff]
  %v4870 = vld [vmem:[%s2 + $0x268] sm:$0xff]
  %v4871 = vld [vmem:[%s2 + $0x270] sm:$0xff]
  %v4872 = vld [vmem:[%s2 + $0x278] sm:$0xff]
  %v4873 = vld [vmem:[%s2 + $0x280] sm:$0xff]
  %v4874 = vld [vmem:[%s2 + $0x288] sm:$0xff]
  %v4875 = vld [vmem:[%s2 + $0x290] sm:$0xff]
  %v4876 = vld [vmem:[%s2 + $0x298] sm:$0xff]
  %v4877 = vld [vmem:[%s2 + $0x2a0] sm:$0xff]
  %v4878 = vld [vmem:[%s2 + $0x2a8] sm:$0xff]
  %v4879 = vld [vmem:[%s2 + $0x2b0] sm:$0xff]
  %v4880 = vld [vmem:[%s2 + $0x2b8] sm:$0xff]
  %v4881 = vld [vmem:[%s2 + $0x2c0] sm:$0xff]
  %v4882 = vld [vmem:[%s2 + $0x2c8] sm:$0xff]
  %v4883 = vld [vmem:[%s2 + $0x2d0] sm:$0xff]
  %v4884 = vld [vmem:[%s2 + $0x2d8] sm:$0xff]
  %v4885 = vld [vmem:[%s2 + $0x2e0] sm:$0xff]
  %v4886 = vld [vmem:[%s2 + $0x2e8] sm:$0xff]
  %v4887 = vld [vmem:[%s2 + $0x2f0] sm:$0xff]
  %v4888 = vld [vmem:[%s2 + $0x2f8] sm:$0xff]
  %v4889 = vld [vmem:[%s4] sm:$0x3f]
  %v4891 = vlaneseq
  %v4892 = vshrl.u32 %v4891, 7
  %v4893 = vsub.s32 0, %v4892
  %v4894 = vrot.slane %v4889, %v4893
  %v4895 = vlaneseq
  %v4896 = vshrl.u32 %v4895, 7
  %v4897 = vsub.s32 1, %v4896
  %v4898 = vrot.slane %v4889, %v4897
  %v4899 = vlaneseq
  %v4900 = vshrl.u32 %v4899, 7
  %v4901 = vsub.s32 2, %v4900
  %v4902 = vrot.slane %v4889, %v4901
  %v4903 = vlaneseq
  %v4904 = vshrl.u32 %v4903, 7
  %v4905 = vsub.s32 3, %v4904
  %v4906 = vrot.slane %v4889, %v4905
  %v4907 = vlaneseq
  %v4908 = vshrl.u32 %v4907, 7
  %v4909 = vsub.s32 4, %v4908
  %v4910 = vrot.slane %v4889, %v4909
  %v4911 = vlaneseq
  %v4912 = vshrl.u32 %v4911, 7
  %v4913 = vsub.s32 5, %v4912
  %v4914 = vrot.slane %v4889, %v4913
  %v5017 = vunpack.c.l.b16 %v4793
  %v5018 = vunpack.c.h.b16 %v4793
  %v5019 = vunpack.c.l.b16 %v4794
  %v5020 = vunpack.c.h.b16 %v4794
  %v5021 = vunpack.c.l.b16 %v4795
  %v5022 = vunpack.c.h.b16 %v4795
  %v5023 = vunpack.c.l.b16 %v4796
  %v5024 = vunpack.c.h.b16 %v4796
  %v5025 = vunpack.c.l.b16 %v4797
  %v5026 = vunpack.c.h.b16 %v4797
  %v5027 = vunpack.c.l.b16 %v4798
  %v5028 = vunpack.c.h.b16 %v4798
  %v5029 = vunpack.c.l.b16 %v4799
  %v5030 = vunpack.c.h.b16 %v4799
  %v5031 = vunpack.c.l.b16 %v4800
  %v5032 = vunpack.c.h.b16 %v4800
  %v5033 = vunpack.c.l.b16 %v4801
  %v5034 = vunpack.c.h.b16 %v4801
  %v5035 = vunpack.c.l.b16 %v4802
  %v5036 = vunpack.c.h.b16 %v4802
  %v5037 = vunpack.c.l.b16 %v4803
  %v5038 = vunpack.c.h.b16 %v4803
  %v5039 = vunpack.c.l.b16 %v4804
  %v5040 = vunpack.c.h.b16 %v4804
  %v5041 = vunpack.c.l.b16 %v4805
  %v5042 = vunpack.c.h.b16 %v4805
  %v5043 = vunpack.c.l.b16 %v4806
  %v5044 = vunpack.c.h.b16 %v4806
  %v5045 = vunpack.c.l.b16 %v4807
  %v5046 = vunpack.c.h.b16 %v4807
  %v5047 = vunpack.c.l.b16 %v4808
  %v5048 = vunpack.c.h.b16 %v4808
  %v5049 = vunpack.c.l.b16 %v4809
  %v5050 = vunpack.c.h.b16 %v4809
  %v5051 = vunpack.c.l.b16 %v4810
  %v5052 = vunpack.c.h.b16 %v4810
  %v5053 = vunpack.c.l.b16 %v4811
  %v5054 = vunpack.c.h.b16 %v4811
  %v5055 = vunpack.c.l.b16 %v4812
  %v5056 = vunpack.c.h.b16 %v4812
  %v5057 = vunpack.c.l.b16 %v4813
  %v5058 = vunpack.c.h.b16 %v4813
  %v5059 = vunpack.c.l.b16 %v4814
  %v5060 = vunpack.c.h.b16 %v4814
  %v5061 = vunpack.c.l.b16 %v4815
  %v5062 = vunpack.c.h.b16 %v4815
  %v5063 = vunpack.c.l.b16 %v4816
  %v5064 = vunpack.c.h.b16 %v4816
  %v5065 = vunpack.c.l.b16 %v4817
  %v5066 = vunpack.c.h.b16 %v4817
  %v5067 = vunpack.c.l.b16 %v4818
  %v5068 = vunpack.c.h.b16 %v4818
  %v5069 = vunpack.c.l.b16 %v4819
  %v5070 = vunpack.c.h.b16 %v4819
  %v5071 = vunpack.c.l.b16 %v4820
  %v5072 = vunpack.c.h.b16 %v4820
  %v5073 = vunpack.c.l.b16 %v4821
  %v5074 = vunpack.c.h.b16 %v4821
  %v5075 = vunpack.c.l.b16 %v4822
  %v5076 = vunpack.c.h.b16 %v4822
  %v5077 = vunpack.c.l.b16 %v4823
  %v5078 = vunpack.c.h.b16 %v4823
  %v5079 = vunpack.c.l.b16 %v4824
  %v5080 = vunpack.c.h.b16 %v4824
  %v5081 = vunpack.c.l.b16 %v4825
  %v5082 = vunpack.c.h.b16 %v4825
  %v5083 = vunpack.c.l.b16 %v4826
  %v5084 = vunpack.c.h.b16 %v4826
  %v5085 = vunpack.c.l.b16 %v4827
  %v5086 = vunpack.c.h.b16 %v4827
  %v5087 = vunpack.c.l.b16 %v4828
  %v5088 = vunpack.c.h.b16 %v4828
  %v5089 = vunpack.c.l.b16 %v4829
  %v5090 = vunpack.c.h.b16 %v4829
  %v5091 = vunpack.c.l.b16 %v4830
  %v5092 = vunpack.c.h.b16 %v4830
  %v5093 = vunpack.c.l.b16 %v4831
  %v5094 = vunpack.c.h.b16 %v4831
  %v5095 = vunpack.c.l.b16 %v4832
  %v5096 = vunpack.c.h.b16 %v4832
  %v5097 = vunpack.c.l.b16 %v4833
  %v5098 = vunpack.c.h.b16 %v4833
  %v5099 = vunpack.c.l.b16 %v4834
  %v5100 = vunpack.c.h.b16 %v4834
  %v5101 = vunpack.c.l.b16 %v4835
  %v5102 = vunpack.c.h.b16 %v4835
  %v5103 = vunpack.c.l.b16 %v4836
  %v5104 = vunpack.c.h.b16 %v4836
  %v5105 = vunpack.c.l.b16 %v4837
  %v5106 = vunpack.c.h.b16 %v4837
  %v5107 = vunpack.c.l.b16 %v4838
  %v5108 = vunpack.c.h.b16 %v4838
  %v5109 = vunpack.c.l.b16 %v4839
  %v5110 = vunpack.c.h.b16 %v4839
  %v5111 = vunpack.c.l.b16 %v4840
  %v5112 = vunpack.c.h.b16 %v4840
  %v5113 = vunpack.c.l.b16 %v4841
  %v5114 = vunpack.c.h.b16 %v4841
  %v5115 = vunpack.c.l.b16 %v4842
  %v5116 = vunpack.c.h.b16 %v4842
  %v5117 = vunpack.c.l.b16 %v4843
  %v5118 = vunpack.c.h.b16 %v4843
  %v5119 = vunpack.c.l.b16 %v4844
  %v5120 = vunpack.c.h.b16 %v4844
  %v5121 = vunpack.c.l.b16 %v4845
  %v5122 = vunpack.c.h.b16 %v4845
  %v5123 = vunpack.c.l.b16 %v4846
  %v5124 = vunpack.c.h.b16 %v4846
  %v5125 = vunpack.c.l.b16 %v4847
  %v5126 = vunpack.c.h.b16 %v4847
  %v5127 = vunpack.c.l.b16 %v4848
  %v5128 = vunpack.c.h.b16 %v4848
  %v5129 = vunpack.c.l.b16 %v4849
  %v5130 = vunpack.c.h.b16 %v4849
  %v5131 = vunpack.c.l.b16 %v4850
  %v5132 = vunpack.c.h.b16 %v4850
  %v5133 = vunpack.c.l.b16 %v4851
  %v5134 = vunpack.c.h.b16 %v4851
  %v5135 = vunpack.c.l.b16 %v4852
  %v5136 = vunpack.c.h.b16 %v4852
  %v5137 = vunpack.c.l.b16 %v4853
  %v5138 = vunpack.c.h.b16 %v4853
  %v5139 = vunpack.c.l.b16 %v4854
  %v5140 = vunpack.c.h.b16 %v4854
  %v5141 = vunpack.c.l.b16 %v4855
  %v5142 = vunpack.c.h.b16 %v4855
  %v5143 = vunpack.c.l.b16 %v4856
  %v5144 = vunpack.c.h.b16 %v4856
  %v5145 = vunpack.c.l.b16 %v4857
  %v5146 = vunpack.c.h.b16 %v4857
  %v5147 = vunpack.c.l.b16 %v4858
  %v5148 = vunpack.c.h.b16 %v4858
  %v5149 = vunpack.c.l.b16 %v4859
  %v5150 = vunpack.c.h.b16 %v4859
  %v5151 = vunpack.c.l.b16 %v4860
  %v5152 = vunpack.c.h.b16 %v4860
  %v5153 = vunpack.c.l.b16 %v4861
  %v5154 = vunpack.c.h.b16 %v4861
  %v5155 = vunpack.c.l.b16 %v4862
  %v5156 = vunpack.c.h.b16 %v4862
  %v5157 = vunpack.c.l.b16 %v4863
  %v5158 = vunpack.c.h.b16 %v4863
  %v5159 = vunpack.c.l.b16 %v4864
  %v5160 = vunpack.c.h.b16 %v4864
  %v5161 = vunpack.c.l.b16 %v4865
  %v5162 = vunpack.c.h.b16 %v4865
  %v5163 = vunpack.c.l.b16 %v4866
  %v5164 = vunpack.c.h.b16 %v4866
  %v5165 = vunpack.c.l.b16 %v4867
  %v5166 = vunpack.c.h.b16 %v4867
  %v5167 = vunpack.c.l.b16 %v4868
  %v5168 = vunpack.c.h.b16 %v4868
  %v5169 = vunpack.c.l.b16 %v4869
  %v5170 = vunpack.c.h.b16 %v4869
  %v5171 = vunpack.c.l.b16 %v4870
  %v5172 = vunpack.c.h.b16 %v4870
  %v5173 = vunpack.c.l.b16 %v4871
  %v5174 = vunpack.c.h.b16 %v4871
  %v5175 = vunpack.c.l.b16 %v4872
  %v5176 = vunpack.c.h.b16 %v4872
  %v5177 = vunpack.c.l.b16 %v4873
  %v5178 = vunpack.c.h.b16 %v4873
  %v5179 = vunpack.c.l.b16 %v4874
  %v5180 = vunpack.c.h.b16 %v4874
  %v5181 = vunpack.c.l.b16 %v4875
  %v5182 = vunpack.c.h.b16 %v4875
  %v5183 = vunpack.c.l.b16 %v4876
  %v5184 = vunpack.c.h.b16 %v4876
  %v5185 = vunpack.c.l.b16 %v4877
  %v5186 = vunpack.c.h.b16 %v4877
  %v5187 = vunpack.c.l.b16 %v4878
  %v5188 = vunpack.c.h.b16 %v4878
  %v5189 = vunpack.c.l.b16 %v4879
  %v5190 = vunpack.c.h.b16 %v4879
  %v5191 = vunpack.c.l.b16 %v4880
  %v5192 = vunpack.c.h.b16 %v4880
  %v5193 = vunpack.c.l.b16 %v4881
  %v5194 = vunpack.c.h.b16 %v4881
  %v5195 = vunpack.c.l.b16 %v4882
  %v5196 = vunpack.c.h.b16 %v4882
  %v5197 = vunpack.c.l.b16 %v4883
  %v5198 = vunpack.c.h.b16 %v4883
  %v5199 = vunpack.c.l.b16 %v4884
  %v5200 = vunpack.c.h.b16 %v4884
  %v5201 = vunpack.c.l.b16 %v4885
  %v5202 = vunpack.c.h.b16 %v4885
  %v5203 = vunpack.c.l.b16 %v4886
  %v5204 = vunpack.c.h.b16 %v4886
  %v5205 = vunpack.c.l.b16 %v4887
  %v5206 = vunpack.c.h.b16 %v4887
  %v5207 = vunpack.c.l.b16 %v4888
  %v5208 = vunpack.c.h.b16 %v4888
  %v5209 = vpack.c.b16 %v5023, %v5017
  %v5210 = vpack.c.b16 %v5024, %v5018
  %v5211 = vpack.c.b16 %v5025, %v5019
  %v5212 = vpack.c.b16 %v5026, %v5020
  %v5213 = vpack.c.b16 %v5027, %v5021
  %v5214 = vpack.c.b16 %v5028, %v5022
  %v5215 = vpack.c.b16 %v5035, %v5029
  %v5216 = vpack.c.b16 %v5036, %v5030
  %v5217 = vpack.c.b16 %v5037, %v5031
  %v5218 = vpack.c.b16 %v5038, %v5032
  %v5219 = vpack.c.b16 %v5039, %v5033
  %v5220 = vpack.c.b16 %v5040, %v5034
  %v5221 = vpack.c.b16 %v5047, %v5041
  %v5222 = vpack.c.b16 %v5048, %v5042
  %v5223 = vpack.c.b16 %v5049, %v5043
  %v5224 = vpack.c.b16 %v5050, %v5044
  %v5225 = vpack.c.b16 %v5051, %v5045
  %v5226 = vpack.c.b16 %v5052, %v5046
  %v5227 = vpack.c.b16 %v5059, %v5053
  %v5228 = vpack.c.b16 %v5060, %v5054
  %v5229 = vpack.c.b16 %v5061, %v5055
  %v5230 = vpack.c.b16 %v5062, %v5056
  %v5231 = vpack.c.b16 %v5063, %v5057
  %v5232 = vpack.c.b16 %v5064, %v5058
  %v5233 = vpack.c.b16 %v5071, %v5065
  %v5234 = vpack.c.b16 %v5072, %v5066
  %v5235 = vpack.c.b16 %v5073, %v5067
  %v5236 = vpack.c.b16 %v5074, %v5068
  %v5237 = vpack.c.b16 %v5075, %v5069
  %v5238 = vpack.c.b16 %v5076, %v5070
  %v5239 = vpack.c.b16 %v5083, %v5077
  %v5240 = vpack.c.b16 %v5084, %v5078
  %v5241 = vpack.c.b16 %v5085, %v5079
  %v5242 = vpack.c.b16 %v5086, %v5080
  %v5243 = vpack.c.b16 %v5087, %v5081
  %v5244 = vpack.c.b16 %v5088, %v5082
  %v5245 = vpack.c.b16 %v5095, %v5089
  %v5246 = vpack.c.b16 %v5096, %v5090
  %v5247 = vpack.c.b16 %v5097, %v5091
  %v5248 = vpack.c.b16 %v5098, %v5092
  %v5249 = vpack.c.b16 %v5099, %v5093
  %v5250 = vpack.c.b16 %v5100, %v5094
  %v5251 = vpack.c.b16 %v5107, %v5101
  %v5252 = vpack.c.b16 %v5108, %v5102
  %v5253 = vpack.c.b16 %v5109, %v5103
  %v5254 = vpack.c.b16 %v5110, %v5104
  %v5255 = vpack.c.b16 %v5111, %v5105
  %v5256 = vpack.c.b16 %v5112, %v5106
  %v5257 = vpack.c.b16 %v5119, %v5113
  %v5258 = vpack.c.b16 %v5120, %v5114
  %v5259 = vpack.c.b16 %v5121, %v5115
  %v5260 = vpack.c.b16 %v5122, %v5116
  %v5261 = vpack.c.b16 %v5123, %v5117
  %v5262 = vpack.c.b16 %v5124, %v5118
  %v5263 = vpack.c.b16 %v5131, %v5125
  %v5264 = vpack.c.b16 %v5132, %v5126
  %v5265 = vpack.c.b16 %v5133, %v5127
  %v5266 = vpack.c.b16 %v5134, %v5128
  %v5267 = vpack.c.b16 %v5135, %v5129
  %v5268 = vpack.c.b16 %v5136, %v5130
  %v5269 = vpack.c.b16 %v5143, %v5137
  %v5270 = vpack.c.b16 %v5144, %v5138
  %v5271 = vpack.c.b16 %v5145, %v5139
  %v5272 = vpack.c.b16 %v5146, %v5140
  %v5273 = vpack.c.b16 %v5147, %v5141
  %v5274 = vpack.c.b16 %v5148, %v5142
  %v5275 = vpack.c.b16 %v5155, %v5149
  %v5276 = vpack.c.b16 %v5156, %v5150
  %v5277 = vpack.c.b16 %v5157, %v5151
  %v5278 = vpack.c.b16 %v5158, %v5152
  %v5279 = vpack.c.b16 %v5159, %v5153
  %v5280 = vpack.c.b16 %v5160, %v5154
  %v5281 = vpack.c.b16 %v5167, %v5161
  %v5282 = vpack.c.b16 %v5168, %v5162
  %v5283 = vpack.c.b16 %v5169, %v5163
  %v5284 = vpack.c.b16 %v5170, %v5164
  %v5285 = vpack.c.b16 %v5171, %v5165
  %v5286 = vpack.c.b16 %v5172, %v5166
  %v5287 = vpack.c.b16 %v5179, %v5173
  %v5288 = vpack.c.b16 %v5180, %v5174
  %v5289 = vpack.c.b16 %v5181, %v5175
  %v5290 = vpack.c.b16 %v5182, %v5176
  %v5291 = vpack.c.b16 %v5183, %v5177
  %v5292 = vpack.c.b16 %v5184, %v5178
  %v5293 = vpack.c.b16 %v5191, %v5185
  %v5294 = vpack.c.b16 %v5192, %v5186
  %v5295 = vpack.c.b16 %v5193, %v5187
  %v5296 = vpack.c.b16 %v5194, %v5188
  %v5297 = vpack.c.b16 %v5195, %v5189
  %v5298 = vpack.c.b16 %v5196, %v5190
  %v5299 = vpack.c.b16 %v5203, %v5197
  %v5300 = vpack.c.b16 %v5204, %v5198
  %v5301 = vpack.c.b16 %v5205, %v5199
  %v5302 = vpack.c.b16 %v5206, %v5200
  %v5303 = vpack.c.b16 %v5207, %v5201
  %v5304 = vpack.c.b16 %v5208, %v5202
  %5401 = vmatprep.subr.bf16.mxu0 %v5210
  %5402 = vmatpush1.bf16.msra.mxu0 %v5209
  %5403 = vmatprep.subr.bf16.mxu0 %v5216
  %5404 = vmatpush1.bf16.msra.mxu0 %v5215
  %5405 = vmatprep.subr.bf16.mxu0 %v5222
  %5406 = vmatpush1.bf16.msra.mxu0 %v5221
  %5407 = vmatprep.subr.bf16.mxu0 %v5228
  %5408 = vmatpush1.bf16.msra.mxu0 %v5227
  %5409 = vmatprep.subr.bf16.mxu0 %v5234
  %5410 = vmatpush1.bf16.msra.mxu0 %v5233
  %5411 = vmatprep.subr.bf16.mxu0 %v5240
  %5412 = vmatpush1.bf16.msra.mxu0 %v5239
  %5413 = vmatprep.subr.bf16.mxu0 %v5246
  %5414 = vmatpush1.bf16.msra.mxu0 %v5245
  %5415 = vmatprep.subr.bf16.mxu0 %v5252
  %5416 = vmatpush1.bf16.msra.mxu0 %v5251
  %5417 = vmatprep.subr.bf16.mxu0 %v5258
  %5418 = vmatpush1.bf16.msra.mxu0 %v5257
  %5419 = vmatprep.subr.bf16.mxu0 %v5264
  %5420 = vmatpush1.bf16.msra.mxu0 %v5263
  %5421 = vmatprep.subr.bf16.mxu0 %v5270
  %5422 = vmatpush1.bf16.msra.mxu0 %v5269
  %5423 = vmatprep.subr.bf16.mxu0 %v5276
  %5424 = vmatpush1.bf16.msra.mxu0 %v5275
  %5425 = vmatprep.subr.bf16.mxu0 %v5282
  %5426 = vmatpush1.bf16.msra.mxu0 %v5281
  %5427 = vmatprep.subr.bf16.mxu0 %v5288
  %5428 = vmatpush1.bf16.msra.mxu0 %v5287
  %5429 = vmatprep.subr.bf16.mxu0 %v5294
  %5430 = vmatpush1.bf16.msra.mxu0 %v5293
  %5431 = vmatprep.subr.bf16.mxu0 %v5300
  %5432 = vmatpush1.bf16.msra.mxu0 %v5299
  %5433 = vmatprep.mubr.bf16.mxu0 %v4792
  %5434 = vmatmul.mubr.bf16.gmra.mrb[0].mxu0 %v4791
  %v5435 = vpop.f32.mrb[0].mxu0
  %v5436 = vadd.f32 %v4894, %v5435
  %v5437 = vpop.f32.mrb[0].mxu0
  %v5438 = vadd.f32 %v4898, %v5437
  %v5439 = vpop.f32.mrb[0].mxu0
  %v5440 = vpop.f32.mrb[0].mxu0
  %5441 = vdwg.mxu0
  %5442 = vmatprep.subr.bf16.mxu0 %v5212
  %5443 = vmatpush1.bf16.msra.mxu0 %v5211
  %5444 = vmatprep.subr.bf16.mxu0 %v5218
  %5445 = vmatpush1.bf16.msra.mxu0 %v5217
  %5446 = vmatprep.subr.bf16.mxu0 %v5224
  %5447 = vmatpush1.bf16.msra.mxu0 %v5223
  %5448 = vmatprep.subr.bf16.mxu0 %v5230
  %5449 = vmatpush1.bf16.msra.mxu0 %v5229
  %5450 = vmatprep.subr.bf16.mxu0 %v5236
  %5451 = vmatpush1.bf16.msra.mxu0 %v5235
  %5452 = vmatprep.subr.bf16.mxu0 %v5242
  %5453 = vmatpush1.bf16.msra.mxu0 %v5241
  %5454 = vmatprep.subr.bf16.mxu0 %v5248
  %5455 = vmatpush1.bf16.msra.mxu0 %v5247
  %5456 = vmatprep.subr.bf16.mxu0 %v5254
  %5457 = vmatpush1.bf16.msra.mxu0 %v5253
  %5458 = vmatprep.subr.bf16.mxu0 %v5260
  %5459 = vmatpush1.bf16.msra.mxu0 %v5259
  %5460 = vmatprep.subr.bf16.mxu0 %v5266
  %5461 = vmatpush1.bf16.msra.mxu0 %v5265
  %5462 = vmatprep.subr.bf16.mxu0 %v5272
  %5463 = vmatpush1.bf16.msra.mxu0 %v5271
  %5464 = vmatprep.subr.bf16.mxu0 %v5278
  %5465 = vmatpush1.bf16.msra.mxu0 %v5277
  %5466 = vmatprep.subr.bf16.mxu0 %v5284
  %5467 = vmatpush1.bf16.msra.mxu0 %v5283
  %5468 = vmatprep.subr.bf16.mxu0 %v5290
  %5469 = vmatpush1.bf16.msra.mxu0 %v5289
  %5470 = vmatprep.subr.bf16.mxu0 %v5296
  %5471 = vmatpush1.bf16.msra.mxu0 %v5295
  %5472 = vmatprep.subr.bf16.mxu0 %v5302
  %5473 = vmatpush1.bf16.msra.mxu0 %v5301
  %5474 = vmatprep.mubr.bf16.mxu0 %v4792
  %5475 = vmatmul.mubr.bf16.gmra.mrb[0].mxu0 %v4791
  %v5476 = vpop.f32.mrb[0].mxu0
  %v5477 = vadd.f32 %v4902, %v5476
  %v5478 = vpop.f32.mrb[0].mxu0
  %v5479 = vadd.f32 %v4906, %v5478
  %v5480 = vpop.f32.mrb[0].mxu0
  %v5481 = vpop.f32.mrb[0].mxu0
  %5482 = vdwg.mxu0
  %5483 = vmatprep.subr.bf16.mxu0 %v5214
  %5484 = vmatpush1.bf16.msra.mxu0 %v5213
  %5485 = vmatprep.subr.bf16.mxu0 %v5220
  %5486 = vmatpush1.bf16.msra.mxu0 %v5219
  %5487 = vmatprep.subr.bf16.mxu0 %v5226
  %5488 = vmatpush1.bf16.msra.mxu0 %v5225
  %5489 = vmatprep.subr.bf16.mxu0 %v5232
  %5490 = vmatpush1.bf16.msra.mxu0 %v5231
  %5491 = vmatprep.subr.bf16.mxu0 %v5238
  %5492 = vmatpush1.bf16.msra.mxu0 %v5237
  %5493 = vmatprep.subr.bf16.mxu0 %v5244
  %5494 = vmatpush1.bf16.msra.mxu0 %v5243
  %5495 = vmatprep.subr.bf16.mxu0 %v5250
  %5496 = vmatpush1.bf16.msra.mxu0 %v5249
  %5497 = vmatprep.subr.bf16.mxu0 %v5256
  %5498 = vmatpush1.bf16.msra.mxu0 %v5255
  %5499 = vmatprep.subr.bf16.mxu0 %v5262
  %5500 = vmatpush1.bf16.msra.mxu0 %v5261
  %5501 = vmatprep.subr.bf16.mxu0 %v5268
  %5502 = vmatpush1.bf16.msra.mxu0 %v5267
  %5503 = vmatprep.subr.bf16.mxu0 %v5274
  %5504 = vmatpush1.bf16.msra.mxu0 %v5273
  %5505 = vmatprep.subr.bf16.mxu0 %v5280
  %5506 = vmatpush1.bf16.msra.mxu0 %v5279
  %5507 = vmatprep.subr.bf16.mxu0 %v5286
  %5508 = vmatpush1.bf16.msra.mxu0 %v5285
  %5509 = vmatprep.subr.bf16.mxu0 %v5292
  %5510 = vmatpush1.bf16.msra.mxu0 %v5291
  %5511 = vmatprep.subr.bf16.mxu0 %v5298
  %5512 = vmatpush1.bf16.msra.mxu0 %v5297
  %5513 = vmatprep.subr.bf16.mxu0 %v5304
  %5514 = vmatpush1.bf16.msra.mxu0 %v5303
  %5515 = vmatprep.mubr.bf16.mxu0 %v4792
  %5516 = vmatmul.mubr.bf16.gmra.mrb[0].mxu0 %v4791
  %v5517 = vpop.f32.mrb[0].mxu0
  %v5518 = vadd.f32 %v4910, %v5517
  %v5519 = vpop.f32.mrb[0].mxu0
  %v5520 = vadd.f32 %v4914, %v5519
  %v5521 = vpop.f32.mrb[0].mxu0
  %v5522 = vpop.f32.mrb[0].mxu0
  %5523 = vdwg.mxu0
  %v5526 = vrot.slane %v5436, 6
  %v5527 = vrot.slane %v5438, 6
  %v5530 = vadd.f32 %v4785, %v5526
  %v5531 = vadd.f32 %v4786, %v5527
  %v5532 = vsub.f32 0.0, %v5530
  %v5533 = vsub.f32 0.0, %v5531
  %v5534 = vmul.f32 %v5532, 1.442695
  %v5535 = vpow.pop %v5534
  %v5536 = vmul.f32 %v5533, 1.442695
  %v5537 = vpow.pop %v5536
  %v5538 = vadd.f32 %v5535, 1.0
  %v5539 = vadd.f32 %v5537, 1.0
  %v5540 = vrcp.pop %v5538
  %v5541 = vmul.f32 1.0, %v5540
  %v5542 = vrcp.pop %v5539
  %v5543 = vmul.f32 1.0, %v5542
  %v5546 = vrot.slane %v5477, 6
  %v5547 = vrot.slane %v5479, 6
  %v5550 = vadd.f32 %v4787, %v5546
  %v5551 = vadd.f32 %v4788, %v5547
  %v5552 = vsub.f32 0.0, %v5550
  %v5553 = vsub.f32 0.0, %v5551
  %v5554 = vmul.f32 %v5552, 1.442695
  %v5555 = vpow.pop %v5554
  %v5556 = vmul.f32 %v5553, 1.442695
  %v5557 = vpow.pop %v5556
  %v5558 = vadd.f32 %v5555, 1.0
  %v5559 = vadd.f32 %v5557, 1.0
  %v5560 = vrcp.pop %v5558
  %v5561 = vmul.f32 1.0, %v5560
  %v5562 = vrcp.pop %v5559
  %v5563 = vmul.f32 1.0, %v5562
  %v5566 = vrot.slane %v5518, 6
  %v5567 = vrot.slane %v5520, 6
  %v5570 = vmul.f32 %v5541, %v5566
  %v5571 = vmul.f32 %v5543, %v5567
  %v5572 = vadd.f32 %v4789, %v5570
  %v5573 = vadd.f32 %v4790, %v5571
  %v5574 = vtanh.pop %v5572
  %v5575 = vtanh.pop %v5573
  %v5576 = vsub.f32 1.0, %v5561
  %v5577 = vsub.f32 1.0, %v5563
  %v5578 = vmul.f32 %v5576, %v5574
  %v5579 = vmul.f32 %v5577, %v5575
  %v5582 = vrot.slane %v4781, 6
  %v5583 = vrot.slane %v4782, 6
  %v5586 = vmul.f32 %v5561, %v5582
  %v5587 = vmul.f32 %v5563, %v5583
  %v5588 = vadd.f32 %v5578, %v5586
  %v5589 = vadd.f32 %v5579, %v5587
  %5590 = vst [vmem:[#allocation3 + $0x10] sm:$0xc] %v5588
  %5591 = vst [vmem:[#allocation3 + $0x18] sm:$0xc] %v5589
  %v5592 = vld [vmem:[#allocation2 + $0x30] sm:$0x30]
  %v5593 = vld [vmem:[#allocation2 + $0x38] sm:$0x30]
  %v5594 = vld [vmem:[#allocation2 + $0x40] sm:$0x30]
  %v5595 = vld [vmem:[#allocation2 + $0x48] sm:$0x30]
  %v5596 = vld [vmem:[#allocation2 + $0x50] sm:$0x30]
  %v5597 = vld [vmem:[#allocation2 + $0x58] sm:$0x30]
  %v5598 = vpack.c.bf16 %v5588, %v5588
  %v5599 = vpack.c.bf16 %v5589, %v5589
  %v5600 = vld [vmem:[%s2] sm:$0xff]
  %v5601 = vld [vmem:[%s2 + $0x8] sm:$0xff]
  %v5602 = vld [vmem:[%s2 + $0x10] sm:$0xff]
  %v5603 = vld [vmem:[%s2 + $0x18] sm:$0xff]
  %v5604 = vld [vmem:[%s2 + $0x20] sm:$0xff]
  %v5605 = vld [vmem:[%s2 + $0x28] sm:$0xff]
  %v5606 = vld [vmem:[%s2 + $0x30] sm:$0xff]
  %v5607 = vld [vmem:[%s2 + $0x38] sm:$0xff]
  %v5608 = vld [vmem:[%s2 + $0x40] sm:$0xff]
  %v5609 = vld [vmem:[%s2 + $0x48] sm:$0xff]
  %v5610 = vld [vmem:[%s2 + $0x50] sm:$0xff]
  %v5611 = vld [vmem:[%s2 + $0x58] sm:$0xff]
  %v5612 = vld [vmem:[%s2 + $0x60] sm:$0xff]
  %v5613 = vld [vmem:[%s2 + $0x68] sm:$0xff]
  %v5614 = vld [vmem:[%s2 + $0x70] sm:$0xff]
  %v5615 = vld [vmem:[%s2 + $0x78] sm:$0xff]
  %v5616 = vld [vmem:[%s2 + $0x80] sm:$0xff]
  %v5617 = vld [vmem:[%s2 + $0x88] sm:$0xff]
  %v5618 = vld [vmem:[%s2 + $0x90] sm:$0xff]
  %v5619 = vld [vmem:[%s2 + $0x98] sm:$0xff]
  %v5620 = vld [vmem:[%s2 + $0xa0] sm:$0xff]
  %v5621 = vld [vmem:[%s2 + $0xa8] sm:$0xff]
  %v5622 = vld [vmem:[%s2 + $0xb0] sm:$0xff]
  %v5623 = vld [vmem:[%s2 + $0xb8] sm:$0xff]
  %v5624 = vld [vmem:[%s2 + $0xc0] sm:$0xff]
  %v5625 = vld [vmem:[%s2 + $0xc8] sm:$0xff]
  %v5626 = vld [vmem:[%s2 + $0xd0] sm:$0xff]
  %v5627 = vld [vmem:[%s2 + $0xd8] sm:$0xff]
  %v5628 = vld [vmem:[%s2 + $0xe0] sm:$0xff]
  %v5629 = vld [vmem:[%s2 + $0xe8] sm:$0xff]
  %v5630 = vld [vmem:[%s2 + $0xf0] sm:$0xff]
  %v5631 = vld [vmem:[%s2 + $0xf8] sm:$0xff]
  %v5632 = vld [vmem:[%s2 + $0x100] sm:$0xff]
  %v5633 = vld [vmem:[%s2 + $0x108] sm:$0xff]
  %v5634 = vld [vmem:[%s2 + $0x110] sm:$0xff]
  %v5635 = vld [vmem:[%s2 + $0x118] sm:$0xff]
  %v5636 = vld [vmem:[%s2 + $0x120] sm:$0xff]
  %v5637 = vld [vmem:[%s2 + $0x128] sm:$0xff]
  %v5638 = vld [vmem:[%s2 + $0x130] sm:$0xff]
  %v5639 = vld [vmem:[%s2 + $0x138] sm:$0xff]
  %v5640 = vld [vmem:[%s2 + $0x140] sm:$0xff]
  %v5641 = vld [vmem:[%s2 + $0x148] sm:$0xff]
  %v5642 = vld [vmem:[%s2 + $0x150] sm:$0xff]
  %v5643 = vld [vmem:[%s2 + $0x158] sm:$0xff]
  %v5644 = vld [vmem:[%s2 + $0x160] sm:$0xff]
  %v5645 = vld [vmem:[%s2 + $0x168] sm:$0xff]
  %v5646 = vld [vmem:[%s2 + $0x170] sm:$0xff]
  %v5647 = vld [vmem:[%s2 + $0x178] sm:$0xff]
  %v5648 = vld [vmem:[%s2 + $0x180] sm:$0xff]
  %v5649 = vld [vmem:[%s2 + $0x188] sm:$0xff]
  %v5650 = vld [vmem:[%s2 + $0x190] sm:$0xff]
  %v5651 = vld [vmem:[%s2 + $0x198] sm:$0xff]
  %v5652 = vld [vmem:[%s2 + $0x1a0] sm:$0xff]
  %v5653 = vld [vmem:[%s2 + $0x1a8] sm:$0xff]
  %v5654 = vld [vmem:[%s2 + $0x1b0] sm:$0xff]
  %v5655 = vld [vmem:[%s2 + $0x1b8] sm:$0xff]
  %v5656 = vld [vmem:[%s2 + $0x1c0] sm:$0xff]
  %v5657 = vld [vmem:[%s2 + $0x1c8] sm:$0xff]
  %v5658 = vld [vmem:[%s2 + $0x1d0] sm:$0xff]
  %v5659 = vld [vmem:[%s2 + $0x1d8] sm:$0xff]
  %v5660 = vld [vmem:[%s2 + $0x1e0] sm:$0xff]
  %v5661 = vld [vmem:[%s2 + $0x1e8] sm:$0xff]
  %v5662 = vld [vmem:[%s2 + $0x1f0] sm:$0xff]
  %v5663 = vld [vmem:[%s2 + $0x1f8] sm:$0xff]
  %v5664 = vld [vmem:[%s2 + $0x200] sm:$0xff]
  %v5665 = vld [vmem:[%s2 + $0x208] sm:$0xff]
  %v5666 = vld [vmem:[%s2 + $0x210] sm:$0xff]
  %v5667 = vld [vmem:[%s2 + $0x218] sm:$0xff]
  %v5668 = vld [vmem:[%s2 + $0x220] sm:$0xff]
  %v5669 = vld [vmem:[%s2 + $0x228] sm:$0xff]
  %v5670 = vld [vmem:[%s2 + $0x230] sm:$0xff]
  %v5671 = vld [vmem:[%s2 + $0x238] sm:$0xff]
  %v5672 = vld [vmem:[%s2 + $0x240] sm:$0xff]
  %v5673 = vld [vmem:[%s2 + $0x248] sm:$0xff]
  %v5674 = vld [vmem:[%s2 + $0x250] sm:$0xff]
  %v5675 = vld [vmem:[%s2 + $0x258] sm:$0xff]
  %v5676 = vld [vmem:[%s2 + $0x260] sm:$0xff]
  %v5677 = vld [vmem:[%s2 + $0x268] sm:$0xff]
  %v5678 = vld [vmem:[%s2 + $0x270] sm:$0xff]
  %v5679 = vld [vmem:[%s2 + $0x278] sm:$0xff]
  %v5680 = vld [vmem:[%s2 + $0x280] sm:$0xff]
  %v5681 = vld [vmem:[%s2 + $0x288] sm:$0xff]
  %v5682 = vld [vmem:[%s2 + $0x290] sm:$0xff]
  %v5683 = vld [vmem:[%s2 + $0x298] sm:$0xff]
  %v5684 = vld [vmem:[%s2 + $0x2a0] sm:$0xff]
  %v5685 = vld [vmem:[%s2 + $0x2a8] sm:$0xff]
  %v5686 = vld [vmem:[%s2 + $0x2b0] sm:$0xff]
  %v5687 = vld [vmem:[%s2 + $0x2b8] sm:$0xff]
  %v5688 = vld [vmem:[%s2 + $0x2c0] sm:$0xff]
  %v5689 = vld [vmem:[%s2 + $0x2c8] sm:$0xff]
  %v5690 = vld [vmem:[%s2 + $0x2d0] sm:$0xff]
  %v5691 = vld [vmem:[%s2 + $0x2d8] sm:$0xff]
  %v5692 = vld [vmem:[%s2 + $0x2e0] sm:$0xff]
  %v5693 = vld [vmem:[%s2 + $0x2e8] sm:$0xff]
  %v5694 = vld [vmem:[%s2 + $0x2f0] sm:$0xff]
  %v5695 = vld [vmem:[%s2 + $0x2f8] sm:$0xff]
  %v5696 = vld [vmem:[%s4] sm:$0x3f]
  %v5698 = vlaneseq
  %v5699 = vshrl.u32 %v5698, 7
  %v5700 = vsub.s32 0, %v5699
  %v5701 = vrot.slane %v5696, %v5700
  %v5702 = vlaneseq
  %v5703 = vshrl.u32 %v5702, 7
  %v5704 = vsub.s32 1, %v5703
  %v5705 = vrot.slane %v5696, %v5704
  %v5706 = vlaneseq
  %v5707 = vshrl.u32 %v5706, 7
  %v5708 = vsub.s32 2, %v5707
  %v5709 = vrot.slane %v5696, %v5708
  %v5710 = vlaneseq
  %v5711 = vshrl.u32 %v5710, 7
  %v5712 = vsub.s32 3, %v5711
  %v5713 = vrot.slane %v5696, %v5712
  %v5714 = vlaneseq
  %v5715 = vshrl.u32 %v5714, 7
  %v5716 = vsub.s32 4, %v5715
  %v5717 = vrot.slane %v5696, %v5716
  %v5718 = vlaneseq
  %v5719 = vshrl.u32 %v5718, 7
  %v5720 = vsub.s32 5, %v5719
  %v5721 = vrot.slane %v5696, %v5720
  %v5730 = vrot.slane %v5598, 1
  %v5731 = vrot.slane %v5599, 1
  %v5830 = vunpack.c.l.b16 %v5600
  %v5831 = vunpack.c.h.b16 %v5600
  %v5832 = vunpack.c.l.b16 %v5601
  %v5833 = vunpack.c.h.b16 %v5601
  %v5834 = vunpack.c.l.b16 %v5602
  %v5835 = vunpack.c.h.b16 %v5602
  %v5836 = vunpack.c.l.b16 %v5603
  %v5837 = vunpack.c.h.b16 %v5603
  %v5838 = vunpack.c.l.b16 %v5604
  %v5839 = vunpack.c.h.b16 %v5604
  %v5840 = vunpack.c.l.b16 %v5605
  %v5841 = vunpack.c.h.b16 %v5605
  %v5842 = vunpack.c.l.b16 %v5606
  %v5843 = vunpack.c.h.b16 %v5606
  %v5844 = vunpack.c.l.b16 %v5607
  %v5845 = vunpack.c.h.b16 %v5607
  %v5846 = vunpack.c.l.b16 %v5608
  %v5847 = vunpack.c.h.b16 %v5608
  %v5848 = vunpack.c.l.b16 %v5609
  %v5849 = vunpack.c.h.b16 %v5609
  %v5850 = vunpack.c.l.b16 %v5610
  %v5851 = vunpack.c.h.b16 %v5610
  %v5852 = vunpack.c.l.b16 %v5611
  %v5853 = vunpack.c.h.b16 %v5611
  %v5854 = vunpack.c.l.b16 %v5612
  %v5855 = vunpack.c.h.b16 %v5612
  %v5856 = vunpack.c.l.b16 %v5613
  %v5857 = vunpack.c.h.b16 %v5613
  %v5858 = vunpack.c.l.b16 %v5614
  %v5859 = vunpack.c.h.b16 %v5614
  %v5860 = vunpack.c.l.b16 %v5615
  %v5861 = vunpack.c.h.b16 %v5615
  %v5862 = vunpack.c.l.b16 %v5616
  %v5863 = vunpack.c.h.b16 %v5616
  %v5864 = vunpack.c.l.b16 %v5617
  %v5865 = vunpack.c.h.b16 %v5617
  %v5866 = vunpack.c.l.b16 %v5618
  %v5867 = vunpack.c.h.b16 %v5618
  %v5868 = vunpack.c.l.b16 %v5619
  %v5869 = vunpack.c.h.b16 %v5619
  %v5870 = vunpack.c.l.b16 %v5620
  %v5871 = vunpack.c.h.b16 %v5620
  %v5872 = vunpack.c.l.b16 %v5621
  %v5873 = vunpack.c.h.b16 %v5621
  %v5874 = vunpack.c.l.b16 %v5622
  %v5875 = vunpack.c.h.b16 %v5622
  %v5876 = vunpack.c.l.b16 %v5623
  %v5877 = vunpack.c.h.b16 %v5623
  %v5878 = vunpack.c.l.b16 %v5624
  %v5879 = vunpack.c.h.b16 %v5624
  %v5880 = vunpack.c.l.b16 %v5625
  %v5881 = vunpack.c.h.b16 %v5625
  %v5882 = vunpack.c.l.b16 %v5626
  %v5883 = vunpack.c.h.b16 %v5626
  %v5884 = vunpack.c.l.b16 %v5627
  %v5885 = vunpack.c.h.b16 %v5627
  %v5886 = vunpack.c.l.b16 %v5628
  %v5887 = vunpack.c.h.b16 %v5628
  %v5888 = vunpack.c.l.b16 %v5629
  %v5889 = vunpack.c.h.b16 %v5629
  %v5890 = vunpack.c.l.b16 %v5630
  %v5891 = vunpack.c.h.b16 %v5630
  %v5892 = vunpack.c.l.b16 %v5631
  %v5893 = vunpack.c.h.b16 %v5631
  %v5894 = vunpack.c.l.b16 %v5632
  %v5895 = vunpack.c.h.b16 %v5632
  %v5896 = vunpack.c.l.b16 %v5633
  %v5897 = vunpack.c.h.b16 %v5633
  %v5898 = vunpack.c.l.b16 %v5634
  %v5899 = vunpack.c.h.b16 %v5634
  %v5900 = vunpack.c.l.b16 %v5635
  %v5901 = vunpack.c.h.b16 %v5635
  %v5902 = vunpack.c.l.b16 %v5636
  %v5903 = vunpack.c.h.b16 %v5636
  %v5904 = vunpack.c.l.b16 %v5637
  %v5905 = vunpack.c.h.b16 %v5637
  %v5906 = vunpack.c.l.b16 %v5638
  %v5907 = vunpack.c.h.b16 %v5638
  %v5908 = vunpack.c.l.b16 %v5639
  %v5909 = vunpack.c.h.b16 %v5639
  %v5910 = vunpack.c.l.b16 %v5640
  %v5911 = vunpack.c.h.b16 %v5640
  %v5912 = vunpack.c.l.b16 %v5641
  %v5913 = vunpack.c.h.b16 %v5641
  %v5914 = vunpack.c.l.b16 %v5642
  %v5915 = vunpack.c.h.b16 %v5642
  %v5916 = vunpack.c.l.b16 %v5643
  %v5917 = vunpack.c.h.b16 %v5643
  %v5918 = vunpack.c.l.b16 %v5644
  %v5919 = vunpack.c.h.b16 %v5644
  %v5920 = vunpack.c.l.b16 %v5645
  %v5921 = vunpack.c.h.b16 %v5645
  %v5922 = vunpack.c.l.b16 %v5646
  %v5923 = vunpack.c.h.b16 %v5646
  %v5924 = vunpack.c.l.b16 %v5647
  %v5925 = vunpack.c.h.b16 %v5647
  %v5926 = vunpack.c.l.b16 %v5648
  %v5927 = vunpack.c.h.b16 %v5648
  %v5928 = vunpack.c.l.b16 %v5649
  %v5929 = vunpack.c.h.b16 %v5649
  %v5930 = vunpack.c.l.b16 %v5650
  %v5931 = vunpack.c.h.b16 %v5650
  %v5932 = vunpack.c.l.b16 %v5651
  %v5933 = vunpack.c.h.b16 %v5651
  %v5934 = vunpack.c.l.b16 %v5652
  %v5935 = vunpack.c.h.b16 %v5652
  %v5936 = vunpack.c.l.b16 %v5653
  %v5937 = vunpack.c.h.b16 %v5653
  %v5938 = vunpack.c.l.b16 %v5654
  %v5939 = vunpack.c.h.b16 %v5654
  %v5940 = vunpack.c.l.b16 %v5655
  %v5941 = vunpack.c.h.b16 %v5655
  %v5942 = vunpack.c.l.b16 %v5656
  %v5943 = vunpack.c.h.b16 %v5656
  %v5944 = vunpack.c.l.b16 %v5657
  %v5945 = vunpack.c.h.b16 %v5657
  %v5946 = vunpack.c.l.b16 %v5658
  %v5947 = vunpack.c.h.b16 %v5658
  %v5948 = vunpack.c.l.b16 %v5659
  %v5949 = vunpack.c.h.b16 %v5659
  %v5950 = vunpack.c.l.b16 %v5660
  %v5951 = vunpack.c.h.b16 %v5660
  %v5952 = vunpack.c.l.b16 %v5661
  %v5953 = vunpack.c.h.b16 %v5661
  %v5954 = vunpack.c.l.b16 %v5662
  %v5955 = vunpack.c.h.b16 %v5662
  %v5956 = vunpack.c.l.b16 %v5663
  %v5957 = vunpack.c.h.b16 %v5663
  %v5958 = vunpack.c.l.b16 %v5664
  %v5959 = vunpack.c.h.b16 %v5664
  %v5960 = vunpack.c.l.b16 %v5665
  %v5961 = vunpack.c.h.b16 %v5665
  %v5962 = vunpack.c.l.b16 %v5666
  %v5963 = vunpack.c.h.b16 %v5666
  %v5964 = vunpack.c.l.b16 %v5667
  %v5965 = vunpack.c.h.b16 %v5667
  %v5966 = vunpack.c.l.b16 %v5668
  %v5967 = vunpack.c.h.b16 %v5668
  %v5968 = vunpack.c.l.b16 %v5669
  %v5969 = vunpack.c.h.b16 %v5669
  %v5970 = vunpack.c.l.b16 %v5670
  %v5971 = vunpack.c.h.b16 %v5670
  %v5972 = vunpack.c.l.b16 %v5671
  %v5973 = vunpack.c.h.b16 %v5671
  %v5974 = vunpack.c.l.b16 %v5672
  %v5975 = vunpack.c.h.b16 %v5672
  %v5976 = vunpack.c.l.b16 %v5673
  %v5977 = vunpack.c.h.b16 %v5673
  %v5978 = vunpack.c.l.b16 %v5674
  %v5979 = vunpack.c.h.b16 %v5674
  %v5980 = vunpack.c.l.b16 %v5675
  %v5981 = vunpack.c.h.b16 %v5675
  %v5982 = vunpack.c.l.b16 %v5676
  %v5983 = vunpack.c.h.b16 %v5676
  %v5984 = vunpack.c.l.b16 %v5677
  %v5985 = vunpack.c.h.b16 %v5677
  %v5986 = vunpack.c.l.b16 %v5678
  %v5987 = vunpack.c.h.b16 %v5678
  %v5988 = vunpack.c.l.b16 %v5679
  %v5989 = vunpack.c.h.b16 %v5679
  %v5990 = vunpack.c.l.b16 %v5680
  %v5991 = vunpack.c.h.b16 %v5680
  %v5992 = vunpack.c.l.b16 %v5681
  %v5993 = vunpack.c.h.b16 %v5681
  %v5994 = vunpack.c.l.b16 %v5682
  %v5995 = vunpack.c.h.b16 %v5682
  %v5996 = vunpack.c.l.b16 %v5683
  %v5997 = vunpack.c.h.b16 %v5683
  %v5998 = vunpack.c.l.b16 %v5684
  %v5999 = vunpack.c.h.b16 %v5684
  %v6000 = vunpack.c.l.b16 %v5685
  %v6001 = vunpack.c.h.b16 %v5685
  %v6002 = vunpack.c.l.b16 %v5686
  %v6003 = vunpack.c.h.b16 %v5686
  %v6004 = vunpack.c.l.b16 %v5687
  %v6005 = vunpack.c.h.b16 %v5687
  %v6006 = vunpack.c.l.b16 %v5688
  %v6007 = vunpack.c.h.b16 %v5688
  %v6008 = vunpack.c.l.b16 %v5689
  %v6009 = vunpack.c.h.b16 %v5689
  %v6010 = vunpack.c.l.b16 %v5690
  %v6011 = vunpack.c.h.b16 %v5690
  %v6012 = vunpack.c.l.b16 %v5691
  %v6013 = vunpack.c.h.b16 %v5691
  %v6014 = vunpack.c.l.b16 %v5692
  %v6015 = vunpack.c.h.b16 %v5692
  %v6016 = vunpack.c.l.b16 %v5693
  %v6017 = vunpack.c.h.b16 %v5693
  %v6018 = vunpack.c.l.b16 %v5694
  %v6019 = vunpack.c.h.b16 %v5694
  %v6020 = vunpack.c.l.b16 %v5695
  %v6021 = vunpack.c.h.b16 %v5695
  %v6022 = vpack.c.b16 %v5836, %v5830
  %v6023 = vpack.c.b16 %v5837, %v5831
  %v6024 = vpack.c.b16 %v5838, %v5832
  %v6025 = vpack.c.b16 %v5839, %v5833
  %v6026 = vpack.c.b16 %v5840, %v5834
  %v6027 = vpack.c.b16 %v5841, %v5835
  %v6028 = vpack.c.b16 %v5848, %v5842
  %v6029 = vpack.c.b16 %v5849, %v5843
  %v6030 = vpack.c.b16 %v5850, %v5844
  %v6031 = vpack.c.b16 %v5851, %v5845
  %v6032 = vpack.c.b16 %v5852, %v5846
  %v6033 = vpack.c.b16 %v5853, %v5847
  %v6034 = vpack.c.b16 %v5860, %v5854
  %v6035 = vpack.c.b16 %v5861, %v5855
  %v6036 = vpack.c.b16 %v5862, %v5856
  %v6037 = vpack.c.b16 %v5863, %v5857
  %v6038 = vpack.c.b16 %v5864, %v5858
  %v6039 = vpack.c.b16 %v5865, %v5859
  %v6040 = vpack.c.b16 %v5872, %v5866
  %v6041 = vpack.c.b16 %v5873, %v5867
  %v6042 = vpack.c.b16 %v5874, %v5868
  %v6043 = vpack.c.b16 %v5875, %v5869
  %v6044 = vpack.c.b16 %v5876, %v5870
  %v6045 = vpack.c.b16 %v5877, %v5871
  %v6046 = vpack.c.b16 %v5884, %v5878
  %v6047 = vpack.c.b16 %v5885, %v5879
  %v6048 = vpack.c.b16 %v5886, %v5880
  %v6049 = vpack.c.b16 %v5887, %v5881
  %v6050 = vpack.c.b16 %v5888, %v5882
  %v6051 = vpack.c.b16 %v5889, %v5883
  %v6052 = vpack.c.b16 %v5896, %v5890
  %v6053 = vpack.c.b16 %v5897, %v5891
  %v6054 = vpack.c.b16 %v5898, %v5892
  %v6055 = vpack.c.b16 %v5899, %v5893
  %v6056 = vpack.c.b16 %v5900, %v5894
  %v6057 = vpack.c.b16 %v5901, %v5895
  %v6058 = vpack.c.b16 %v5908, %v5902
  %v6059 = vpack.c.b16 %v5909, %v5903
  %v6060 = vpack.c.b16 %v5910, %v5904
  %v6061 = vpack.c.b16 %v5911, %v5905
  %v6062 = vpack.c.b16 %v5912, %v5906
  %v6063 = vpack.c.b16 %v5913, %v5907
  %v6064 = vpack.c.b16 %v5920, %v5914
  %v6065 = vpack.c.b16 %v5921, %v5915
  %v6066 = vpack.c.b16 %v5922, %v5916
  %v6067 = vpack.c.b16 %v5923, %v5917
  %v6068 = vpack.c.b16 %v5924, %v5918
  %v6069 = vpack.c.b16 %v5925, %v5919
  %v6070 = vpack.c.b16 %v5932, %v5926
  %v6071 = vpack.c.b16 %v5933, %v5927
  %v6072 = vpack.c.b16 %v5934, %v5928
  %v6073 = vpack.c.b16 %v5935, %v5929
  %v6074 = vpack.c.b16 %v5936, %v5930
  %v6075 = vpack.c.b16 %v5937, %v5931
  %v6076 = vpack.c.b16 %v5944, %v5938
  %v6077 = vpack.c.b16 %v5945, %v5939
  %v6078 = vpack.c.b16 %v5946, %v5940
  %v6079 = vpack.c.b16 %v5947, %v5941
  %v6080 = vpack.c.b16 %v5948, %v5942
  %v6081 = vpack.c.b16 %v5949, %v5943
  %v6082 = vpack.c.b16 %v5956, %v5950
  %v6083 = vpack.c.b16 %v5957, %v5951
  %v6084 = vpack.c.b16 %v5958, %v5952
  %v6085 = vpack.c.b16 %v5959, %v5953
  %v6086 = vpack.c.b16 %v5960, %v5954
  %v6087 = vpack.c.b16 %v5961, %v5955
  %v6088 = vpack.c.b16 %v5968, %v5962
  %v6089 = vpack.c.b16 %v5969, %v5963
  %v6090 = vpack.c.b16 %v5970, %v5964
  %v6091 = vpack.c.b16 %v5971, %v5965
  %v6092 = vpack.c.b16 %v5972, %v5966
  %v6093 = vpack.c.b16 %v5973, %v5967
  %v6094 = vpack.c.b16 %v5980, %v5974
  %v6095 = vpack.c.b16 %v5981, %v5975
  %v6096 = vpack.c.b16 %v5982, %v5976
  %v6097 = vpack.c.b16 %v5983, %v5977
  %v6098 = vpack.c.b16 %v5984, %v5978
  %v6099 = vpack.c.b16 %v5985, %v5979
  %v6100 = vpack.c.b16 %v5992, %v5986
  %v6101 = vpack.c.b16 %v5993, %v5987
  %v6102 = vpack.c.b16 %v5994, %v5988
  %v6103 = vpack.c.b16 %v5995, %v5989
  %v6104 = vpack.c.b16 %v5996, %v5990
  %v6105 = vpack.c.b16 %v5997, %v5991
  %v6106 = vpack.c.b16 %v6004, %v5998
  %v6107 = vpack.c.b16 %v6005, %v5999
  %v6108 = vpack.c.b16 %v6006, %v6000
  %v6109 = vpack.c.b16 %v6007, %v6001
  %v6110 = vpack.c.b16 %v6008, %v6002
  %v6111 = vpack.c.b16 %v6009, %v6003
  %v6112 = vpack.c.b16 %v6016, %v6010
  %v6113 = vpack.c.b16 %v6017, %v6011
  %v6114 = vpack.c.b16 %v6018, %v6012
  %v6115 = vpack.c.b16 %v6019, %v6013
  %v6116 = vpack.c.b16 %v6020, %v6014
  %v6117 = vpack.c.b16 %v6021, %v6015
  %6214 = vmatprep.subr.bf16.mxu0 %v6023
  %6215 = vmatpush1.bf16.msra.mxu0 %v6022
  %6216 = vmatprep.subr.bf16.mxu0 %v6029
  %6217 = vmatpush1.bf16.msra.mxu0 %v6028
  %6218 = vmatprep.subr.bf16.mxu0 %v6035
  %6219 = vmatpush1.bf16.msra.mxu0 %v6034
  %6220 = vmatprep.subr.bf16.mxu0 %v6041
  %6221 = vmatpush1.bf16.msra.mxu0 %v6040
  %6222 = vmatprep.subr.bf16.mxu0 %v6047
  %6223 = vmatpush1.bf16.msra.mxu0 %v6046
  %6224 = vmatprep.subr.bf16.mxu0 %v6053
  %6225 = vmatpush1.bf16.msra.mxu0 %v6052
  %6226 = vmatprep.subr.bf16.mxu0 %v6059
  %6227 = vmatpush1.bf16.msra.mxu0 %v6058
  %6228 = vmatprep.subr.bf16.mxu0 %v6065
  %6229 = vmatpush1.bf16.msra.mxu0 %v6064
  %6230 = vmatprep.subr.bf16.mxu0 %v6071
  %6231 = vmatpush1.bf16.msra.mxu0 %v6070
  %6232 = vmatprep.subr.bf16.mxu0 %v6077
  %6233 = vmatpush1.bf16.msra.mxu0 %v6076
  %6234 = vmatprep.subr.bf16.mxu0 %v6083
  %6235 = vmatpush1.bf16.msra.mxu0 %v6082
  %6236 = vmatprep.subr.bf16.mxu0 %v6089
  %6237 = vmatpush1.bf16.msra.mxu0 %v6088
  %6238 = vmatprep.subr.bf16.mxu0 %v6095
  %6239 = vmatpush1.bf16.msra.mxu0 %v6094
  %6240 = vmatprep.subr.bf16.mxu0 %v6101
  %6241 = vmatpush1.bf16.msra.mxu0 %v6100
  %6242 = vmatprep.subr.bf16.mxu0 %v6107
  %6243 = vmatpush1.bf16.msra.mxu0 %v6106
  %6244 = vmatprep.subr.bf16.mxu0 %v6113
  %6245 = vmatpush1.bf16.msra.mxu0 %v6112
  %6246 = vmatprep.mubr.bf16.mxu0 %v5731
  %6247 = vmatmul.mubr.bf16.gmra.mrb[0].mxu0 %v5730
  %v6248 = vpop.f32.mrb[0].mxu0
  %v6249 = vadd.f32 %v5701, %v6248
  %v6250 = vpop.f32.mrb[0].mxu0
  %v6251 = vadd.f32 %v5705, %v6250
  %v6252 = vpop.f32.mrb[0].mxu0
  %v6253 = vpop.f32.mrb[0].mxu0
  %6254 = vdwg.mxu0
  %6255 = vmatprep.subr.bf16.mxu0 %v6025
  %6256 = vmatpush1.bf16.msra.mxu0 %v6024
  %6257 = vmatprep.subr.bf16.mxu0 %v6031
  %6258 = vmatpush1.bf16.msra.mxu0 %v6030
  %6259 = vmatprep.subr.bf16.mxu0 %v6037
  %6260 = vmatpush1.bf16.msra.mxu0 %v6036
  %6261 = vmatprep.subr.bf16.mxu0 %v6043
  %6262 = vmatpush1.bf16.msra.mxu0 %v6042
  %6263 = vmatprep.subr.bf16.mxu0 %v6049
  %6264 = vmatpush1.bf16.msra.mxu0 %v6048
  %6265 = vmatprep.subr.bf16.mxu0 %v6055
  %6266 = vmatpush1.bf16.msra.mxu0 %v6054
  %6267 = vmatprep.subr.bf16.mxu0 %v6061
  %6268 = vmatpush1.bf16.msra.mxu0 %v6060
  %6269 = vmatprep.subr.bf16.mxu0 %v6067
  %6270 = vmatpush1.bf16.msra.mxu0 %v6066
  %6271 = vmatprep.subr.bf16.mxu0 %v6073
  %6272 = vmatpush1.bf16.msra.mxu0 %v6072
  %6273 = vmatprep.subr.bf16.mxu0 %v6079
  %6274 = vmatpush1.bf16.msra.mxu0 %v6078
  %6275 = vmatprep.subr.bf16.mxu0 %v6085
  %6276 = vmatpush1.bf16.msra.mxu0 %v6084
  %6277 = vmatprep.subr.bf16.mxu0 %v6091
  %6278 = vmatpush1.bf16.msra.mxu0 %v6090
  %6279 = vmatprep.subr.bf16.mxu0 %v6097
  %6280 = vmatpush1.bf16.msra.mxu0 %v6096
  %6281 = vmatprep.subr.bf16.mxu0 %v6103
  %6282 = vmatpush1.bf16.msra.mxu0 %v6102
  %6283 = vmatprep.subr.bf16.mxu0 %v6109
  %6284 = vmatpush1.bf16.msra.mxu0 %v6108
  %6285 = vmatprep.subr.bf16.mxu0 %v6115
  %6286 = vmatpush1.bf16.msra.mxu0 %v6114
  %6287 = vmatprep.mubr.bf16.mxu0 %v5731
  %6288 = vmatmul.mubr.bf16.gmra.mrb[0].mxu0 %v5730
  %v6289 = vpop.f32.mrb[0].mxu0
  %v6290 = vadd.f32 %v5709, %v6289
  %v6291 = vpop.f32.mrb[0].mxu0
  %v6292 = vadd.f32 %v5713, %v6291
  %v6293 = vpop.f32.mrb[0].mxu0
  %v6294 = vpop.f32.mrb[0].mxu0
  %6295 = vdwg.mxu0
  %6296 = vmatprep.subr.bf16.mxu0 %v6027
  %6297 = vmatpush1.bf16.msra.mxu0 %v6026
  %6298 = vmatprep.subr.bf16.mxu0 %v6033
  %6299 = vmatpush1.bf16.msra.mxu0 %v6032
  %6300 = vmatprep.subr.bf16.mxu0 %v6039
  %6301 = vmatpush1.bf16.msra.mxu0 %v6038
  %6302 = vmatprep.subr.bf16.mxu0 %v6045
  %6303 = vmatpush1.bf16.msra.mxu0 %v6044
  %6304 = vmatprep.subr.bf16.mxu0 %v6051
  %6305 = vmatpush1.bf16.msra.mxu0 %v6050
  %6306 = vmatprep.subr.bf16.mxu0 %v6057
  %6307 = vmatpush1.bf16.msra.mxu0 %v6056
  %6308 = vmatprep.subr.bf16.mxu0 %v6063
  %6309 = vmatpush1.bf16.msra.mxu0 %v6062
  %6310 = vmatprep.subr.bf16.mxu0 %v6069
  %6311 = vmatpush1.bf16.msra.mxu0 %v6068
  %6312 = vmatprep.subr.bf16.mxu0 %v6075
  %6313 = vmatpush1.bf16.msra.mxu0 %v6074
  %6314 = vmatprep.subr.bf16.mxu0 %v6081
  %6315 = vmatpush1.bf16.msra.mxu0 %v6080
  %6316 = vmatprep.subr.bf16.mxu0 %v6087
  %6317 = vmatpush1.bf16.msra.mxu0 %v6086
  %6318 = vmatprep.subr.bf16.mxu0 %v6093
  %6319 = vmatpush1.bf16.msra.mxu0 %v6092
  %6320 = vmatprep.subr.bf16.mxu0 %v6099
  %6321 = vmatpush1.bf16.msra.mxu0 %v6098
  %6322 = vmatprep.subr.bf16.mxu0 %v6105
  %6323 = vmatpush1.bf16.msra.mxu0 %v6104
  %6324 = vmatprep.subr.bf16.mxu0 %v6111
  %6325 = vmatpush1.bf16.msra.mxu0 %v6110
  %6326 = vmatprep.subr.bf16.mxu0 %v6117
  %6327 = vmatpush1.bf16.msra.mxu0 %v6116
  %6328 = vmatprep.mubr.bf16.mxu0 %v5731
  %6329 = vmatmul.mubr.bf16.gmra.mrb[0].mxu0 %v5730
  %v6330 = vpop.f32.mrb[0].mxu0
  %v6331 = vadd.f32 %v5717, %v6330
  %v6332 = vpop.f32.mrb[0].mxu0
  %v6333 = vadd.f32 %v5721, %v6332
  %v6334 = vpop.f32.mrb[0].mxu0
  %v6335 = vpop.f32.mrb[0].mxu0
  %6336 = vdwg.mxu0
  %v6339 = vrot.slane %v6249, 4
  %v6340 = vrot.slane %v6251, 4
  %v6343 = vadd.f32 %v5592, %v6339
  %v6344 = vadd.f32 %v5593, %v6340
  %v6345 = vsub.f32 0.0, %v6343
  %v6346 = vsub.f32 0.0, %v6344
  %v6347 = vmul.f32 %v6345, 1.442695
  %v6348 = vpow.pop %v6347
  %v6349 = vmul.f32 %v6346, 1.442695
  %v6350 = vpow.pop %v6349
  %v6351 = vadd.f32 %v6348, 1.0
  %v6352 = vadd.f32 %v6350, 1.0
  %v6353 = vrcp.pop %v6351
  %v6354 = vmul.f32 1.0, %v6353
  %v6355 = vrcp.pop %v6352
  %v6356 = vmul.f32 1.0, %v6355
  %v6359 = vrot.slane %v6290, 4
  %v6360 = vrot.slane %v6292, 4
  %v6363 = vadd.f32 %v5594, %v6359
  %v6364 = vadd.f32 %v5595, %v6360
  %v6365 = vsub.f32 0.0, %v6363
  %v6366 = vsub.f32 0.0, %v6364
  %v6367 = vmul.f32 %v6365, 1.442695
  %v6368 = vpow.pop %v6367
  %v6369 = vmul.f32 %v6366, 1.442695
  %v6370 = vpow.pop %v6369
  %v6371 = vadd.f32 %v6368, 1.0
  %v6372 = vadd.f32 %v6370, 1.0
  %v6373 = vrcp.pop %v6371
  %v6374 = vmul.f32 1.0, %v6373
  %v6375 = vrcp.pop %v6372
  %v6376 = vmul.f32 1.0, %v6375
  %v6379 = vrot.slane %v6331, 4
  %v6380 = vrot.slane %v6333, 4
  %v6383 = vmul.f32 %v6354, %v6379
  %v6384 = vmul.f32 %v6356, %v6380
  %v6385 = vadd.f32 %v5596, %v6383
  %v6386 = vadd.f32 %v5597, %v6384
  %v6387 = vtanh.pop %v6385
  %v6388 = vtanh.pop %v6386
  %v6389 = vsub.f32 1.0, %v6374
  %v6390 = vsub.f32 1.0, %v6376
  %v6391 = vmul.f32 %v6389, %v6387
  %v6392 = vmul.f32 %v6390, %v6388
  %v6395 = vrot.slane %v5588, 6
  %v6396 = vrot.slane %v5589, 6
  %v6399 = vmul.f32 %v6374, %v6395
  %v6400 = vmul.f32 %v6376, %v6396
  %v6401 = vadd.f32 %v6391, %v6399
  %v6402 = vadd.f32 %v6392, %v6400
  %6403 = vst [vmem:[#allocation3 + $0x10] sm:$0x30] %v6401
  %6404 = vst [vmem:[#allocation3 + $0x18] sm:$0x30] %v6402
  %v6405 = vld [vmem:[#allocation2 + $0x30] sm:$0xc0]
  %v6406 = vld [vmem:[#allocation2 + $0x38] sm:$0xc0]
  %v6407 = vld [vmem:[#allocation2 + $0x40] sm:$0xc0]
  %v6408 = vld [vmem:[#allocation2 + $0x48] sm:$0xc0]
  %v6409 = vld [vmem:[#allocation2 + $0x50] sm:$0xc0]
  %v6410 = vld [vmem:[#allocation2 + $0x58] sm:$0xc0]
  %v6411 = vpack.c.bf16 %v6401, %v6401
  %v6412 = vpack.c.bf16 %v6402, %v6402
  %v6413 = vld [vmem:[%s2] sm:$0xff]
  %v6414 = vld [vmem:[%s2 + $0x8] sm:$0xff]
  %v6415 = vld [vmem:[%s2 + $0x10] sm:$0xff]
  %v6416 = vld [vmem:[%s2 + $0x18] sm:$0xff]
  %v6417 = vld [vmem:[%s2 + $0x20] sm:$0xff]
  %v6418 = vld [vmem:[%s2 + $0x28] sm:$0xff]
  %v6419 = vld [vmem:[%s2 + $0x30] sm:$0xff]
  %v6420 = vld [vmem:[%s2 + $0x38] sm:$0xff]
  %v6421 = vld [vmem:[%s2 + $0x40] sm:$0xff]
  %v6422 = vld [vmem:[%s2 + $0x48] sm:$0xff]
  %v6423 = vld [vmem:[%s2 + $0x50] sm:$0xff]
  %v6424 = vld [vmem:[%s2 + $0x58] sm:$0xff]
  %v6425 = vld [vmem:[%s2 + $0x60] sm:$0xff]
  %v6426 = vld [vmem:[%s2 + $0x68] sm:$0xff]
  %v6427 = vld [vmem:[%s2 + $0x70] sm:$0xff]
  %v6428 = vld [vmem:[%s2 + $0x78] sm:$0xff]
  %v6429 = vld [vmem:[%s2 + $0x80] sm:$0xff]
  %v6430 = vld [vmem:[%s2 + $0x88] sm:$0xff]
  %v6431 = vld [vmem:[%s2 + $0x90] sm:$0xff]
  %v6432 = vld [vmem:[%s2 + $0x98] sm:$0xff]
  %v6433 = vld [vmem:[%s2 + $0xa0] sm:$0xff]
  %v6434 = vld [vmem:[%s2 + $0xa8] sm:$0xff]
  %v6435 = vld [vmem:[%s2 + $0xb0] sm:$0xff]
  %v6436 = vld [vmem:[%s2 + $0xb8] sm:$0xff]
  %v6437 = vld [vmem:[%s2 + $0xc0] sm:$0xff]
  %v6438 = vld [vmem:[%s2 + $0xc8] sm:$0xff]
  %v6439 = vld [vmem:[%s2 + $0xd0] sm:$0xff]
  %v6440 = vld [vmem:[%s2 + $0xd8] sm:$0xff]
  %v6441 = vld [vmem:[%s2 + $0xe0] sm:$0xff]
  %v6442 = vld [vmem:[%s2 + $0xe8] sm:$0xff]
  %v6443 = vld [vmem:[%s2 + $0xf0] sm:$0xff]
  %v6444 = vld [vmem:[%s2 + $0xf8] sm:$0xff]
  %v6445 = vld [vmem:[%s2 + $0x100] sm:$0xff]
  %v6446 = vld [vmem:[%s2 + $0x108] sm:$0xff]
  %v6447 = vld [vmem:[%s2 + $0x110] sm:$0xff]
  %v6448 = vld [vmem:[%s2 + $0x118] sm:$0xff]
  %v6449 = vld [vmem:[%s2 + $0x120] sm:$0xff]
  %v6450 = vld [vmem:[%s2 + $0x128] sm:$0xff]
  %v6451 = vld [vmem:[%s2 + $0x130] sm:$0xff]
  %v6452 = vld [vmem:[%s2 + $0x138] sm:$0xff]
  %v6453 = vld [vmem:[%s2 + $0x140] sm:$0xff]
  %v6454 = vld [vmem:[%s2 + $0x148] sm:$0xff]
  %v6455 = vld [vmem:[%s2 + $0x150] sm:$0xff]
  %v6456 = vld [vmem:[%s2 + $0x158] sm:$0xff]
  %v6457 = vld [vmem:[%s2 + $0x160] sm:$0xff]
  %v6458 = vld [vmem:[%s2 + $0x168] sm:$0xff]
  %v6459 = vld [vmem:[%s2 + $0x170] sm:$0xff]
  %v6460 = vld [vmem:[%s2 + $0x178] sm:$0xff]
  %v6461 = vld [vmem:[%s2 + $0x180] sm:$0xff]
  %v6462 = vld [vmem:[%s2 + $0x188] sm:$0xff]
  %v6463 = vld [vmem:[%s2 + $0x190] sm:$0xff]
  %v6464 = vld [vmem:[%s2 + $0x198] sm:$0xff]
  %v6465 = vld [vmem:[%s2 + $0x1a0] sm:$0xff]
  %v6466 = vld [vmem:[%s2 + $0x1a8] sm:$0xff]
  %v6467 = vld [vmem:[%s2 + $0x1b0] sm:$0xff]
  %v6468 = vld [vmem:[%s2 + $0x1b8] sm:$0xff]
  %v6469 = vld [vmem:[%s2 + $0x1c0] sm:$0xff]
  %v6470 = vld [vmem:[%s2 + $0x1c8] sm:$0xff]
  %v6471 = vld [vmem:[%s2 + $0x1d0] sm:$0xff]
  %v6472 = vld [vmem:[%s2 + $0x1d8] sm:$0xff]
  %v6473 = vld [vmem:[%s2 + $0x1e0] sm:$0xff]
  %v6474 = vld [vmem:[%s2 + $0x1e8] sm:$0xff]
  %v6475 = vld [vmem:[%s2 + $0x1f0] sm:$0xff]
  %v6476 = vld [vmem:[%s2 + $0x1f8] sm:$0xff]
  %v6477 = vld [vmem:[%s2 + $0x200] sm:$0xff]
  %v6478 = vld [vmem:[%s2 + $0x208] sm:$0xff]
  %v6479 = vld [vmem:[%s2 + $0x210] sm:$0xff]
  %v6480 = vld [vmem:[%s2 + $0x218] sm:$0xff]
  %v6481 = vld [vmem:[%s2 + $0x220] sm:$0xff]
  %v6482 = vld [vmem:[%s2 + $0x228] sm:$0xff]
  %v6483 = vld [vmem:[%s2 + $0x230] sm:$0xff]
  %v6484 = vld [vmem:[%s2 + $0x238] sm:$0xff]
  %v6485 = vld [vmem:[%s2 + $0x240] sm:$0xff]
  %v6486 = vld [vmem:[%s2 + $0x248] sm:$0xff]
  %v6487 = vld [vmem:[%s2 + $0x250] sm:$0xff]
  %v6488 = vld [vmem:[%s2 + $0x258] sm:$0xff]
  %v6489 = vld [vmem:[%s2 + $0x260] sm:$0xff]
  %v6490 = vld [vmem:[%s2 + $0x268] sm:$0xff]
  %v6491 = vld [vmem:[%s2 + $0x270] sm:$0xff]
  %v6492 = vld [vmem:[%s2 + $0x278] sm:$0xff]
  %v6493 = vld [vmem:[%s2 + $0x280] sm:$0xff]
  %v6494 = vld [vmem:[%s2 + $0x288] sm:$0xff]
  %v6495 = vld [vmem:[%s2 + $0x290] sm:$0xff]
  %v6496 = vld [vmem:[%s2 + $0x298] sm:$0xff]
  %v6497 = vld [vmem:[%s2 + $0x2a0] sm:$0xff]
  %v6498 = vld [vmem:[%s2 + $0x2a8] sm:$0xff]
  %v6499 = vld [vmem:[%s2 + $0x2b0] sm:$0xff]
  %v6500 = vld [vmem:[%s2 + $0x2b8] sm:$0xff]
  %v6501 = vld [vmem:[%s2 + $0x2c0] sm:$0xff]
  %v6502 = vld [vmem:[%s2 + $0x2c8] sm:$0xff]
  %v6503 = vld [vmem:[%s2 + $0x2d0] sm:$0xff]
  %v6504 = vld [vmem:[%s2 + $0x2d8] sm:$0xff]
  %v6505 = vld [vmem:[%s2 + $0x2e0] sm:$0xff]
  %v6506 = vld [vmem:[%s2 + $0x2e8] sm:$0xff]
  %v6507 = vld [vmem:[%s2 + $0x2f0] sm:$0xff]
  %v6508 = vld [vmem:[%s2 + $0x2f8] sm:$0xff]
  %v6509 = vld [vmem:[%s4] sm:$0x3f]
  %v6511 = vlaneseq
  %v6512 = vshrl.u32 %v6511, 7
  %v6513 = vsub.s32 0, %v6512
  %v6514 = vrot.slane %v6509, %v6513
  %v6515 = vlaneseq
  %v6516 = vshrl.u32 %v6515, 7
  %v6517 = vsub.s32 1, %v6516
  %v6518 = vrot.slane %v6509, %v6517
  %v6519 = vlaneseq
  %v6520 = vshrl.u32 %v6519, 7
  %v6521 = vsub.s32 2, %v6520
  %v6522 = vrot.slane %v6509, %v6521
  %v6523 = vlaneseq
  %v6524 = vshrl.u32 %v6523, 7
  %v6525 = vsub.s32 3, %v6524
  %v6526 = vrot.slane %v6509, %v6525
  %v6527 = vlaneseq
  %v6528 = vshrl.u32 %v6527, 7
  %v6529 = vsub.s32 4, %v6528
  %v6530 = vrot.slane %v6509, %v6529
  %v6531 = vlaneseq
  %v6532 = vshrl.u32 %v6531, 7
  %v6533 = vsub.s32 5, %v6532
  %v6534 = vrot.slane %v6509, %v6533
  %v6543 = vrot.slane %v6411, 2
  %v6544 = vrot.slane %v6412, 2
  %v6643 = vunpack.c.l.b16 %v6413
  %v6644 = vunpack.c.h.b16 %v6413
  %v6645 = vunpack.c.l.b16 %v6414
  %v6646 = vunpack.c.h.b16 %v6414
  %v6647 = vunpack.c.l.b16 %v6415
  %v6648 = vunpack.c.h.b16 %v6415
  %v6649 = vunpack.c.l.b16 %v6416
  %v6650 = vunpack.c.h.b16 %v6416
  %v6651 = vunpack.c.l.b16 %v6417
  %v6652 = vunpack.c.h.b16 %v6417
  %v6653 = vunpack.c.l.b16 %v6418
  %v6654 = vunpack.c.h.b16 %v6418
  %v6655 = vunpack.c.l.b16 %v6419
  %v6656 = vunpack.c.h.b16 %v6419
  %v6657 = vunpack.c.l.b16 %v6420
  %v6658 = vunpack.c.h.b16 %v6420
  %v6659 = vunpack.c.l.b16 %v6421
  %v6660 = vunpack.c.h.b16 %v6421
  %v6661 = vunpack.c.l.b16 %v6422
  %v6662 = vunpack.c.h.b16 %v6422
  %v6663 = vunpack.c.l.b16 %v6423
  %v6664 = vunpack.c.h.b16 %v6423
  %v6665 = vunpack.c.l.b16 %v6424
  %v6666 = vunpack.c.h.b16 %v6424
  %v6667 = vunpack.c.l.b16 %v6425
  %v6668 = vunpack.c.h.b16 %v6425
  %v6669 = vunpack.c.l.b16 %v6426
  %v6670 = vunpack.c.h.b16 %v6426
  %v6671 = vunpack.c.l.b16 %v6427
  %v6672 = vunpack.c.h.b16 %v6427
  %v6673 = vunpack.c.l.b16 %v6428
  %v6674 = vunpack.c.h.b16 %v6428
  %v6675 = vunpack.c.l.b16 %v6429
  %v6676 = vunpack.c.h.b16 %v6429
  %v6677 = vunpack.c.l.b16 %v6430
  %v6678 = vunpack.c.h.b16 %v6430
  %v6679 = vunpack.c.l.b16 %v6431
  %v6680 = vunpack.c.h.b16 %v6431
  %v6681 = vunpack.c.l.b16 %v6432
  %v6682 = vunpack.c.h.b16 %v6432
  %v6683 = vunpack.c.l.b16 %v6433
  %v6684 = vunpack.c.h.b16 %v6433
  %v6685 = vunpack.c.l.b16 %v6434
  %v6686 = vunpack.c.h.b16 %v6434
  %v6687 = vunpack.c.l.b16 %v6435
  %v6688 = vunpack.c.h.b16 %v6435
  %v6689 = vunpack.c.l.b16 %v6436
  %v6690 = vunpack.c.h.b16 %v6436
  %v6691 = vunpack.c.l.b16 %v6437
  %v6692 = vunpack.c.h.b16 %v6437
  %v6693 = vunpack.c.l.b16 %v6438
  %v6694 = vunpack.c.h.b16 %v6438
  %v6695 = vunpack.c.l.b16 %v6439
  %v6696 = vunpack.c.h.b16 %v6439
  %v6697 = vunpack.c.l.b16 %v6440
  %v6698 = vunpack.c.h.b16 %v6440
  %v6699 = vunpack.c.l.b16 %v6441
  %v6700 = vunpack.c.h.b16 %v6441
  %v6701 = vunpack.c.l.b16 %v6442
  %v6702 = vunpack.c.h.b16 %v6442
  %v6703 = vunpack.c.l.b16 %v6443
  %v6704 = vunpack.c.h.b16 %v6443
  %v6705 = vunpack.c.l.b16 %v6444
  %v6706 = vunpack.c.h.b16 %v6444
  %v6707 = vunpack.c.l.b16 %v6445
  %v6708 = vunpack.c.h.b16 %v6445
  %v6709 = vunpack.c.l.b16 %v6446
  %v6710 = vunpack.c.h.b16 %v6446
  %v6711 = vunpack.c.l.b16 %v6447
  %v6712 = vunpack.c.h.b16 %v6447
  %v6713 = vunpack.c.l.b16 %v6448
  %v6714 = vunpack.c.h.b16 %v6448
  %v6715 = vunpack.c.l.b16 %v6449
  %v6716 = vunpack.c.h.b16 %v6449
  %v6717 = vunpack.c.l.b16 %v6450
  %v6718 = vunpack.c.h.b16 %v6450
  %v6719 = vunpack.c.l.b16 %v6451
  %v6720 = vunpack.c.h.b16 %v6451
  %v6721 = vunpack.c.l.b16 %v6452
  %v6722 = vunpack.c.h.b16 %v6452
  %v6723 = vunpack.c.l.b16 %v6453
  %v6724 = vunpack.c.h.b16 %v6453
  %v6725 = vunpack.c.l.b16 %v6454
  %v6726 = vunpack.c.h.b16 %v6454
  %v6727 = vunpack.c.l.b16 %v6455
  %v6728 = vunpack.c.h.b16 %v6455
  %v6729 = vunpack.c.l.b16 %v6456
  %v6730 = vunpack.c.h.b16 %v6456
  %v6731 = vunpack.c.l.b16 %v6457
  %v6732 = vunpack.c.h.b16 %v6457
  %v6733 = vunpack.c.l.b16 %v6458
  %v6734 = vunpack.c.h.b16 %v6458
  %v6735 = vunpack.c.l.b16 %v6459
  %v6736 = vunpack.c.h.b16 %v6459
  %v6737 = vunpack.c.l.b16 %v6460
  %v6738 = vunpack.c.h.b16 %v6460
  %v6739 = vunpack.c.l.b16 %v6461
  %v6740 = vunpack.c.h.b16 %v6461
  %v6741 = vunpack.c.l.b16 %v6462
  %v6742 = vunpack.c.h.b16 %v6462
  %v6743 = vunpack.c.l.b16 %v6463
  %v6744 = vunpack.c.h.b16 %v6463
  %v6745 = vunpack.c.l.b16 %v6464
  %v6746 = vunpack.c.h.b16 %v6464
  %v6747 = vunpack.c.l.b16 %v6465
  %v6748 = vunpack.c.h.b16 %v6465
  %v6749 = vunpack.c.l.b16 %v6466
  %v6750 = vunpack.c.h.b16 %v6466
  %v6751 = vunpack.c.l.b16 %v6467
  %v6752 = vunpack.c.h.b16 %v6467
  %v6753 = vunpack.c.l.b16 %v6468
  %v6754 = vunpack.c.h.b16 %v6468
  %v6755 = vunpack.c.l.b16 %v6469
  %v6756 = vunpack.c.h.b16 %v6469
  %v6757 = vunpack.c.l.b16 %v6470
  %v6758 = vunpack.c.h.b16 %v6470
  %v6759 = vunpack.c.l.b16 %v6471
  %v6760 = vunpack.c.h.b16 %v6471
  %v6761 = vunpack.c.l.b16 %v6472
  %v6762 = vunpack.c.h.b16 %v6472
  %v6763 = vunpack.c.l.b16 %v6473
  %v6764 = vunpack.c.h.b16 %v6473
  %v6765 = vunpack.c.l.b16 %v6474
  %v6766 = vunpack.c.h.b16 %v6474
  %v6767 = vunpack.c.l.b16 %v6475
  %v6768 = vunpack.c.h.b16 %v6475
  %v6769 = vunpack.c.l.b16 %v6476
  %v6770 = vunpack.c.h.b16 %v6476
  %v6771 = vunpack.c.l.b16 %v6477
  %v6772 = vunpack.c.h.b16 %v6477
  %v6773 = vunpack.c.l.b16 %v6478
  %v6774 = vunpack.c.h.b16 %v6478
  %v6775 = vunpack.c.l.b16 %v6479
  %v6776 = vunpack.c.h.b16 %v6479
  %v6777 = vunpack.c.l.b16 %v6480
  %v6778 = vunpack.c.h.b16 %v6480
  %v6779 = vunpack.c.l.b16 %v6481
  %v6780 = vunpack.c.h.b16 %v6481
  %v6781 = vunpack.c.l.b16 %v6482
  %v6782 = vunpack.c.h.b16 %v6482
  %v6783 = vunpack.c.l.b16 %v6483
  %v6784 = vunpack.c.h.b16 %v6483
  %v6785 = vunpack.c.l.b16 %v6484
  %v6786 = vunpack.c.h.b16 %v6484
  %v6787 = vunpack.c.l.b16 %v6485
  %v6788 = vunpack.c.h.b16 %v6485
  %v6789 = vunpack.c.l.b16 %v6486
  %v6790 = vunpack.c.h.b16 %v6486
  %v6791 = vunpack.c.l.b16 %v6487
  %v6792 = vunpack.c.h.b16 %v6487
  %v6793 = vunpack.c.l.b16 %v6488
  %v6794 = vunpack.c.h.b16 %v6488
  %v6795 = vunpack.c.l.b16 %v6489
  %v6796 = vunpack.c.h.b16 %v6489
  %v6797 = vunpack.c.l.b16 %v6490
  %v6798 = vunpack.c.h.b16 %v6490
  %v6799 = vunpack.c.l.b16 %v6491
  %v6800 = vunpack.c.h.b16 %v6491
  %v6801 = vunpack.c.l.b16 %v6492
  %v6802 = vunpack.c.h.b16 %v6492
  %v6803 = vunpack.c.l.b16 %v6493
  %v6804 = vunpack.c.h.b16 %v6493
  %v6805 = vunpack.c.l.b16 %v6494
  %v6806 = vunpack.c.h.b16 %v6494
  %v6807 = vunpack.c.l.b16 %v6495
  %v6808 = vunpack.c.h.b16 %v6495
  %v6809 = vunpack.c.l.b16 %v6496
  %v6810 = vunpack.c.h.b16 %v6496
  %v6811 = vunpack.c.l.b16 %v6497
  %v6812 = vunpack.c.h.b16 %v6497
  %v6813 = vunpack.c.l.b16 %v6498
  %v6814 = vunpack.c.h.b16 %v6498
  %v6815 = vunpack.c.l.b16 %v6499
  %v6816 = vunpack.c.h.b16 %v6499
  %v6817 = vunpack.c.l.b16 %v6500
  %v6818 = vunpack.c.h.b16 %v6500
  %v6819 = vunpack.c.l.b16 %v6501
  %v6820 = vunpack.c.h.b16 %v6501
  %v6821 = vunpack.c.l.b16 %v6502
  %v6822 = vunpack.c.h.b16 %v6502
  %v6823 = vunpack.c.l.b16 %v6503
  %v6824 = vunpack.c.h.b16 %v6503
  %v6825 = vunpack.c.l.b16 %v6504
  %v6826 = vunpack.c.h.b16 %v6504
  %v6827 = vunpack.c.l.b16 %v6505
  %v6828 = vunpack.c.h.b16 %v6505
  %v6829 = vunpack.c.l.b16 %v6506
  %v6830 = vunpack.c.h.b16 %v6506
  %v6831 = vunpack.c.l.b16 %v6507
  %v6832 = vunpack.c.h.b16 %v6507
  %v6833 = vunpack.c.l.b16 %v6508
  %v6834 = vunpack.c.h.b16 %v6508
  %v6835 = vpack.c.b16 %v6649, %v6643
  %v6836 = vpack.c.b16 %v6650, %v6644
  %v6837 = vpack.c.b16 %v6651, %v6645
  %v6838 = vpack.c.b16 %v6652, %v6646
  %v6839 = vpack.c.b16 %v6653, %v6647
  %v6840 = vpack.c.b16 %v6654, %v6648
  %v6841 = vpack.c.b16 %v6661, %v6655
  %v6842 = vpack.c.b16 %v6662, %v6656
  %v6843 = vpack.c.b16 %v6663, %v6657
  %v6844 = vpack.c.b16 %v6664, %v6658
  %v6845 = vpack.c.b16 %v6665, %v6659
  %v6846 = vpack.c.b16 %v6666, %v6660
  %v6847 = vpack.c.b16 %v6673, %v6667
  %v6848 = vpack.c.b16 %v6674, %v6668
  %v6849 = vpack.c.b16 %v6675, %v6669
  %v6850 = vpack.c.b16 %v6676, %v6670
  %v6851 = vpack.c.b16 %v6677, %v6671
  %v6852 = vpack.c.b16 %v6678, %v6672
  %v6853 = vpack.c.b16 %v6685, %v6679
  %v6854 = vpack.c.b16 %v6686, %v6680
  %v6855 = vpack.c.b16 %v6687, %v6681
  %v6856 = vpack.c.b16 %v6688, %v6682
  %v6857 = vpack.c.b16 %v6689, %v6683
  %v6858 = vpack.c.b16 %v6690, %v6684
  %v6859 = vpack.c.b16 %v6697, %v6691
  %v6860 = vpack.c.b16 %v6698, %v6692
  %v6861 = vpack.c.b16 %v6699, %v6693
  %v6862 = vpack.c.b16 %v6700, %v6694
  %v6863 = vpack.c.b16 %v6701, %v6695
  %v6864 = vpack.c.b16 %v6702, %v6696
  %v6865 = vpack.c.b16 %v6709, %v6703
  %v6866 = vpack.c.b16 %v6710, %v6704
  %v6867 = vpack.c.b16 %v6711, %v6705
  %v6868 = vpack.c.b16 %v6712, %v6706
  %v6869 = vpack.c.b16 %v6713, %v6707
  %v6870 = vpack.c.b16 %v6714, %v6708
  %v6871 = vpack.c.b16 %v6721, %v6715
  %v6872 = vpack.c.b16 %v6722, %v6716
  %v6873 = vpack.c.b16 %v6723, %v6717
  %v6874 = vpack.c.b16 %v6724, %v6718
  %v6875 = vpack.c.b16 %v6725, %v6719
  %v6876 = vpack.c.b16 %v6726, %v6720
  %v6877 = vpack.c.b16 %v6733, %v6727
  %v6878 = vpack.c.b16 %v6734, %v6728
  %v6879 = vpack.c.b16 %v6735, %v6729
  %v6880 = vpack.c.b16 %v6736, %v6730
  %v6881 = vpack.c.b16 %v6737, %v6731
  %v6882 = vpack.c.b16 %v6738, %v6732
  %v6883 = vpack.c.b16 %v6745, %v6739
  %v6884 = vpack.c.b16 %v6746, %v6740
  %v6885 = vpack.c.b16 %v6747, %v6741
  %v6886 = vpack.c.b16 %v6748, %v6742
  %v6887 = vpack.c.b16 %v6749, %v6743
  %v6888 = vpack.c.b16 %v6750, %v6744
  %v6889 = vpack.c.b16 %v6757, %v6751
  %v6890 = vpack.c.b16 %v6758, %v6752
  %v6891 = vpack.c.b16 %v6759, %v6753
  %v6892 = vpack.c.b16 %v6760, %v6754
  %v6893 = vpack.c.b16 %v6761, %v6755
  %v6894 = vpack.c.b16 %v6762, %v6756
  %v6895 = vpack.c.b16 %v6769, %v6763
  %v6896 = vpack.c.b16 %v6770, %v6764
  %v6897 = vpack.c.b16 %v6771, %v6765
  %v6898 = vpack.c.b16 %v6772, %v6766
  %v6899 = vpack.c.b16 %v6773, %v6767
  %v6900 = vpack.c.b16 %v6774, %v6768
  %v6901 = vpack.c.b16 %v6781, %v6775
  %v6902 = vpack.c.b16 %v6782, %v6776
  %v6903 = vpack.c.b16 %v6783, %v6777
  %v6904 = vpack.c.b16 %v6784, %v6778
  %v6905 = vpack.c.b16 %v6785, %v6779
  %v6906 = vpack.c.b16 %v6786, %v6780
  %v6907 = vpack.c.b16 %v6793, %v6787
  %v6908 = vpack.c.b16 %v6794, %v6788
  %v6909 = vpack.c.b16 %v6795, %v6789
  %v6910 = vpack.c.b16 %v6796, %v6790
  %v6911 = vpack.c.b16 %v6797, %v6791
  %v6912 = vpack.c.b16 %v6798, %v6792
  %v6913 = vpack.c.b16 %v6805, %v6799
  %v6914 = vpack.c.b16 %v6806, %v6800
  %v6915 = vpack.c.b16 %v6807, %v6801
  %v6916 = vpack.c.b16 %v6808, %v6802
  %v6917 = vpack.c.b16 %v6809, %v6803
  %v6918 = vpack.c.b16 %v6810, %v6804
  %v6919 = vpack.c.b16 %v6817, %v6811
  %v6920 = vpack.c.b16 %v6818, %v6812
  %v6921 = vpack.c.b16 %v6819, %v6813
  %v6922 = vpack.c.b16 %v6820, %v6814
  %v6923 = vpack.c.b16 %v6821, %v6815
  %v6924 = vpack.c.b16 %v6822, %v6816
  %v6925 = vpack.c.b16 %v6829, %v6823
  %v6926 = vpack.c.b16 %v6830, %v6824
  %v6927 = vpack.c.b16 %v6831, %v6825
  %v6928 = vpack.c.b16 %v6832, %v6826
  %v6929 = vpack.c.b16 %v6833, %v6827
  %v6930 = vpack.c.b16 %v6834, %v6828
  %7027 = vmatprep.subr.bf16.mxu0 %v6836
  %7028 = vmatpush1.bf16.msra.mxu0 %v6835
  %7029 = vmatprep.subr.bf16.mxu0 %v6842
  %7030 = vmatpush1.bf16.msra.mxu0 %v6841
  %7031 = vmatprep.subr.bf16.mxu0 %v6848
  %7032 = vmatpush1.bf16.msra.mxu0 %v6847
  %7033 = vmatprep.subr.bf16.mxu0 %v6854
  %7034 = vmatpush1.bf16.msra.mxu0 %v6853
  %7035 = vmatprep.subr.bf16.mxu0 %v6860
  %7036 = vmatpush1.bf16.msra.mxu0 %v6859
  %7037 = vmatprep.subr.bf16.mxu0 %v6866
  %7038 = vmatpush1.bf16.msra.mxu0 %v6865
  %7039 = vmatprep.subr.bf16.mxu0 %v6872
  %7040 = vmatpush1.bf16.msra.mxu0 %v6871
  %7041 = vmatprep.subr.bf16.mxu0 %v6878
  %7042 = vmatpush1.bf16.msra.mxu0 %v6877
  %7043 = vmatprep.subr.bf16.mxu0 %v6884
  %7044 = vmatpush1.bf16.msra.mxu0 %v6883
  %7045 = vmatprep.subr.bf16.mxu0 %v6890
  %7046 = vmatpush1.bf16.msra.mxu0 %v6889
  %7047 = vmatprep.subr.bf16.mxu0 %v6896
  %7048 = vmatpush1.bf16.msra.mxu0 %v6895
  %7049 = vmatprep.subr.bf16.mxu0 %v6902
  %7050 = vmatpush1.bf16.msra.mxu0 %v6901
  %7051 = vmatprep.subr.bf16.mxu0 %v6908
  %7052 = vmatpush1.bf16.msra.mxu0 %v6907
  %7053 = vmatprep.subr.bf16.mxu0 %v6914
  %7054 = vmatpush1.bf16.msra.mxu0 %v6913
  %7055 = vmatprep.subr.bf16.mxu0 %v6920
  %7056 = vmatpush1.bf16.msra.mxu0 %v6919
  %7057 = vmatprep.subr.bf16.mxu0 %v6926
  %7058 = vmatpush1.bf16.msra.mxu0 %v6925
  %7059 = vmatprep.mubr.bf16.mxu0 %v6544
  %7060 = vmatmul.mubr.bf16.gmra.mrb[0].mxu0 %v6543
  %v7061 = vpop.f32.mrb[0].mxu0
  %v7062 = vadd.f32 %v6514, %v7061
  %v7063 = vpop.f32.mrb[0].mxu0
  %v7064 = vadd.f32 %v6518, %v7063
  %v7065 = vpop.f32.mrb[0].mxu0
  %v7066 = vpop.f32.mrb[0].mxu0
  %7067 = vdwg.mxu0
  %7068 = vmatprep.subr.bf16.mxu0 %v6838
  %7069 = vmatpush1.bf16.msra.mxu0 %v6837
  %7070 = vmatprep.subr.bf16.mxu0 %v6844
  %7071 = vmatpush1.bf16.msra.mxu0 %v6843
  %7072 = vmatprep.subr.bf16.mxu0 %v6850
  %7073 = vmatpush1.bf16.msra.mxu0 %v6849
  %7074 = vmatprep.subr.bf16.mxu0 %v6856
  %7075 = vmatpush1.bf16.msra.mxu0 %v6855
  %7076 = vmatprep.subr.bf16.mxu0 %v6862
  %7077 = vmatpush1.bf16.msra.mxu0 %v6861
  %7078 = vmatprep.subr.bf16.mxu0 %v6868
  %7079 = vmatpush1.bf16.msra.mxu0 %v6867
  %7080 = vmatprep.subr.bf16.mxu0 %v6874
  %7081 = vmatpush1.bf16.msra.mxu0 %v6873
  %7082 = vmatprep.subr.bf16.mxu0 %v6880
  %7083 = vmatpush1.bf16.msra.mxu0 %v6879
  %7084 = vmatprep.subr.bf16.mxu0 %v6886
  %7085 = vmatpush1.bf16.msra.mxu0 %v6885
  %7086 = vmatprep.subr.bf16.mxu0 %v6892
  %7087 = vmatpush1.bf16.msra.mxu0 %v6891
  %7088 = vmatprep.subr.bf16.mxu0 %v6898
  %7089 = vmatpush1.bf16.msra.mxu0 %v6897
  %7090 = vmatprep.subr.bf16.mxu0 %v6904
  %7091 = vmatpush1.bf16.msra.mxu0 %v6903
  %7092 = vmatprep.subr.bf16.mxu0 %v6910
  %7093 = vmatpush1.bf16.msra.mxu0 %v6909
  %7094 = vmatprep.subr.bf16.mxu0 %v6916
  %7095 = vmatpush1.bf16.msra.mxu0 %v6915
  %7096 = vmatprep.subr.bf16.mxu0 %v6922
  %7097 = vmatpush1.bf16.msra.mxu0 %v6921
  %7098 = vmatprep.subr.bf16.mxu0 %v6928
  %7099 = vmatpush1.bf16.msra.mxu0 %v6927
  %7100 = vmatprep.mubr.bf16.mxu0 %v6544
  %7101 = vmatmul.mubr.bf16.gmra.mrb[0].mxu0 %v6543
  %v7102 = vpop.f32.mrb[0].mxu0
  %v7103 = vadd.f32 %v6522, %v7102
  %v7104 = vpop.f32.mrb[0].mxu0
  %v7105 = vadd.f32 %v6526, %v7104
  %v7106 = vpop.f32.mrb[0].mxu0
  %v7107 = vpop.f32.mrb[0].mxu0
  %7108 = vdwg.mxu0
  %7109 = vmatprep.subr.bf16.mxu0 %v6840
  %7110 = vmatpush1.bf16.msra.mxu0 %v6839
  %7111 = vmatprep.subr.bf16.mxu0 %v6846
  %7112 = vmatpush1.bf16.msra.mxu0 %v6845
  %7113 = vmatprep.subr.bf16.mxu0 %v6852
  %7114 = vmatpush1.bf16.msra.mxu0 %v6851
  %7115 = vmatprep.subr.bf16.mxu0 %v6858
  %7116 = vmatpush1.bf16.msra.mxu0 %v6857
  %7117 = vmatprep.subr.bf16.mxu0 %v6864
  %7118 = vmatpush1.bf16.msra.mxu0 %v6863
  %7119 = vmatprep.subr.bf16.mxu0 %v6870
  %7120 = vmatpush1.bf16.msra.mxu0 %v6869
  %7121 = vmatprep.subr.bf16.mxu0 %v6876
  %7122 = vmatpush1.bf16.msra.mxu0 %v6875
  %7123 = vmatprep.subr.bf16.mxu0 %v6882
  %7124 = vmatpush1.bf16.msra.mxu0 %v6881
  %7125 = vmatprep.subr.bf16.mxu0 %v6888
  %7126 = vmatpush1.bf16.msra.mxu0 %v6887
  %7127 = vmatprep.subr.bf16.mxu0 %v6894
  %7128 = vmatpush1.bf16.msra.mxu0 %v6893
  %7129 = vmatprep.subr.bf16.mxu0 %v6900
  %7130 = vmatpush1.bf16.msra.mxu0 %v6899
  %7131 = vmatprep.subr.bf16.mxu0 %v6906
  %7132 = vmatpush1.bf16.msra.mxu0 %v6905
  %7133 = vmatprep.subr.bf16.mxu0 %v6912
  %7134 = vmatpush1.bf16.msra.mxu0 %v6911
  %7135 = vmatprep.subr.bf16.mxu0 %v6918
  %7136 = vmatpush1.bf16.msra.mxu0 %v6917
  %7137 = vmatprep.subr.bf16.mxu0 %v6924
  %7138 = vmatpush1.bf16.msra.mxu0 %v6923
  %7139 = vmatprep.subr.bf16.mxu0 %v6930
  %7140 = vmatpush1.bf16.msra.mxu0 %v6929
  %7141 = vmatprep.mubr.bf16.mxu0 %v6544
  %7142 = vmatmul.mubr.bf16.gmra.mrb[0].mxu0 %v6543
  %v7143 = vpop.f32.mrb[0].mxu0
  %v7144 = vadd.f32 %v6530, %v7143
  %v7145 = vpop.f32.mrb[0].mxu0
  %v7146 = vadd.f32 %v6534, %v7145
  %v7147 = vpop.f32.mrb[0].mxu0
  %v7148 = vpop.f32.mrb[0].mxu0
  %7149 = vdwg.mxu0
  %v7152 = vrot.slane %v7062, 2
  %v7153 = vrot.slane %v7064, 2
  %v7156 = vadd.f32 %v6405, %v7152
  %v7157 = vadd.f32 %v6406, %v7153
  %v7158 = vsub.f32 0.0, %v7156
  %v7159 = vsub.f32 0.0, %v7157
  %v7160 = vmul.f32 %v7158, 1.442695
  %v7161 = vpow.pop %v7160
  %v7162 = vmul.f32 %v7159, 1.442695
  %v7163 = vpow.pop %v7162
  %v7164 = vadd.f32 %v7161, 1.0
  %v7165 = vadd.f32 %v7163, 1.0
  %v7166 = vrcp.pop %v7164
  %v7167 = vmul.f32 1.0, %v7166
  %v7168 = vrcp.pop %v7165
  %v7169 = vmul.f32 1.0, %v7168
  %v7172 = vrot.slane %v7103, 2
  %v7173 = vrot.slane %v7105, 2
  %v7176 = vadd.f32 %v6407, %v7172
  %v7177 = vadd.f32 %v6408, %v7173
  %v7178 = vsub.f32 0.0, %v7176
  %v7179 = vsub.f32 0.0, %v7177
  %v7180 = vmul.f32 %v7178, 1.442695
  %v7181 = vpow.pop %v7180
  %v7182 = vmul.f32 %v7179, 1.442695
  %v7183 = vpow.pop %v7182
  %v7184 = vadd.f32 %v7181, 1.0
  %v7185 = vadd.f32 %v7183, 1.0
  %v7186 = vrcp.pop %v7184
  %v7187 = vmul.f32 1.0, %v7186
  %v7188 = vrcp.pop %v7185
  %v7189 = vmul.f32 1.0, %v7188
  %v7192 = vrot.slane %v7144, 2
  %v7193 = vrot.slane %v7146, 2
  %v7196 = vmul.f32 %v7167, %v7192
  %v7197 = vmul.f32 %v7169, %v7193
  %v7198 = vadd.f32 %v6409, %v7196
  %v7199 = vadd.f32 %v6410, %v7197
  %v7200 = vtanh.pop %v7198
  %v7201 = vtanh.pop %v7199
  %v7202 = vsub.f32 1.0, %v7187
  %v7203 = vsub.f32 1.0, %v7189
  %v7204 = vmul.f32 %v7202, %v7200
  %v7205 = vmul.f32 %v7203, %v7201
  %v7208 = vrot.slane %v6401, 6
  %v7209 = vrot.slane %v6402, 6
  %v7212 = vmul.f32 %v7187, %v7208
  %v7213 = vmul.f32 %v7189, %v7209
  %v7214 = vadd.f32 %v7204, %v7212
  %v7215 = vadd.f32 %v7205, %v7213
  %7216 = vst [vmem:[#allocation3 + $0x10] sm:$0xc0] %v7214
  %7217 = vst [vmem:[#allocation3 + $0x18] sm:$0xc0] %v7215
  %v7218 = vld [vmem:[#allocation3] sm:$0xff]
  %v7219 = vld [vmem:[#allocation3 + $0x8] sm:$0xff]
  %v7220 = vld [vmem:[#allocation3 + $0x10] sm:$0xff]
  %v7221 = vld [vmem:[#allocation3 + $0x18] sm:$0xff]
  %v7222 = vld [vmem:[%s0] sm:$0xff]
  %v7223 = vld [vmem:[%s0 + $0x8] sm:$0xff]
  %v7224 = vld [vmem:[%s0 + $0x10] sm:$0xff]
  %v7225 = vld [vmem:[%s0 + $0x18] sm:$0xff]
  %v7226 = vadd.f32 %v7218, %v7222
  %v7227 = vadd.f32 %v7219, %v7223
  %v7228 = vadd.f32 %v7220, %v7224
  %v7229 = vadd.f32 %v7221, %v7225
  %7230 = vst [vmem:[%s5] sm:$0xff] %v7226
  %7231 = vst [vmem:[%s5 + $0x8] sm:$0xff] %v7227
  %7232 = vst [vmem:[%s5 + $0x10] sm:$0xff] %v7228
  %7233 = vst [vmem:[%s5 + $0x18] sm:$0xff] %v7229
  // Predicated region
  $region22: #{temporal_encoder_forward.1} parent=0 // pred_check
    _
  $region23: #{temporal_encoder_forward.1} parent=0 // pred_check_branch
    %7235 = sbr.rel (0) target = $region25
  $region24: #{temporal_encoder_forward.1} parent=0 // pred_region
    _
  $region25: #{temporal_encoder_forward.1} parent=0 // pred_fallthru
    _
  // Predicated region
  $region26: #{temporal_encoder_forward.1} parent=0 // pred_check
    _
  $region27: #{temporal_encoder_forward.1} parent=0 // pred_check_branch
    %7237 = sbr.rel (0) target = $region29
  $region28: #{temporal_encoder_forward.1} parent=0 // pred_region
    _
  $region29: #{temporal_encoder_forward.1} parent=0 // pred_fallthru
    _

</llo_original>
